<compile_context>
chip_gen: v5e
topology: v5e:2x2
jax: 0.10.0
libtpu: 0.0.40
codegen_flags: <defaults>
</compile_context>

<pallas_src>
import functools

import numpy as np
import jax
import jax.numpy as jnp
from jax.experimental import pallas as pl
from jax.experimental.pallas import tpu as pltpu

# ---- config (stands in for the yaml the PyTorch wrapper reads) ----
N_LAYER = 2
N_HEAD = 4
N_EMBD = 32
HEAD_DIM = N_EMBD // N_HEAD
NUM_X_TOKENS = 3          # matches the `3 + steps` attention mask in the wrapper
X_DIM = 16
V_DIM = 12
Y_DIM = 10
Y_PAD = 128               # lane-dense output store
LN_EPS = 1e-5
NEG_INF = -1e30
SLAB_W = 256              # lane width of the packed weight slab (>= 5*N_EMBD)
MAX_BATCH_BLOCK = 8       # max batch elements stacked per grid step


# ------------------------------ small helpers -------------------------------

def rope_tables(S, hd, base=10000.0):
  inv_freq = 1.0 / (base ** (jnp.arange(0, hd, 2, dtype=jnp.float32) / hd))
  t = jnp.arange(S, dtype=jnp.float32)
  freqs = jnp.outer(t, inv_freq)                       # (S, hd/2)
  emb = jnp.concatenate([freqs, freqs], axis=-1)       # (S, hd)
  return jnp.cos(emb), jnp.sin(emb)


def rotate_half_matrix(n_head, hd):
  """(D, D) block-diagonal matrix with  x @ R == rotate_half(x) per head."""
  half = hd // 2
  r = np.zeros((hd, hd), np.float32)
  for j in range(half):
    r[j + half, j] = -1.0      # out[j]        = -x[j + half]
    r[j, j + half] = 1.0       # out[j + half] =  x[j]
  return jnp.asarray(np.kron(np.eye(n_head, dtype=np.float32), r))


def _pack_weights(params):
  """Fold rotate-half into QKV and pack everything into one (rows, 256) slab.

  Returns (slab, layout) with layout[name] = (row_offset, rows, cols) as
  static python ints.  Every entry is padded to an 8-row boundary and to
  SLAB_W lanes with zeros, so in-kernel slices are cheap aligned loads.
  """
  D = N_EMBD
  rot = rotate_half_matrix(N_HEAD, HEAD_DIM)

  entries = []   # (name, 2d array, logical_cols or None)

  def add(name, a, cols=None):
    a = jnp.asarray(a, jnp.float32)
    if a.ndim == 1:
      a = a[None, :]
    entries.append((name, a, cols))

  add("x_w", params["x_w"])
  add("x_b", params["x_b"])
  add("v_w", params["v_w"])
  add("v_b", params["v_b"])
  for l in range(N_LAYER):
    W, b = params["attn_w"][l], params["attn_b"][l]
    Wq, Wk, Wv = W[:, :D], W[:, D:2 * D], W[:, 2 * D:]
    bq, bk, bv = b[:D], b[D:2 * D], b[2 * D:]
    w_ext = jnp.concatenate([Wq, Wq @ rot, Wk, Wk @ rot, Wv], axis=1)   # (D, 5D)
    b_ext = jnp.concatenate([bq, bq @ rot, bk, bk @ rot, bv], axis=0)   # (5D,)
    add(f"ln1_g_{l}", params["ln1_g"][l]); add(f"ln1_b_{l}", params["ln1_b"][l])
    add(f"attn_w_{l}", w_ext);             add(f"attn_b_{l}", b_ext)
    add(f"proj_w_{l}", params["proj_w"][l]); add(f"proj_b_{l}", params["proj_b"][l])
    add(f"ln2_g_{l}", params["ln2_g"][l]); add(f"ln2_b_{l}", params["ln2_b"][l])
    add(f"fc_w_{l}", params["fc_w"][l]);   add(f"fc_b_{l}", params["fc_b"][l])
    add(f"mlp_w_{l}", params["mlp_proj_w"][l]); add(f"mlp_b_{l}", params["mlp_proj_b"][l])
  add("lnf_g", params["lnf_g"]); add("lnf_b", params["lnf_b"])
  add("head_w", params["head_w"], cols=Y_PAD)   # zero-padded to 128 output lanes
  add("head_b", params["head_b"], cols=Y_PAD)

  layout = {}
  parts = []
  cursor = 0
  for name, a, cols in entries:
    r, c = a.shape
    rp = ((r + 7) // 8) * 8
    parts.append(jnp.pad(a, ((0, rp - r), (0, SLAB_W - c))))
    layout[name] = (cursor, r, c if cols is None else cols)
    cursor += rp
  return jnp.concatenate(parts, axis=0), layout


# --------------------------- fused Pallas kernel ----------------------------

def _fused_forward_kernel(x0_ref, v_ref, cs_ref, mask_ref, w_ref, o_ref, h_sc,
                          *, layout, n_layer, n_head, head_dim, num_x_tokens,
                          steps, sb, b_blk, eps):
  D = n_head * head_dim
  R = b_blk * sb
  scale = 1.0 / (head_dim ** 0.5)

  def wslab(name):
    r0, nr, nc = layout[name]
    return w_ref[r0:r0 + nr, 0:nc]

  def layer_norm(x, g, b):
    mu = jnp.mean(x, axis=-1, keepdims=True)
    var = jnp.mean(jnp.square(x - mu), axis=-1, keepdims=True)
    return (x - mu) * jax.lax.rsqrt(var + eps) * g + b

  cos = cs_ref[0:R, :]          # (R, D)  position tables, tiled per batch block
  sin = cs_ref[R:2 * R, :]
  mask = mask_ref[...]          # (R, R)  block-diagonal additive causal mask

  # ---- embeddings, assembled into the stacked (R, D) token layout ----
  xe = jnp.dot(x0_ref[...], wslab("x_w"),
               preferred_element_type=jnp.float32) + wslab("x_b")   # (b_blk, 3D)
  ve = jnp.dot(v_ref[...], wslab("v_w"),
               preferred_element_type=jnp.float32) + wslab("v_b")   # (b_blk*steps, D)

  h_sc[...] = jnp.zeros((R, D), jnp.float32)   # zero pad rows (kept finite)
  for j in range(b_blk):
    base = j * sb
    for t in range(num_x_tokens):
      h_sc[base + t:base + t + 1, :] = xe[j:j + 1, t * D:(t + 1) * D]
    h_sc[base + num_x_tokens:base + num_x_tokens + steps, :] = \
        ve[j * steps:(j + 1) * steps, :]
  h = h_sc[...]                                                     # (R, D)

  # TODO(synk): switch to lax.fori_loop over the stacked weights if n_layer grows.
  for l in range(n_layer):
    # --- attention (pre-LN fused; rotate-half already folded into the weights) ---
    a_in = layer_norm(h, wslab(f"ln1_g_{l}"), wslab(f"ln1_b_{l}"))
    qkv = jnp.dot(a_in, wslab(f"attn_w_{l}"),
                  preferred_element_type=jnp.float32) + wslab(f"attn_b_{l}")  # (R, 5D)
    q = qkv[:, 0:D] * cos + qkv[:, D:2 * D] * sin      # RoPE is pure VPU work now
    k = qkv[:, 2 * D:3 * D] * cos + qkv[:, 3 * D:4 * D] * sin
    v = qkv[:, 4 * D:5 * D]
    kT = k.T                                           # one XLU transpose per layer
    proj_w = wslab(f"proj_w_{l}")                      # (D, D)

    att = None
    for hh in range(n_head):                           # static unroll (n_head=4)
      c0, c1 = hh * head_dim, (hh + 1) * head_dim
      s = jnp.dot(q[:, c0:c1], kT[c0:c1, :],
                  preferred_element_type=jnp.float32) * scale + mask          # (R, R)
      m = jnp.max(s, axis=-1, keepdims=True)
      p = jnp.exp(s - m)
      p = p / jnp.sum(p, axis=-1, keepdims=True)       # exact softmax denom
      oh = jnp.dot(p, v[:, c0:c1], preferred_element_type=jnp.float32)        # (R, hd)
      # per-head output folded straight into its slice of the output projection
      ph = jnp.dot(oh, proj_w[c0:c1, :], preferred_element_type=jnp.float32)  # (R, D)
      att = ph if att is None else att + ph
    h = h + att + wslab(f"proj_b_{l}")

    # --- MLP block (pre-LN fused into the FC matmul) ---
    m_in = layer_norm(h, wslab(f"ln2_g_{l}"), wslab(f"ln2_b_{l}"))
    ff = jax.nn.gelu(
        jnp.dot(m_in, wslab(f"fc_w_{l}"),
                preferred_element_type=jnp.float32) + wslab(f"fc_b_{l}"),
        approximate=True)                              # GPT-2 gelu_new
    h = h + jnp.dot(ff, wslab(f"mlp_w_{l}"),
                    preferred_element_type=jnp.float32) + wslab(f"mlp_b_{l}")

  hf = layer_norm(h, wslab("lnf_g"), wslab("lnf_b"))
  o_ref[...] = (jnp.dot(hf, wslab("head_w"), preferred_element_type=jnp.float32)
                + wslab("head_b")).astype(o_ref.dtype)   # (R, 128) lane-dense store


# ------------------------------- JAX wrapper ---------------------------------

def rotary_transformer_forward(params, x_0, V):
  """Equivalent of RotaryTransformerWrapper.forward -> output['logits'].

  x_0: (B, x_dim), V: (B, steps, v_dim) -> logits (B, 3 + steps, y_dim).
  The wrapper's attention_mask is all-ones (no padding), so only the GPT-2
  causal mask applies (block-diagonal here because batch elements are stacked
  along the sublane axis inside each grid step).
  """
  B, steps, v_dim = V.shape
  S = NUM_X_TOKENS + steps
  SB = ((S + 7) // 8) * 8                 # per-element rows padded to sublane tile
  D = N_EMBD

  # batch blocking: amortise per-grid-step overhead, keep >=2 steps for v7x TCs
  b_blk = 1 if B <= 1 else int(min(MAX_BATCH_BLOCK, pl.cdiv(B, 2)))
  nb = int(pl.cdiv(B, b_blk))
  b_pad = nb * b_blk
  R = b_blk * SB

  # --- pack weights (rotate-half folded into QKV; head padded to 128 lanes) ---
  w_slab, layout = _pack_weights(params)

  # --- constants: stacked RoPE tables + block-diagonal additive causal mask ---
  cos, sin = rope_tables(SB, HEAD_DIM)
  cos_f = jnp.tile(jnp.tile(cos, (1, N_HEAD)), (b_blk, 1))    # (R, D)
  sin_f = jnp.tile(jnp.tile(sin, (1, N_HEAD)), (b_blk, 1))
  cs = jnp.concatenate([cos_f, sin_f], axis=0)                # (2R, D)
  t = np.arange(SB)
  causal = (t[None, :] <= t[:, None]).astype(np.float32)      # (SB, SB)
  blockdiag = np.kron(np.eye(b_blk, dtype=np.float32), causal)
  mask = jnp.asarray(np.where(blockdiag > 0.5, 0.0, NEG_INF).astype(np.float32))

  # --- pad & reshape per-batch inputs for the batch-blocked grid ---
  x0p = jnp.pad(x_0, ((0, b_pad - B), (0, 0))).reshape(nb, b_blk, X_DIM)
  vp = jnp.pad(V, ((0, b_pad - B), (0, 0), (0, 0))).reshape(nb, b_blk * steps, v_dim)

  kernel = functools.partial(
      _fused_forward_kernel, layout=layout,
      n_layer=N_LAYER, n_head=N_HEAD, head_dim=HEAD_DIM,
      num_x_tokens=NUM_X_TOKENS, steps=steps, sb=SB, b_blk=b_blk, eps=LN_EPS)

  def const_spec(a):
    # whole array VMEM-resident; same block every grid step (fetched once)
    return pl.BlockSpec(a.shape, lambda b: (0,) * a.ndim)

  out = pl.pallas_call(
      kernel,
      out_shape=jax.ShapeDtypeStruct((nb, R, Y_PAD), jnp.float32),
      grid=(nb,),
      in_specs=[
          pl.BlockSpec((None, b_blk, X_DIM), lambda b: (b, 0, 0)),          # x_0 block
          pl.BlockSpec((None, b_blk * steps, v_dim), lambda b: (b, 0, 0)),  # V block
          const_spec(cs), const_spec(mask), const_spec(w_slab),
      ],
      out_specs=pl.BlockSpec((None, R, Y_PAD), lambda b: (b, 0, 0)),
      scratch_shapes=[pltpu.VMEM((R, D), jnp.float32)],
      compiler_params=pltpu.CompilerParams(
          dimension_semantics=("parallel",)),
  )(x0p, vp, cs, mask, w_slab)

  logits = out.reshape(b_pad, SB, Y_PAD)[:B, :S, :Y_DIM]
  return logits


# ------------------------------ synthetic weights ----------------------------

def init_params(key):
  ks = iter(jax.random.split(key, 24))

  def w(*shape):
    return 0.02 * jax.random.normal(next(ks), shape, jnp.float32)

  L, D = N_LAYER, N_EMBD
  return {
      "x_w": w(X_DIM, NUM_X_TOKENS * D), "x_b": w(NUM_X_TOKENS * D),
      "v_w": w(V_DIM, D), "v_b": w(D),
      "ln1_g": jnp.ones((L, D), jnp.float32), "ln1_b": w(L, D),
      "attn_w": w(L, D, 3 * D), "attn_b": w(L, 3 * D),
      "proj_w": w(L, D, D), "proj_b": w(L, D),
      "ln2_g": jnp.ones((L, D), jnp.float32), "ln2_b": w(L, D),
      "fc_w": w(L, D, 4 * D), "fc_b": w(L, 4 * D),
      "mlp_proj_w": w(L, 4 * D, D), "mlp_proj_b": w(L, D),
      "lnf_g": jnp.ones((D,), jnp.float32), "lnf_b": w(D),
      "head_w": w(D, Y_DIM), "head_b": w(Y_DIM),
  }


# ---------------------- pure-JAX reference (for checking) --------------------

def reference_forward(params, x_0, V):
  B, steps, _ = V.shape
  S = NUM_X_TOKENS + steps
  D = N_EMBD
  cos, sin = rope_tables(S, HEAD_DIM)
  cos_f = jnp.tile(cos, (1, N_HEAD))
  sin_f = jnp.tile(sin, (1, N_HEAD))
  rot = rotate_half_matrix(N_HEAD, HEAD_DIM)
  row = jnp.arange(S)[:, None]
  col = jnp.arange(S)[None, :]
  mask = jnp.where(col <= row, 0.0, NEG_INF).astype(jnp.float32)

  def ln(x, g, b):
    mu = x.mean(-1, keepdims=True)
    var = jnp.square(x - mu).mean(-1, keepdims=True)
    return (x - mu) * jax.lax.rsqrt(var + LN_EPS) * g + b

  x_tok = (x_0 @ params["x_w"] + params["x_b"]).reshape(B, NUM_X_TOKENS, D)
  v_tok = V @ params["v_w"] + params["v_b"]
  h = jnp.concatenate([x_tok, v_tok], axis=1)                  # (B, S, D)

  for l in range(N_LAYER):
    a_in = ln(h, params["ln1_g"][l], params["ln1_b"][l])
    qkv = a_in @ params["attn_w"][l] + params["attn_b"][l]
    q, k, v = qkv[..., :D], qkv[..., D:2 * D], qkv[..., 2 * D:]
    q = q * cos_f + (q @ rot) * sin_f
    k = k * cos_f + (k @ rot) * sin_f
    qh = q.reshape(B, S, N_HEAD, HEAD_DIM).transpose(0, 2, 1, 3)
    kh = k.reshape(B, S, N_HEAD, HEAD_DIM).transpose(0, 2, 1, 3)
    vh = v.reshape(B, S, N_HEAD, HEAD_DIM).transpose(0, 2, 1, 3)
    s = jnp.einsum("bhqd,bhkd->bhqk", qh, kh) / (HEAD_DIM ** 0.5) + mask
    p = jax.nn.softmax(s, axis=-1)
    att = jnp.einsum("bhqk,bhkd->bhqd", p, vh).transpose(0, 2, 1, 3)
    h = h + att.reshape(B, S, D) @ params["proj_w"][l] + params["proj_b"][l]
    m_in = ln(h, params["ln2_g"][l], params["ln2_b"][l])
    mlp = jax.nn.gelu(m_in @ params["fc_w"][l] + params["fc_b"][l],
                      approximate=True)
    h = h + mlp @ params["mlp_proj_w"][l] + params["mlp_proj_b"][l]

  hf = ln(h, params["lnf_g"], params["lnf_b"])
  return hf @ params["head_w"] + params["head_b"]


if __name__ == "__main__":
  key = jax.random.PRNGKey(0)
  kp, kx, kv = jax.random.split(key, 3)
  params = init_params(kp)

  B, steps = 4, 8                      # exercises batch blocking: 2 grid steps x 2 elems
  x_0 = jax.random.normal(kx, (B, X_DIM), jnp.float32)
  V = jax.random.normal(kv, (B, steps, V_DIM), jnp.float32)

  fwd = jax.jit(lambda a, b: rotary_transformer_forward(params, a, b))
  logits = fwd(x_0, V)
  jax.block_until_ready(logits)

  assert logits.shape == (B, NUM_X_TOKENS + steps, Y_DIM), logits.shape
  assert bool(jnp.all(jnp.isfinite(logits)))

  ref = reference_forward(params, x_0, V)
  max_err = float(jnp.max(jnp.abs(logits - ref)))
  assert bool(jnp.allclose(logits, ref, atol=2e-3, rtol=2e-3)), max_err

  print("KERNEL_OK")
</pallas_src>

<mosaic_0001>
module attributes {stable_mosaic.version = 11 : i64} {
  func.func @_fused_forward_kernel(%arg0: i32, %arg1: memref<1x2x16xf32, #tpu.memory_space<vmem>>, %arg2: memref<1x16x12xf32, #tpu.memory_space<vmem>>, %arg3: memref<64x32xf32, #tpu.memory_space<vmem>>, %arg4: memref<32x32xf32, #tpu.memory_space<vmem>>, %arg5: memref<680x256xf32, #tpu.memory_space<vmem>>, %arg6: memref<1x32x128xf32, #tpu.memory_space<vmem>>, %arg7: memref<32x32xf32, #tpu.memory_space<vmem>>) attributes {dimension_semantics = [#tpu.dimension_semantics<parallel>], iteration_bounds = array<i64: 2>, scalar_prefetch = 0 : i64, scratch_operands = 1 : i64, tpu.core_type = #tpu.core_type<tc>, window_params = [{transform_indices = @transform_0, window_bounds = array<i64: 1, 2, 16>}, {transform_indices = @transform_1, window_bounds = array<i64: 1, 16, 12>}, {pipeline_mode = #tpu.pipeline_mode<synchronous>, transform_indices = @transform_2, window_bounds = array<i64: 64, 32>}, {pipeline_mode = #tpu.pipeline_mode<synchronous>, transform_indices = @transform_3, window_bounds = array<i64: 32, 32>}, {pipeline_mode = #tpu.pipeline_mode<synchronous>, transform_indices = @transform_4, window_bounds = array<i64: 680, 256>}, {transform_indices = @transform_5, window_bounds = array<i64: 1, 32, 128>}]} {
    %c0 = arith.constant 0 : index
    %c0_0 = arith.constant 0 : index
    %0 = vector.load %arg3[%c0, %c0_0] : memref<64x32xf32, #tpu.memory_space<vmem>>, vector<32x32xf32>
    %c32 = arith.constant 32 : index
    %c0_1 = arith.constant 0 : index
    %1 = vector.load %arg3[%c32, %c0_1] : memref<64x32xf32, #tpu.memory_space<vmem>>, vector<32x32xf32>
    %c0_2 = arith.constant 0 : index
    %c0_3 = arith.constant 0 : index
    %2 = vector.load %arg4[%c0_2, %c0_3] : memref<32x32xf32, #tpu.memory_space<vmem>>, vector<32x32xf32>
    %c0_4 = arith.constant 0 : index
    %c0_5 = arith.constant 0 : index
    %c0_6 = arith.constant 0 : index
    %3 = vector.load %arg1[%c0_4, %c0_5, %c0_6] : memref<1x2x16xf32, #tpu.memory_space<vmem>>, vector<1x2x16xf32>
    %4 = vector.shape_cast %3 : vector<1x2x16xf32> to vector<2x16xf32>
    %c0_7 = arith.constant 0 : index
    %c0_8 = arith.constant 0 : index
    %5 = vector.load %arg5[%c0_7, %c0_8] : memref<680x256xf32, #tpu.memory_space<vmem>>, vector<16x96xf32>
    %cst = arith.constant dense<0.000000e+00> : vector<2x96xf32>
    %6 = tpu.matmul %4, %5, %cst {dimension_numbers = #tpu.dot_dimension_numbers<[1], [0], [0], [1], [0, 0, 1, 1], [], []>} : vector<2x16xf32>, vector<16x96xf32>, vector<2x96xf32> -> vector<2x96xf32>
    %c16 = arith.constant 16 : index
    %c0_9 = arith.constant 0 : index
    %7 = vector.load %arg5[%c16, %c0_9] : memref<680x256xf32, #tpu.memory_space<vmem>>, vector<1x96xf32>
    %8 = vector.broadcast %7 : vector<1x96xf32> to vector<2x96xf32>
    %9 = arith.addf %6, %8 : vector<2x96xf32>
    %c0_10 = arith.constant 0 : index
    %c0_11 = arith.constant 0 : index
    %c0_12 = arith.constant 0 : index
    %10 = vector.load %arg2[%c0_10, %c0_11, %c0_12] : memref<1x16x12xf32, #tpu.memory_space<vmem>>, vector<1x16x12xf32>
    %11 = vector.shape_cast %10 : vector<1x16x12xf32> to vector<16x12xf32>
    %c24 = arith.constant 24 : index
    %c0_13 = arith.constant 0 : index
    %12 = vector.load %arg5[%c24, %c0_13] : memref<680x256xf32, #tpu.memory_space<vmem>>, vector<12x32xf32>
    %cst_14 = arith.constant dense<0.000000e+00> : vector<16x32xf32>
    %13 = tpu.matmul %11, %12, %cst_14 {dimension_numbers = #tpu.dot_dimension_numbers<[1], [0], [0], [1], [0, 0, 1, 1], [], []>} : vector<16x12xf32>, vector<12x32xf32>, vector<16x32xf32> -> vector<16x32xf32>
    %c40 = arith.constant 40 : index
    %c0_15 = arith.constant 0 : index
    %14 = vector.load %arg5[%c40, %c0_15] : memref<680x256xf32, #tpu.memory_space<vmem>>, vector<1x32xf32>
    %15 = vector.broadcast %14 : vector<1x32xf32> to vector<16x32xf32>
    %16 = arith.addf %13, %15 : vector<16x32xf32>
    %cst_16 = arith.constant 0.000000e+00 : f32
    %17 = vector.broadcast %cst_16 : f32 to vector<32x32xf32>
    %c0_17 = arith.constant 0 : index
    %c0_18 = arith.constant 0 : index
    %18 = vector.load %arg7[%c0_17, %c0_18] : memref<32x32xf32, #tpu.memory_space<vmem>>, vector<32x32xf32>
    tpu.vector_store %arg7[%c0_17, %c0_18], %17 {strides = array<i32>} : memref<32x32xf32, #tpu.memory_space<vmem>>, vector<32x32xf32>,
    %19 = vector.extract_strided_slice %9 {offsets = [0, 0], sizes = [1, 32], strides = [1, 1]} : vector<2x96xf32> to vector<1x32xf32>
    %c0_19 = arith.constant 0 : index
    %c0_20 = arith.constant 0 : index
    %20 = vector.load %arg7[%c0_19, %c0_20] : memref<32x32xf32, #tpu.memory_space<vmem>>, vector<1x32xf32>
    tpu.vector_store %arg7[%c0_19, %c0_20], %19 {strides = array<i32>} : memref<32x32xf32, #tpu.memory_space<vmem>>, vector<1x32xf32>,
    %21 = vector.extract_strided_slice %9 {offsets = [0, 32], sizes = [1, 32], strides = [1, 1]} : vector<2x96xf32> to vector<1x32xf32>
    %c1 = arith.constant 1 : index
    %c0_21 = arith.constant 0 : index
    %22 = vector.load %arg7[%c1, %c0_21] : memref<32x32xf32, #tpu.memory_space<vmem>>, vector<1x32xf32>
    tpu.vector_store %arg7[%c1, %c0_21], %21 {strides = array<i32>} : memref<32x32xf32, #tpu.memory_space<vmem>>, vector<1x32xf32>,
    %23 = vector.extract_strided_slice %9 {offsets = [0, 64], sizes = [1, 32], strides = [1, 1]} : vector<2x96xf32> to vector<1x32xf32>
    %c2 = arith.constant 2 : index
    %c0_22 = arith.constant 0 : index
    %24 = vector.load %arg7[%c2, %c0_22] : memref<32x32xf32, #tpu.memory_space<vmem>>, vector<1x32xf32>
    tpu.vector_store %arg7[%c2, %c0_22], %23 {strides = array<i32>} : memref<32x32xf32, #tpu.memory_space<vmem>>, vector<1x32xf32>,
    %25 = vector.extract_strided_slice %16 {offsets = [0, 0], sizes = [8, 32], strides = [1, 1]} : vector<16x32xf32> to vector<8x32xf32>
    %c3 = arith.constant 3 : index
    %c0_23 = arith.constant 0 : index
    %26 = vector.load %arg7[%c3, %c0_23] : memref<32x32xf32, #tpu.memory_space<vmem>>, vector<8x32xf32>
    tpu.vector_store %arg7[%c3, %c0_23], %25 {strides = array<i32>} : memref<32x32xf32, #tpu.memory_space<vmem>>, vector<8x32xf32>,
    %27 = vector.extract_strided_slice %9 {offsets = [1, 0], sizes = [1, 32], strides = [1, 1]} : vector<2x96xf32> to vector<1x32xf32>
    %c16_24 = arith.constant 16 : index
    %c0_25 = arith.constant 0 : index
    %28 = vector.load %arg7[%c16_24, %c0_25] : memref<32x32xf32, #tpu.memory_space<vmem>>, vector<1x32xf32>
    tpu.vector_store %arg7[%c16_24, %c0_25], %27 {strides = array<i32>} : memref<32x32xf32, #tpu.memory_space<vmem>>, vector<1x32xf32>,
    %29 = vector.extract_strided_slice %9 {offsets = [1, 32], sizes = [1, 32], strides = [1, 1]} : vector<2x96xf32> to vector<1x32xf32>
    %c17 = arith.constant 17 : index
    %c0_26 = arith.constant 0 : index
    %30 = vector.load %arg7[%c17, %c0_26] : memref<32x32xf32, #tpu.memory_space<vmem>>, vector<1x32xf32>
    tpu.vector_store %arg7[%c17, %c0_26], %29 {strides = array<i32>} : memref<32x32xf32, #tpu.memory_space<vmem>>, vector<1x32xf32>,
    %31 = vector.extract_strided_slice %9 {offsets = [1, 64], sizes = [1, 32], strides = [1, 1]} : vector<2x96xf32> to vector<1x32xf32>
    %c18 = arith.constant 18 : index
    %c0_27 = arith.constant 0 : index
    %32 = vector.load %arg7[%c18, %c0_27] : memref<32x32xf32, #tpu.memory_space<vmem>>, vector<1x32xf32>
    tpu.vector_store %arg7[%c18, %c0_27], %31 {strides = array<i32>} : memref<32x32xf32, #tpu.memory_space<vmem>>, vector<1x32xf32>,
    %33 = vector.extract_strided_slice %16 {offsets = [8, 0], sizes = [8, 32], strides = [1, 1]} : vector<16x32xf32> to vector<8x32xf32>
    %c19 = arith.constant 19 : index
    %c0_28 = arith.constant 0 : index
    %34 = vector.load %arg7[%c19, %c0_28] : memref<32x32xf32, #tpu.memory_space<vmem>>, vector<8x32xf32>
    tpu.vector_store %arg7[%c19, %c0_28], %33 {strides = array<i32>} : memref<32x32xf32, #tpu.memory_space<vmem>>, vector<8x32xf32>,
    %c0_29 = arith.constant 0 : index
    %c0_30 = arith.constant 0 : index
    %35 = vector.load %arg7[%c0_29, %c0_30] : memref<32x32xf32, #tpu.memory_space<vmem>>, vector<32x32xf32>
    %c48 = arith.constant 48 : index
    %c0_31 = arith.constant 0 : index
    %36 = vector.load %arg5[%c48, %c0_31] : memref<680x256xf32, #tpu.memory_space<vmem>>, vector<1x32xf32>
    %c56 = arith.constant 56 : index
    %c0_32 = arith.constant 0 : index
    %37 = vector.load %arg5[%c56, %c0_32] : memref<680x256xf32, #tpu.memory_space<vmem>>, vector<1x32xf32>
    %cst_33 = arith.constant dense<0.000000e+00> : vector<32xf32>
    %38 = vector.multi_reduction <add>, %35, %cst_33 [1] : vector<32x32xf32> to vector<32xf32>
    %39 = vector.shape_cast %38 : vector<32xf32> to vector<32x1xf32>
    %cst_34 = arith.constant 3.200000e+01 : f32
    %40 = vector.broadcast %cst_34 : f32 to vector<32x1xf32>
    %41 = arith.divf %39, %40 : vector<32x1xf32>
    %42 = vector.broadcast %41 : vector<32x1xf32> to vector<32x32xf32>
    %43 = arith.subf %35, %42 : vector<32x32xf32>
    %44 = arith.mulf %43, %43 : vector<32x32xf32>
    %cst_35 = arith.constant dense<0.000000e+00> : vector<32xf32>
    %45 = vector.multi_reduction <add>, %44, %cst_35 [1] : vector<32x32xf32> to vector<32xf32>
    %46 = vector.shape_cast %45 : vector<32xf32> to vector<32x1xf32>
    %cst_36 = arith.constant 3.200000e+01 : f32
    %47 = vector.broadcast %cst_36 : f32 to vector<32x1xf32>
    %48 = arith.divf %46, %47 : vector<32x1xf32>
    %49 = vector.broadcast %41 : vector<32x1xf32> to vector<32x32xf32>
    %50 = arith.subf %35, %49 : vector<32x32xf32>
    %cst_37 = arith.constant 9.99999974E-6 : f32
    %51 = vector.broadcast %cst_37 : f32 to vector<32x1xf32>
    %52 = arith.addf %48, %51 : vector<32x1xf32>
    %53 = math.rsqrt %52 : vector<32x1xf32>
    %54 = vector.broadcast %53 : vector<32x1xf32> to vector<32x32xf32>
    %55 = arith.mulf %50, %54 : vector<32x32xf32>
    %56 = vector.broadcast %36 : vector<1x32xf32> to vector<32x32xf32>
    %57 = arith.mulf %55, %56 : vector<32x32xf32>
    %58 = vector.broadcast %37 : vector<1x32xf32> to vector<32x32xf32>
    %59 = arith.addf %57, %58 : vector<32x32xf32>
    %c64 = arith.constant 64 : index
    %c0_38 = arith.constant 0 : index
    %60 = vector.load %arg5[%c64, %c0_38] : memref<680x256xf32, #tpu.memory_space<vmem>>, vector<32x160xf32>
    %cst_39 = arith.constant dense<0.000000e+00> : vector<32x160xf32>
    %61 = tpu.matmul %59, %60, %cst_39 {dimension_numbers = #tpu.dot_dimension_numbers<[1], [0], [0], [1], [0, 0, 1, 1], [], []>} : vector<32x32xf32>, vector<32x160xf32>, vector<32x160xf32> -> vector<32x160xf32>
    %c96 = arith.constant 96 : index
    %c0_40 = arith.constant 0 : index
    %62 = vector.load %arg5[%c96, %c0_40] : memref<680x256xf32, #tpu.memory_space<vmem>>, vector<1x160xf32>
    %63 = vector.broadcast %62 : vector<1x160xf32> to vector<32x160xf32>
    %64 = arith.addf %61, %63 : vector<32x160xf32>
    %65 = vector.extract_strided_slice %64 {offsets = [0, 0], sizes = [32, 32], strides = [1, 1]} : vector<32x160xf32> to vector<32x32xf32>
    %66 = arith.mulf %65, %0 : vector<32x32xf32>
    %67 = vector.extract_strided_slice %64 {offsets = [0, 32], sizes = [32, 32], strides = [1, 1]} : vector<32x160xf32> to vector<32x32xf32>
    %68 = arith.mulf %67, %1 : vector<32x32xf32>
    %69 = arith.addf %66, %68 : vector<32x32xf32>
    %70 = vector.extract_strided_slice %64 {offsets = [0, 64], sizes = [32, 32], strides = [1, 1]} : vector<32x160xf32> to vector<32x32xf32>
    %71 = arith.mulf %70, %0 : vector<32x32xf32>
    %72 = vector.extract_strided_slice %64 {offsets = [0, 96], sizes = [32, 32], strides = [1, 1]} : vector<32x160xf32> to vector<32x32xf32>
    %73 = arith.mulf %72, %1 : vector<32x32xf32>
    %74 = arith.addf %71, %73 : vector<32x32xf32>
    %75 = vector.extract_strided_slice %64 {offsets = [0, 128], sizes = [32, 32], strides = [1, 1]} : vector<32x160xf32> to vector<32x32xf32>
    %76 = tpu.transpose %74, [1, 0] : vector<32x32xf32> -> vector<32x32xf32>
    %c104 = arith.constant 104 : index
    %c0_41 = arith.constant 0 : index
    %77 = vector.load %arg5[%c104, %c0_41] : memref<680x256xf32, #tpu.memory_space<vmem>>, vector<32x32xf32>
    %78 = vector.extract_strided_slice %69 {offsets = [0, 0], sizes = [32, 8], strides = [1, 1]} : vector<32x32xf32> to vector<32x8xf32>
    %79 = vector.extract_strided_slice %76 {offsets = [0, 0], sizes = [8, 32], strides = [1, 1]} : vector<32x32xf32> to vector<8x32xf32>
    %cst_42 = arith.constant dense<0.000000e+00> : vector<32x32xf32>
    %80 = tpu.matmul %78, %79, %cst_42 {dimension_numbers = #tpu.dot_dimension_numbers<[1], [0], [0], [1], [0, 0, 1, 1], [], []>} : vector<32x8xf32>, vector<8x32xf32>, vector<32x32xf32> -> vector<32x32xf32>
    %cst_43 = arith.constant 0.353553385 : f32
    %81 = vector.broadcast %cst_43 : f32 to vector<32x32xf32>
    %82 = arith.mulf %80, %81 : vector<32x32xf32>
    %83 = arith.addf %82, %2 : vector<32x32xf32>
    %cst_44 = arith.constant dense<0xFF800000> : vector<32xf32>
    %84 = vector.multi_reduction <maximumf>, %83, %cst_44 [1] : vector<32x32xf32> to vector<32xf32>
    %85 = vector.shape_cast %84 : vector<32xf32> to vector<32x1xf32>
    %86 = vector.broadcast %85 : vector<32x1xf32> to vector<32x32xf32>
    %87 = arith.subf %83, %86 : vector<32x32xf32>
    %88 = math.exp %87 : vector<32x32xf32>
    %cst_45 = arith.constant dense<0.000000e+00> : vector<32xf32>
    %89 = vector.multi_reduction <add>, %88, %cst_45 [1] : vector<32x32xf32> to vector<32xf32>
    %90 = vector.shape_cast %89 : vector<32xf32> to vector<32x1xf32>
    %91 = vector.broadcast %90 : vector<32x1xf32> to vector<32x32xf32>
    %92 = arith.divf %88, %91 : vector<32x32xf32>
    %93 = vector.extract_strided_slice %75 {offsets = [0, 0], sizes = [32, 8], strides = [1, 1]} : vector<32x32xf32> to vector<32x8xf32>
    %cst_46 = arith.constant dense<0.000000e+00> : vector<32x8xf32>
    %94 = tpu.matmul %92, %93, %cst_46 {dimension_numbers = #tpu.dot_dimension_numbers<[1], [0], [0], [1], [0, 0, 1, 1], [], []>} : vector<32x32xf32>, vector<32x8xf32>, vector<32x8xf32> -> vector<32x8xf32>
    %95 = vector.extract_strided_slice %77 {offsets = [0, 0], sizes = [8, 32], strides = [1, 1]} : vector<32x32xf32> to vector<8x32xf32>
    %cst_47 = arith.constant dense<0.000000e+00> : vector<32x32xf32>
    %96 = tpu.matmul %94, %95, %cst_47 {dimension_numbers = #tpu.dot_dimension_numbers<[1], [0], [0], [1], [0, 0, 1, 1], [], []>} : vector<32x8xf32>, vector<8x32xf32>, vector<32x32xf32> -> vector<32x32xf32>
    %97 = vector.extract_strided_slice %69 {offsets = [0, 8], sizes = [32, 8], strides = [1, 1]} : vector<32x32xf32> to vector<32x8xf32>
    %98 = vector.extract_strided_slice %76 {offsets = [8, 0], sizes = [8, 32], strides = [1, 1]} : vector<32x32xf32> to vector<8x32xf32>
    %cst_48 = arith.constant dense<0.000000e+00> : vector<32x32xf32>
    %99 = tpu.matmul %97, %98, %cst_48 {dimension_numbers = #tpu.dot_dimension_numbers<[1], [0], [0], [1], [0, 0, 1, 1], [], []>} : vector<32x8xf32>, vector<8x32xf32>, vector<32x32xf32> -> vector<32x32xf32>
    %cst_49 = arith.constant 0.353553385 : f32
    %100 = vector.broadcast %cst_49 : f32 to vector<32x32xf32>
    %101 = arith.mulf %99, %100 : vector<32x32xf32>
    %102 = arith.addf %101, %2 : vector<32x32xf32>
    %cst_50 = arith.constant dense<0xFF800000> : vector<32xf32>
    %103 = vector.multi_reduction <maximumf>, %102, %cst_50 [1] : vector<32x32xf32> to vector<32xf32>
    %104 = vector.shape_cast %103 : vector<32xf32> to vector<32x1xf32>
    %105 = vector.broadcast %104 : vector<32x1xf32> to vector<32x32xf32>
    %106 = arith.subf %102, %105 : vector<32x32xf32>
    %107 = math.exp %106 : vector<32x32xf32>
    %cst_51 = arith.constant dense<0.000000e+00> : vector<32xf32>
    %108 = vector.multi_reduction <add>, %107, %cst_51 [1] : vector<32x32xf32> to vector<32xf32>
    %109 = vector.shape_cast %108 : vector<32xf32> to vector<32x1xf32>
    %110 = vector.broadcast %109 : vector<32x1xf32> to vector<32x32xf32>
    %111 = arith.divf %107, %110 : vector<32x32xf32>
    %112 = vector.extract_strided_slice %75 {offsets = [0, 8], sizes = [32, 8], strides = [1, 1]} : vector<32x32xf32> to vector<32x8xf32>
    %cst_52 = arith.constant dense<0.000000e+00> : vector<32x8xf32>
    %113 = tpu.matmul %111, %112, %cst_52 {dimension_numbers = #tpu.dot_dimension_numbers<[1], [0], [0], [1], [0, 0, 1, 1], [], []>} : vector<32x32xf32>, vector<32x8xf32>, vector<32x8xf32> -> vector<32x8xf32>
    %114 = vector.extract_strided_slice %77 {offsets = [8, 0], sizes = [8, 32], strides = [1, 1]} : vector<32x32xf32> to vector<8x32xf32>
    %cst_53 = arith.constant dense<0.000000e+00> : vector<32x32xf32>
    %115 = tpu.matmul %113, %114, %cst_53 {dimension_numbers = #tpu.dot_dimension_numbers<[1], [0], [0], [1], [0, 0, 1, 1], [], []>} : vector<32x8xf32>, vector<8x32xf32>, vector<32x32xf32> -> vector<32x32xf32>
    %116 = arith.addf %96, %115 : vector<32x32xf32>
    %117 = vector.extract_strided_slice %69 {offsets = [0, 16], sizes = [32, 8], strides = [1, 1]} : vector<32x32xf32> to vector<32x8xf32>
    %118 = vector.extract_strided_slice %76 {offsets = [16, 0], sizes = [8, 32], strides = [1, 1]} : vector<32x32xf32> to vector<8x32xf32>
    %cst_54 = arith.constant dense<0.000000e+00> : vector<32x32xf32>
    %119 = tpu.matmul %117, %118, %cst_54 {dimension_numbers = #tpu.dot_dimension_numbers<[1], [0], [0], [1], [0, 0, 1, 1], [], []>} : vector<32x8xf32>, vector<8x32xf32>, vector<32x32xf32> -> vector<32x32xf32>
    %cst_55 = arith.constant 0.353553385 : f32
    %120 = vector.broadcast %cst_55 : f32 to vector<32x32xf32>
    %121 = arith.mulf %119, %120 : vector<32x32xf32>
    %122 = arith.addf %121, %2 : vector<32x32xf32>
    %cst_56 = arith.constant dense<0xFF800000> : vector<32xf32>
    %123 = vector.multi_reduction <maximumf>, %122, %cst_56 [1] : vector<32x32xf32> to vector<32xf32>
    %124 = vector.shape_cast %123 : vector<32xf32> to vector<32x1xf32>
    %125 = vector.broadcast %124 : vector<32x1xf32> to vector<32x32xf32>
    %126 = arith.subf %122, %125 : vector<32x32xf32>
    %127 = math.exp %126 : vector<32x32xf32>
    %cst_57 = arith.constant dense<0.000000e+00> : vector<32xf32>
    %128 = vector.multi_reduction <add>, %127, %cst_57 [1] : vector<32x32xf32> to vector<32xf32>
    %129 = vector.shape_cast %128 : vector<32xf32> to vector<32x1xf32>
    %130 = vector.broadcast %129 : vector<32x1xf32> to vector<32x32xf32>
    %131 = arith.divf %127, %130 : vector<32x32xf32>
    %132 = vector.extract_strided_slice %75 {offsets = [0, 16], sizes = [32, 8], strides = [1, 1]} : vector<32x32xf32> to vector<32x8xf32>
    %cst_58 = arith.constant dense<0.000000e+00> : vector<32x8xf32>
    %133 = tpu.matmul %131, %132, %cst_58 {dimension_numbers = #tpu.dot_dimension_numbers<[1], [0], [0], [1], [0, 0, 1, 1], [], []>} : vector<32x32xf32>, vector<32x8xf32>, vector<32x8xf32> -> vector<32x8xf32>
    %134 = vector.extract_strided_slice %77 {offsets = [16, 0], sizes = [8, 32], strides = [1, 1]} : vector<32x32xf32> to vector<8x32xf32>
    %cst_59 = arith.constant dense<0.000000e+00> : vector<32x32xf32>
    %135 = tpu.matmul %133, %134, %cst_59 {dimension_numbers = #tpu.dot_dimension_numbers<[1], [0], [0], [1], [0, 0, 1, 1], [], []>} : vector<32x8xf32>, vector<8x32xf32>, vector<32x32xf32> -> vector<32x32xf32>
    %136 = arith.addf %116, %135 : vector<32x32xf32>
    %137 = vector.extract_strided_slice %69 {offsets = [0, 24], sizes = [32, 8], strides = [1, 1]} : vector<32x32xf32> to vector<32x8xf32>
    %138 = vector.extract_strided_slice %76 {offsets = [24, 0], sizes = [8, 32], strides = [1, 1]} : vector<32x32xf32> to vector<8x32xf32>
    %cst_60 = arith.constant dense<0.000000e+00> : vector<32x32xf32>
    %139 = tpu.matmul %137, %138, %cst_60 {dimension_numbers = #tpu.dot_dimension_numbers<[1], [0], [0], [1], [0, 0, 1, 1], [], []>} : vector<32x8xf32>, vector<8x32xf32>, vector<32x32xf32> -> vector<32x32xf32>
    %cst_61 = arith.constant 0.353553385 : f32
    %140 = vector.broadcast %cst_61 : f32 to vector<32x32xf32>
    %141 = arith.mulf %139, %140 : vector<32x32xf32>
    %142 = arith.addf %141, %2 : vector<32x32xf32>
    %cst_62 = arith.constant dense<0xFF800000> : vector<32xf32>
    %143 = vector.multi_reduction <maximumf>, %142, %cst_62 [1] : vector<32x32xf32> to vector<32xf32>
    %144 = vector.shape_cast %143 : vector<32xf32> to vector<32x1xf32>
    %145 = vector.broadcast %144 : vector<32x1xf32> to vector<32x32xf32>
    %146 = arith.subf %142, %145 : vector<32x32xf32>
    %147 = math.exp %146 : vector<32x32xf32>
    %cst_63 = arith.constant dense<0.000000e+00> : vector<32xf32>
    %148 = vector.multi_reduction <add>, %147, %cst_63 [1] : vector<32x32xf32> to vector<32xf32>
    %149 = vector.shape_cast %148 : vector<32xf32> to vector<32x1xf32>
    %150 = vector.broadcast %149 : vector<32x1xf32> to vector<32x32xf32>
    %151 = arith.divf %147, %150 : vector<32x32xf32>
    %152 = vector.extract_strided_slice %75 {offsets = [0, 24], sizes = [32, 8], strides = [1, 1]} : vector<32x32xf32> to vector<32x8xf32>
    %cst_64 = arith.constant dense<0.000000e+00> : vector<32x8xf32>
    %153 = tpu.matmul %151, %152, %cst_64 {dimension_numbers = #tpu.dot_dimension_numbers<[1], [0], [0], [1], [0, 0, 1, 1], [], []>} : vector<32x32xf32>, vector<32x8xf32>, vector<32x8xf32> -> vector<32x8xf32>
    %154 = vector.extract_strided_slice %77 {offsets = [24, 0], sizes = [8, 32], strides = [1, 1]} : vector<32x32xf32> to vector<8x32xf32>
    %cst_65 = arith.constant dense<0.000000e+00> : vector<32x32xf32>
    %155 = tpu.matmul %153, %154, %cst_65 {dimension_numbers = #tpu.dot_dimension_numbers<[1], [0], [0], [1], [0, 0, 1, 1], [], []>} : vector<32x8xf32>, vector<8x32xf32>, vector<32x32xf32> -> vector<32x32xf32>
    %156 = arith.addf %136, %155 : vector<32x32xf32>
    %157 = arith.addf %35, %156 : vector<32x32xf32>
    %c136 = arith.constant 136 : index
    %c0_66 = arith.constant 0 : index
    %158 = vector.load %arg5[%c136, %c0_66] : memref<680x256xf32, #tpu.memory_space<vmem>>, vector<1x32xf32>
    %159 = vector.broadcast %158 : vector<1x32xf32> to vector<32x32xf32>
    %160 = arith.addf %157, %159 : vector<32x32xf32>
    %c144 = arith.constant 144 : index
    %c0_67 = arith.constant 0 : index
    %161 = vector.load %arg5[%c144, %c0_67] : memref<680x256xf32, #tpu.memory_space<vmem>>, vector<1x32xf32>
    %c152 = arith.constant 152 : index
    %c0_68 = arith.constant 0 : index
    %162 = vector.load %arg5[%c152, %c0_68] : memref<680x256xf32, #tpu.memory_space<vmem>>, vector<1x32xf32>
    %cst_69 = arith.constant dense<0.000000e+00> : vector<32xf32>
    %163 = vector.multi_reduction <add>, %160, %cst_69 [1] : vector<32x32xf32> to vector<32xf32>
    %164 = vector.shape_cast %163 : vector<32xf32> to vector<32x1xf32>
    %cst_70 = arith.constant 3.200000e+01 : f32
    %165 = vector.broadcast %cst_70 : f32 to vector<32x1xf32>
    %166 = arith.divf %164, %165 : vector<32x1xf32>
    %167 = vector.broadcast %166 : vector<32x1xf32> to vector<32x32xf32>
    %168 = arith.subf %160, %167 : vector<32x32xf32>
    %169 = arith.mulf %168, %168 : vector<32x32xf32>
    %cst_71 = arith.constant dense<0.000000e+00> : vector<32xf32>
    %170 = vector.multi_reduction <add>, %169, %cst_71 [1] : vector<32x32xf32> to vector<32xf32>
    %171 = vector.shape_cast %170 : vector<32xf32> to vector<32x1xf32>
    %cst_72 = arith.constant 3.200000e+01 : f32
    %172 = vector.broadcast %cst_72 : f32 to vector<32x1xf32>
    %173 = arith.divf %171, %172 : vector<32x1xf32>
    %174 = vector.broadcast %166 : vector<32x1xf32> to vector<32x32xf32>
    %175 = arith.subf %160, %174 : vector<32x32xf32>
    %cst_73 = arith.constant 9.99999974E-6 : f32
    %176 = vector.broadcast %cst_73 : f32 to vector<32x1xf32>
    %177 = arith.addf %173, %176 : vector<32x1xf32>
    %178 = math.rsqrt %177 : vector<32x1xf32>
    %179 = vector.broadcast %178 : vector<32x1xf32> to vector<32x32xf32>
    %180 = arith.mulf %175, %179 : vector<32x32xf32>
    %181 = vector.broadcast %161 : vector<1x32xf32> to vector<32x32xf32>
    %182 = arith.mulf %180, %181 : vector<32x32xf32>
    %183 = vector.broadcast %162 : vector<1x32xf32> to vector<32x32xf32>
    %184 = arith.addf %182, %183 : vector<32x32xf32>
    %c160 = arith.constant 160 : index
    %c0_74 = arith.constant 0 : index
    %185 = vector.load %arg5[%c160, %c0_74] : memref<680x256xf32, #tpu.memory_space<vmem>>, vector<32x128xf32>
    %cst_75 = arith.constant dense<0.000000e+00> : vector<32x128xf32>
    %186 = tpu.matmul %184, %185, %cst_75 {dimension_numbers = #tpu.dot_dimension_numbers<[1], [0], [0], [1], [0, 0, 1, 1], [], []>} : vector<32x32xf32>, vector<32x128xf32>, vector<32x128xf32> -> vector<32x128xf32>
    %c192 = arith.constant 192 : index
    %c0_76 = arith.constant 0 : index
    %187 = vector.load %arg5[%c192, %c0_76] : memref<680x256xf32, #tpu.memory_space<vmem>>, vector<1x128xf32>
    %188 = vector.broadcast %187 : vector<1x128xf32> to vector<32x128xf32>
    %189 = arith.addf %186, %188 : vector<32x128xf32>
    %190 = arith.mulf %189, %189 : vector<32x128xf32>
    %191 = arith.mulf %189, %190 : vector<32x128xf32>
    %cst_77 = arith.constant 4.471500e-02 : f32
    %192 = vector.broadcast %cst_77 : f32 to vector<32x128xf32>
    %193 = arith.mulf %192, %191 : vector<32x128xf32>
    %194 = arith.addf %189, %193 : vector<32x128xf32>
    %cst_78 = arith.constant 0.797884583 : f32
    %195 = vector.broadcast %cst_78 : f32 to vector<32x128xf32>
    %196 = arith.mulf %195, %194 : vector<32x128xf32>
    %197 = math.tanh %196 : vector<32x128xf32>
    %cst_79 = arith.constant 1.000000e+00 : f32
    %198 = vector.broadcast %cst_79 : f32 to vector<32x128xf32>
    %199 = arith.addf %198, %197 : vector<32x128xf32>
    %cst_80 = arith.constant 5.000000e-01 : f32
    %200 = vector.broadcast %cst_80 : f32 to vector<32x128xf32>
    %201 = arith.mulf %200, %199 : vector<32x128xf32>
    %202 = arith.mulf %189, %201 : vector<32x128xf32>
    %c200 = arith.constant 200 : index
    %c0_81 = arith.constant 0 : index
    %203 = vector.load %arg5[%c200, %c0_81] : memref<680x256xf32, #tpu.memory_space<vmem>>, vector<128x32xf32>
    %cst_82 = arith.constant dense<0.000000e+00> : vector<32x32xf32>
    %204 = tpu.matmul %202, %203, %cst_82 {dimension_numbers = #tpu.dot_dimension_numbers<[1], [0], [0], [1], [0, 0, 1, 1], [], []>} : vector<32x128xf32>, vector<128x32xf32>, vector<32x32xf32> -> vector<32x32xf32>
    %205 = arith.addf %160, %204 : vector<32x32xf32>
    %c328 = arith.constant 328 : index
    %c0_83 = arith.constant 0 : index
    %206 = vector.load %arg5[%c328, %c0_83] : memref<680x256xf32, #tpu.memory_space<vmem>>, vector<1x32xf32>
    %207 = vector.broadcast %206 : vector<1x32xf32> to vector<32x32xf32>
    %208 = arith.addf %205, %207 : vector<32x32xf32>
    %c336 = arith.constant 336 : index
    %c0_84 = arith.constant 0 : index
    %209 = vector.load %arg5[%c336, %c0_84] : memref<680x256xf32, #tpu.memory_space<vmem>>, vector<1x32xf32>
    %c344 = arith.constant 344 : index
    %c0_85 = arith.constant 0 : index
    %210 = vector.load %arg5[%c344, %c0_85] : memref<680x256xf32, #tpu.memory_space<vmem>>, vector<1x32xf32>
    %cst_86 = arith.constant dense<0.000000e+00> : vector<32xf32>
    %211 = vector.multi_reduction <add>, %208, %cst_86 [1] : vector<32x32xf32> to vector<32xf32>
    %212 = vector.shape_cast %211 : vector<32xf32> to vector<32x1xf32>
    %cst_87 = arith.constant 3.200000e+01 : f32
    %213 = vector.broadcast %cst_87 : f32 to vector<32x1xf32>
    %214 = arith.divf %212, %213 : vector<32x1xf32>
    %215 = vector.broadcast %214 : vector<32x1xf32> to vector<32x32xf32>
    %216 = arith.subf %208, %215 : vector<32x32xf32>
    %217 = arith.mulf %216, %216 : vector<32x32xf32>
    %cst_88 = arith.constant dense<0.000000e+00> : vector<32xf32>
    %218 = vector.multi_reduction <add>, %217, %cst_88 [1] : vector<32x32xf32> to vector<32xf32>
    %219 = vector.shape_cast %218 : vector<32xf32> to vector<32x1xf32>
    %cst_89 = arith.constant 3.200000e+01 : f32
    %220 = vector.broadcast %cst_89 : f32 to vector<32x1xf32>
    %221 = arith.divf %219, %220 : vector<32x1xf32>
    %222 = vector.broadcast %214 : vector<32x1xf32> to vector<32x32xf32>
    %223 = arith.subf %208, %222 : vector<32x32xf32>
    %cst_90 = arith.constant 9.99999974E-6 : f32
    %224 = vector.broadcast %cst_90 : f32 to vector<32x1xf32>
    %225 = arith.addf %221, %224 : vector<32x1xf32>
    %226 = math.rsqrt %225 : vector<32x1xf32>
    %227 = vector.broadcast %226 : vector<32x1xf32> to vector<32x32xf32>
    %228 = arith.mulf %223, %227 : vector<32x32xf32>
    %229 = vector.broadcast %209 : vector<1x32xf32> to vector<32x32xf32>
    %230 = arith.mulf %228, %229 : vector<32x32xf32>
    %231 = vector.broadcast %210 : vector<1x32xf32> to vector<32x32xf32>
    %232 = arith.addf %230, %231 : vector<32x32xf32>
    %c352 = arith.constant 352 : index
    %c0_91 = arith.constant 0 : index
    %233 = vector.load %arg5[%c352, %c0_91] : memref<680x256xf32, #tpu.memory_space<vmem>>, vector<32x160xf32>
    %cst_92 = arith.constant dense<0.000000e+00> : vector<32x160xf32>
    %234 = tpu.matmul %232, %233, %cst_92 {dimension_numbers = #tpu.dot_dimension_numbers<[1], [0], [0], [1], [0, 0, 1, 1], [], []>} : vector<32x32xf32>, vector<32x160xf32>, vector<32x160xf32> -> vector<32x160xf32>
    %c384 = arith.constant 384 : index
    %c0_93 = arith.constant 0 : index
    %235 = vector.load %arg5[%c384, %c0_93] : memref<680x256xf32, #tpu.memory_space<vmem>>, vector<1x160xf32>
    %236 = vector.broadcast %235 : vector<1x160xf32> to vector<32x160xf32>
    %237 = arith.addf %234, %236 : vector<32x160xf32>
    %238 = vector.extract_strided_slice %237 {offsets = [0, 0], sizes = [32, 32], strides = [1, 1]} : vector<32x160xf32> to vector<32x32xf32>
    %239 = arith.mulf %238, %0 : vector<32x32xf32>
    %240 = vector.extract_strided_slice %237 {offsets = [0, 32], sizes = [32, 32], strides = [1, 1]} : vector<32x160xf32> to vector<32x32xf32>
    %241 = arith.mulf %240, %1 : vector<32x32xf32>
    %242 = arith.addf %239, %241 : vector<32x32xf32>
    %243 = vector.extract_strided_slice %237 {offsets = [0, 64], sizes = [32, 32], strides = [1, 1]} : vector<32x160xf32> to vector<32x32xf32>
    %244 = arith.mulf %243, %0 : vector<32x32xf32>
    %245 = vector.extract_strided_slice %237 {offsets = [0, 96], sizes = [32, 32], strides = [1, 1]} : vector<32x160xf32> to vector<32x32xf32>
    %246 = arith.mulf %245, %1 : vector<32x32xf32>
    %247 = arith.addf %244, %246 : vector<32x32xf32>
    %248 = vector.extract_strided_slice %237 {offsets = [0, 128], sizes = [32, 32], strides = [1, 1]} : vector<32x160xf32> to vector<32x32xf32>
    %249 = tpu.transpose %247, [1, 0] : vector<32x32xf32> -> vector<32x32xf32>
    %c392 = arith.constant 392 : index
    %c0_94 = arith.constant 0 : index
    %250 = vector.load %arg5[%c392, %c0_94] : memref<680x256xf32, #tpu.memory_space<vmem>>, vector<32x32xf32>
    %251 = vector.extract_strided_slice %242 {offsets = [0, 0], sizes = [32, 8], strides = [1, 1]} : vector<32x32xf32> to vector<32x8xf32>
    %252 = vector.extract_strided_slice %249 {offsets = [0, 0], sizes = [8, 32], strides = [1, 1]} : vector<32x32xf32> to vector<8x32xf32>
    %cst_95 = arith.constant dense<0.000000e+00> : vector<32x32xf32>
    %253 = tpu.matmul %251, %252, %cst_95 {dimension_numbers = #tpu.dot_dimension_numbers<[1], [0], [0], [1], [0, 0, 1, 1], [], []>} : vector<32x8xf32>, vector<8x32xf32>, vector<32x32xf32> -> vector<32x32xf32>
    %cst_96 = arith.constant 0.353553385 : f32
    %254 = vector.broadcast %cst_96 : f32 to vector<32x32xf32>
    %255 = arith.mulf %253, %254 : vector<32x32xf32>
    %256 = arith.addf %255, %2 : vector<32x32xf32>
    %cst_97 = arith.constant dense<0xFF800000> : vector<32xf32>
    %257 = vector.multi_reduction <maximumf>, %256, %cst_97 [1] : vector<32x32xf32> to vector<32xf32>
    %258 = vector.shape_cast %257 : vector<32xf32> to vector<32x1xf32>
    %259 = vector.broadcast %258 : vector<32x1xf32> to vector<32x32xf32>
    %260 = arith.subf %256, %259 : vector<32x32xf32>
    %261 = math.exp %260 : vector<32x32xf32>
    %cst_98 = arith.constant dense<0.000000e+00> : vector<32xf32>
    %262 = vector.multi_reduction <add>, %261, %cst_98 [1] : vector<32x32xf32> to vector<32xf32>
    %263 = vector.shape_cast %262 : vector<32xf32> to vector<32x1xf32>
    %264 = vector.broadcast %263 : vector<32x1xf32> to vector<32x32xf32>
    %265 = arith.divf %261, %264 : vector<32x32xf32>
    %266 = vector.extract_strided_slice %248 {offsets = [0, 0], sizes = [32, 8], strides = [1, 1]} : vector<32x32xf32> to vector<32x8xf32>
    %cst_99 = arith.constant dense<0.000000e+00> : vector<32x8xf32>
    %267 = tpu.matmul %265, %266, %cst_99 {dimension_numbers = #tpu.dot_dimension_numbers<[1], [0], [0], [1], [0, 0, 1, 1], [], []>} : vector<32x32xf32>, vector<32x8xf32>, vector<32x8xf32> -> vector<32x8xf32>
    %268 = vector.extract_strided_slice %250 {offsets = [0, 0], sizes = [8, 32], strides = [1, 1]} : vector<32x32xf32> to vector<8x32xf32>
    %cst_100 = arith.constant dense<0.000000e+00> : vector<32x32xf32>
    %269 = tpu.matmul %267, %268, %cst_100 {dimension_numbers = #tpu.dot_dimension_numbers<[1], [0], [0], [1], [0, 0, 1, 1], [], []>} : vector<32x8xf32>, vector<8x32xf32>, vector<32x32xf32> -> vector<32x32xf32>
    %270 = vector.extract_strided_slice %242 {offsets = [0, 8], sizes = [32, 8], strides = [1, 1]} : vector<32x32xf32> to vector<32x8xf32>
    %271 = vector.extract_strided_slice %249 {offsets = [8, 0], sizes = [8, 32], strides = [1, 1]} : vector<32x32xf32> to vector<8x32xf32>
    %cst_101 = arith.constant dense<0.000000e+00> : vector<32x32xf32>
    %272 = tpu.matmul %270, %271, %cst_101 {dimension_numbers = #tpu.dot_dimension_numbers<[1], [0], [0], [1], [0, 0, 1, 1], [], []>} : vector<32x8xf32>, vector<8x32xf32>, vector<32x32xf32> -> vector<32x32xf32>
    %cst_102 = arith.constant 0.353553385 : f32
    %273 = vector.broadcast %cst_102 : f32 to vector<32x32xf32>
    %274 = arith.mulf %272, %273 : vector<32x32xf32>
    %275 = arith.addf %274, %2 : vector<32x32xf32>
    %cst_103 = arith.constant dense<0xFF800000> : vector<32xf32>
    %276 = vector.multi_reduction <maximumf>, %275, %cst_103 [1] : vector<32x32xf32> to vector<32xf32>
    %277 = vector.shape_cast %276 : vector<32xf32> to vector<32x1xf32>
    %278 = vector.broadcast %277 : vector<32x1xf32> to vector<32x32xf32>
    %279 = arith.subf %275, %278 : vector<32x32xf32>
    %280 = math.exp %279 : vector<32x32xf32>
    %cst_104 = arith.constant dense<0.000000e+00> : vector<32xf32>
    %281 = vector.multi_reduction <add>, %280, %cst_104 [1] : vector<32x32xf32> to vector<32xf32>
    %282 = vector.shape_cast %281 : vector<32xf32> to vector<32x1xf32>
    %283 = vector.broadcast %282 : vector<32x1xf32> to vector<32x32xf32>
    %284 = arith.divf %280, %283 : vector<32x32xf32>
    %285 = vector.extract_strided_slice %248 {offsets = [0, 8], sizes = [32, 8], strides = [1, 1]} : vector<32x32xf32> to vector<32x8xf32>
    %cst_105 = arith.constant dense<0.000000e+00> : vector<32x8xf32>
    %286 = tpu.matmul %284, %285, %cst_105 {dimension_numbers = #tpu.dot_dimension_numbers<[1], [0], [0], [1], [0, 0, 1, 1], [], []>} : vector<32x32xf32>, vector<32x8xf32>, vector<32x8xf32> -> vector<32x8xf32>
    %287 = vector.extract_strided_slice %250 {offsets = [8, 0], sizes = [8, 32], strides = [1, 1]} : vector<32x32xf32> to vector<8x32xf32>
    %cst_106 = arith.constant dense<0.000000e+00> : vector<32x32xf32>
    %288 = tpu.matmul %286, %287, %cst_106 {dimension_numbers = #tpu.dot_dimension_numbers<[1], [0], [0], [1], [0, 0, 1, 1], [], []>} : vector<32x8xf32>, vector<8x32xf32>, vector<32x32xf32> -> vector<32x32xf32>
    %289 = arith.addf %269, %288 : vector<32x32xf32>
    %290 = vector.extract_strided_slice %242 {offsets = [0, 16], sizes = [32, 8], strides = [1, 1]} : vector<32x32xf32> to vector<32x8xf32>
    %291 = vector.extract_strided_slice %249 {offsets = [16, 0], sizes = [8, 32], strides = [1, 1]} : vector<32x32xf32> to vector<8x32xf32>
    %cst_107 = arith.constant dense<0.000000e+00> : vector<32x32xf32>
    %292 = tpu.matmul %290, %291, %cst_107 {dimension_numbers = #tpu.dot_dimension_numbers<[1], [0], [0], [1], [0, 0, 1, 1], [], []>} : vector<32x8xf32>, vector<8x32xf32>, vector<32x32xf32> -> vector<32x32xf32>
    %cst_108 = arith.constant 0.353553385 : f32
    %293 = vector.broadcast %cst_108 : f32 to vector<32x32xf32>
    %294 = arith.mulf %292, %293 : vector<32x32xf32>
    %295 = arith.addf %294, %2 : vector<32x32xf32>
    %cst_109 = arith.constant dense<0xFF800000> : vector<32xf32>
    %296 = vector.multi_reduction <maximumf>, %295, %cst_109 [1] : vector<32x32xf32> to vector<32xf32>
    %297 = vector.shape_cast %296 : vector<32xf32> to vector<32x1xf32>
    %298 = vector.broadcast %297 : vector<32x1xf32> to vector<32x32xf32>
    %299 = arith.subf %295, %298 : vector<32x32xf32>
    %300 = math.exp %299 : vector<32x32xf32>
    %cst_110 = arith.constant dense<0.000000e+00> : vector<32xf32>
    %301 = vector.multi_reduction <add>, %300, %cst_110 [1] : vector<32x32xf32> to vector<32xf32>
    %302 = vector.shape_cast %301 : vector<32xf32> to vector<32x1xf32>
    %303 = vector.broadcast %302 : vector<32x1xf32> to vector<32x32xf32>
    %304 = arith.divf %300, %303 : vector<32x32xf32>
    %305 = vector.extract_strided_slice %248 {offsets = [0, 16], sizes = [32, 8], strides = [1, 1]} : vector<32x32xf32> to vector<32x8xf32>
    %cst_111 = arith.constant dense<0.000000e+00> : vector<32x8xf32>
    %306 = tpu.matmul %304, %305, %cst_111 {dimension_numbers = #tpu.dot_dimension_numbers<[1], [0], [0], [1], [0, 0, 1, 1], [], []>} : vector<32x32xf32>, vector<32x8xf32>, vector<32x8xf32> -> vector<32x8xf32>
    %307 = vector.extract_strided_slice %250 {offsets = [16, 0], sizes = [8, 32], strides = [1, 1]} : vector<32x32xf32> to vector<8x32xf32>
    %cst_112 = arith.constant dense<0.000000e+00> : vector<32x32xf32>
    %308 = tpu.matmul %306, %307, %cst_112 {dimension_numbers = #tpu.dot_dimension_numbers<[1], [0], [0], [1], [0, 0, 1, 1], [], []>} : vector<32x8xf32>, vector<8x32xf32>, vector<32x32xf32> -> vector<32x32xf32>
    %309 = arith.addf %289, %308 : vector<32x32xf32>
    %310 = vector.extract_strided_slice %242 {offsets = [0, 24], sizes = [32, 8], strides = [1, 1]} : vector<32x32xf32> to vector<32x8xf32>
    %311 = vector.extract_strided_slice %249 {offsets = [24, 0], sizes = [8, 32], strides = [1, 1]} : vector<32x32xf32> to vector<8x32xf32>
    %cst_113 = arith.constant dense<0.000000e+00> : vector<32x32xf32>
    %312 = tpu.matmul %310, %311, %cst_113 {dimension_numbers = #tpu.dot_dimension_numbers<[1], [0], [0], [1], [0, 0, 1, 1], [], []>} : vector<32x8xf32>, vector<8x32xf32>, vector<32x32xf32> -> vector<32x32xf32>
    %cst_114 = arith.constant 0.353553385 : f32
    %313 = vector.broadcast %cst_114 : f32 to vector<32x32xf32>
    %314 = arith.mulf %312, %313 : vector<32x32xf32>
    %315 = arith.addf %314, %2 : vector<32x32xf32>
    %cst_115 = arith.constant dense<0xFF800000> : vector<32xf32>
    %316 = vector.multi_reduction <maximumf>, %315, %cst_115 [1] : vector<32x32xf32> to vector<32xf32>
    %317 = vector.shape_cast %316 : vector<32xf32> to vector<32x1xf32>
    %318 = vector.broadcast %317 : vector<32x1xf32> to vector<32x32xf32>
    %319 = arith.subf %315, %318 : vector<32x32xf32>
    %320 = math.exp %319 : vector<32x32xf32>
    %cst_116 = arith.constant dense<0.000000e+00> : vector<32xf32>
    %321 = vector.multi_reduction <add>, %320, %cst_116 [1] : vector<32x32xf32> to vector<32xf32>
    %322 = vector.shape_cast %321 : vector<32xf32> to vector<32x1xf32>
    %323 = vector.broadcast %322 : vector<32x1xf32> to vector<32x32xf32>
    %324 = arith.divf %320, %323 : vector<32x32xf32>
    %325 = vector.extract_strided_slice %248 {offsets = [0, 24], sizes = [32, 8], strides = [1, 1]} : vector<32x32xf32> to vector<32x8xf32>
    %cst_117 = arith.constant dense<0.000000e+00> : vector<32x8xf32>
    %326 = tpu.matmul %324, %325, %cst_117 {dimension_numbers = #tpu.dot_dimension_numbers<[1], [0], [0], [1], [0, 0, 1, 1], [], []>} : vector<32x32xf32>, vector<32x8xf32>, vector<32x8xf32> -> vector<32x8xf32>
    %327 = vector.extract_strided_slice %250 {offsets = [24, 0], sizes = [8, 32], strides = [1, 1]} : vector<32x32xf32> to vector<8x32xf32>
    %cst_118 = arith.constant dense<0.000000e+00> : vector<32x32xf32>
    %328 = tpu.matmul %326, %327, %cst_118 {dimension_numbers = #tpu.dot_dimension_numbers<[1], [0], [0], [1], [0, 0, 1, 1], [], []>} : vector<32x8xf32>, vector<8x32xf32>, vector<32x32xf32> -> vector<32x32xf32>
    %329 = arith.addf %309, %328 : vector<32x32xf32>
    %330 = arith.addf %208, %329 : vector<32x32xf32>
    %c424 = arith.constant 424 : index
    %c0_119 = arith.constant 0 : index
    %331 = vector.load %arg5[%c424, %c0_119] : memref<680x256xf32, #tpu.memory_space<vmem>>, vector<1x32xf32>
    %332 = vector.broadcast %331 : vector<1x32xf32> to vector<32x32xf32>
    %333 = arith.addf %330, %332 : vector<32x32xf32>
    %c432 = arith.constant 432 : index
    %c0_120 = arith.constant 0 : index
    %334 = vector.load %arg5[%c432, %c0_120] : memref<680x256xf32, #tpu.memory_space<vmem>>, vector<1x32xf32>
    %c440 = arith.constant 440 : index
    %c0_121 = arith.constant 0 : index
    %335 = vector.load %arg5[%c440, %c0_121] : memref<680x256xf32, #tpu.memory_space<vmem>>, vector<1x32xf32>
    %cst_122 = arith.constant dense<0.000000e+00> : vector<32xf32>
    %336 = vector.multi_reduction <add>, %333, %cst_122 [1] : vector<32x32xf32> to vector<32xf32>
    %337 = vector.shape_cast %336 : vector<32xf32> to vector<32x1xf32>
    %cst_123 = arith.constant 3.200000e+01 : f32
    %338 = vector.broadcast %cst_123 : f32 to vector<32x1xf32>
    %339 = arith.divf %337, %338 : vector<32x1xf32>
    %340 = vector.broadcast %339 : vector<32x1xf32> to vector<32x32xf32>
    %341 = arith.subf %333, %340 : vector<32x32xf32>
    %342 = arith.mulf %341, %341 : vector<32x32xf32>
    %cst_124 = arith.constant dense<0.000000e+00> : vector<32xf32>
    %343 = vector.multi_reduction <add>, %342, %cst_124 [1] : vector<32x32xf32> to vector<32xf32>
    %344 = vector.shape_cast %343 : vector<32xf32> to vector<32x1xf32>
    %cst_125 = arith.constant 3.200000e+01 : f32
    %345 = vector.broadcast %cst_125 : f32 to vector<32x1xf32>
    %346 = arith.divf %344, %345 : vector<32x1xf32>
    %347 = vector.broadcast %339 : vector<32x1xf32> to vector<32x32xf32>
    %348 = arith.subf %333, %347 : vector<32x32xf32>
    %cst_126 = arith.constant 9.99999974E-6 : f32
    %349 = vector.broadcast %cst_126 : f32 to vector<32x1xf32>
    %350 = arith.addf %346, %349 : vector<32x1xf32>
    %351 = math.rsqrt %350 : vector<32x1xf32>
    %352 = vector.broadcast %351 : vector<32x1xf32> to vector<32x32xf32>
    %353 = arith.mulf %348, %352 : vector<32x32xf32>
    %354 = vector.broadcast %334 : vector<1x32xf32> to vector<32x32xf32>
    %355 = arith.mulf %353, %354 : vector<32x32xf32>
    %356 = vector.broadcast %335 : vector<1x32xf32> to vector<32x32xf32>
    %357 = arith.addf %355, %356 : vector<32x32xf32>
    %c448 = arith.constant 448 : index
    %c0_127 = arith.constant 0 : index
    %358 = vector.load %arg5[%c448, %c0_127] : memref<680x256xf32, #tpu.memory_space<vmem>>, vector<32x128xf32>
    %cst_128 = arith.constant dense<0.000000e+00> : vector<32x128xf32>
    %359 = tpu.matmul %357, %358, %cst_128 {dimension_numbers = #tpu.dot_dimension_numbers<[1], [0], [0], [1], [0, 0, 1, 1], [], []>} : vector<32x32xf32>, vector<32x128xf32>, vector<32x128xf32> -> vector<32x128xf32>
    %c480 = arith.constant 480 : index
    %c0_129 = arith.constant 0 : index
    %360 = vector.load %arg5[%c480, %c0_129] : memref<680x256xf32, #tpu.memory_space<vmem>>, vector<1x128xf32>
    %361 = vector.broadcast %360 : vector<1x128xf32> to vector<32x128xf32>
    %362 = arith.addf %359, %361 : vector<32x128xf32>
    %363 = arith.mulf %362, %362 : vector<32x128xf32>
    %364 = arith.mulf %362, %363 : vector<32x128xf32>
    %cst_130 = arith.constant 4.471500e-02 : f32
    %365 = vector.broadcast %cst_130 : f32 to vector<32x128xf32>
    %366 = arith.mulf %365, %364 : vector<32x128xf32>
    %367 = arith.addf %362, %366 : vector<32x128xf32>
    %cst_131 = arith.constant 0.797884583 : f32
    %368 = vector.broadcast %cst_131 : f32 to vector<32x128xf32>
    %369 = arith.mulf %368, %367 : vector<32x128xf32>
    %370 = math.tanh %369 : vector<32x128xf32>
    %cst_132 = arith.constant 1.000000e+00 : f32
    %371 = vector.broadcast %cst_132 : f32 to vector<32x128xf32>
    %372 = arith.addf %371, %370 : vector<32x128xf32>
    %cst_133 = arith.constant 5.000000e-01 : f32
    %373 = vector.broadcast %cst_133 : f32 to vector<32x128xf32>
    %374 = arith.mulf %373, %372 : vector<32x128xf32>
    %375 = arith.mulf %362, %374 : vector<32x128xf32>
    %c488 = arith.constant 488 : index
    %c0_134 = arith.constant 0 : index
    %376 = vector.load %arg5[%c488, %c0_134] : memref<680x256xf32, #tpu.memory_space<vmem>>, vector<128x32xf32>
    %cst_135 = arith.constant dense<0.000000e+00> : vector<32x32xf32>
    %377 = tpu.matmul %375, %376, %cst_135 {dimension_numbers = #tpu.dot_dimension_numbers<[1], [0], [0], [1], [0, 0, 1, 1], [], []>} : vector<32x128xf32>, vector<128x32xf32>, vector<32x32xf32> -> vector<32x32xf32>
    %378 = arith.addf %333, %377 : vector<32x32xf32>
    %c616 = arith.constant 616 : index
    %c0_136 = arith.constant 0 : index
    %379 = vector.load %arg5[%c616, %c0_136] : memref<680x256xf32, #tpu.memory_space<vmem>>, vector<1x32xf32>
    %380 = vector.broadcast %379 : vector<1x32xf32> to vector<32x32xf32>
    %381 = arith.addf %378, %380 : vector<32x32xf32>
    %c624 = arith.constant 624 : index
    %c0_137 = arith.constant 0 : index
    %382 = vector.load %arg5[%c624, %c0_137] : memref<680x256xf32, #tpu.memory_space<vmem>>, vector<1x32xf32>
    %c632 = arith.constant 632 : index
    %c0_138 = arith.constant 0 : index
    %383 = vector.load %arg5[%c632, %c0_138] : memref<680x256xf32, #tpu.memory_space<vmem>>, vector<1x32xf32>
    %cst_139 = arith.constant dense<0.000000e+00> : vector<32xf32>
    %384 = vector.multi_reduction <add>, %381, %cst_139 [1] : vector<32x32xf32> to vector<32xf32>
    %385 = vector.shape_cast %384 : vector<32xf32> to vector<32x1xf32>
    %cst_140 = arith.constant 3.200000e+01 : f32
    %386 = vector.broadcast %cst_140 : f32 to vector<32x1xf32>
    %387 = arith.divf %385, %386 : vector<32x1xf32>
    %388 = vector.broadcast %387 : vector<32x1xf32> to vector<32x32xf32>
    %389 = arith.subf %381, %388 : vector<32x32xf32>
    %390 = arith.mulf %389, %389 : vector<32x32xf32>
    %cst_141 = arith.constant dense<0.000000e+00> : vector<32xf32>
    %391 = vector.multi_reduction <add>, %390, %cst_141 [1] : vector<32x32xf32> to vector<32xf32>
    %392 = vector.shape_cast %391 : vector<32xf32> to vector<32x1xf32>
    %cst_142 = arith.constant 3.200000e+01 : f32
    %393 = vector.broadcast %cst_142 : f32 to vector<32x1xf32>
    %394 = arith.divf %392, %393 : vector<32x1xf32>
    %395 = vector.broadcast %387 : vector<32x1xf32> to vector<32x32xf32>
    %396 = arith.subf %381, %395 : vector<32x32xf32>
    %cst_143 = arith.constant 9.99999974E-6 : f32
    %397 = vector.broadcast %cst_143 : f32 to vector<32x1xf32>
    %398 = arith.addf %394, %397 : vector<32x1xf32>
    %399 = math.rsqrt %398 : vector<32x1xf32>
    %400 = vector.broadcast %399 : vector<32x1xf32> to vector<32x32xf32>
    %401 = arith.mulf %396, %400 : vector<32x32xf32>
    %402 = vector.broadcast %382 : vector<1x32xf32> to vector<32x32xf32>
    %403 = arith.mulf %401, %402 : vector<32x32xf32>
    %404 = vector.broadcast %383 : vector<1x32xf32> to vector<32x32xf32>
    %405 = arith.addf %403, %404 : vector<32x32xf32>
    %c640 = arith.constant 640 : index
    %c0_144 = arith.constant 0 : index
    %406 = vector.load %arg5[%c640, %c0_144] : memref<680x256xf32, #tpu.memory_space<vmem>>, vector<32x128xf32>
    %cst_145 = arith.constant dense<0.000000e+00> : vector<32x128xf32>
    %407 = tpu.matmul %405, %406, %cst_145 {dimension_numbers = #tpu.dot_dimension_numbers<[1], [0], [0], [1], [0, 0, 1, 1], [], []>} : vector<32x32xf32>, vector<32x128xf32>, vector<32x128xf32> -> vector<32x128xf32>
    %c672 = arith.constant 672 : index
    %c0_146 = arith.constant 0 : index
    %408 = vector.load %arg5[%c672, %c0_146] : memref<680x256xf32, #tpu.memory_space<vmem>>, vector<1x128xf32>
    %409 = vector.broadcast %408 : vector<1x128xf32> to vector<32x128xf32>
    %410 = arith.addf %407, %409 : vector<32x128xf32>
    %c0_147 = arith.constant 0 : index
    %c0_148 = arith.constant 0 : index
    %c0_149 = arith.constant 0 : index
    %411 = vector.load %arg6[%c0_147, %c0_148, %c0_149] : memref<1x32x128xf32, #tpu.memory_space<vmem>>, vector<1x32x128xf32>
    %412 = vector.shape_cast %411 : vector<1x32x128xf32> to vector<32x128xf32>
    %413 = vector.shape_cast %410 : vector<32x128xf32> to vector<1x32x128xf32>
    tpu.vector_store %arg6[%c0_147, %c0_148, %c0_149], %413 {strides = array<i32>} : memref<1x32x128xf32, #tpu.memory_space<vmem>>, vector<1x32x128xf32>,
    return
  }
  func.func @transform_0(%arg0: i32) -> (i32, i32, i32) {
    %c0_i32 = arith.constant 0 : i32
    %c0_i32_0 = arith.constant 0 : i32
    %c0_i32_1 = arith.constant 0 : i32
    return %arg0, %c0_i32, %c0_i32_0 : i32, i32, i32
  }
  func.func @transform_1(%arg0: i32) -> (i32, i32, i32) {
    %c0_i32 = arith.constant 0 : i32
    %c0_i32_0 = arith.constant 0 : i32
    %c0_i32_1 = arith.constant 0 : i32
    return %arg0, %c0_i32, %c0_i32_0 : i32, i32, i32
  }
  func.func @transform_2(%arg0: i32) -> (i32, i32) {
    %c0_i32 = arith.constant 0 : i32
    %c0_i32_0 = arith.constant 0 : i32
    %c0_i32_1 = arith.constant 0 : i32
    return %c0_i32, %c0_i32_0 : i32, i32
  }
  func.func @transform_3(%arg0: i32) -> (i32, i32) {
    %c0_i32 = arith.constant 0 : i32
    %c0_i32_0 = arith.constant 0 : i32
    %c0_i32_1 = arith.constant 0 : i32
    return %c0_i32, %c0_i32_0 : i32, i32
  }
  func.func @transform_4(%arg0: i32) -> (i32, i32) {
    %c0_i32 = arith.constant 0 : i32
    %c0_i32_0 = arith.constant 0 : i32
    %c0_i32_1 = arith.constant 0 : i32
    return %c0_i32, %c0_i32_0 : i32, i32
  }
  func.func @transform_5(%arg0: i32) -> (i32, i32, i32) {
    %c0_i32 = arith.constant 0 : i32
    %c0_i32_0 = arith.constant 0 : i32
    %c0_i32_1 = arith.constant 0 : i32
    return %arg0, %c0_i32, %c0_i32_0 : i32, i32, i32
  }
}

</mosaic_0001>

<llo_original>
// kernel: _lambda_.1
$region0: #{_lambda_.1}
  #allocation0 [shape = 'u32[]', space=smem, size = 0x4, offset = 0x4, fixed_abs, tag = 'smem constant byte address 0x4 - core index']
  #allocation1 [shape = 'u32[72,128]{1,0:T(1,128)}', space=vmem, size = 0x9000, scoped, tag = 'internal scratch']
  #allocation2 [shape = 'f32[32,32]{1,0:T(8,128)}', space=vmem, size = 0x4000, scoped, tag = 'scratch operand']
  %s0 = inlined_call_operand.vmem [shape: f32[2,2,16], index: 0, kind: input, shape index: {}]
  %s1 = inlined_call_operand.vmem [shape: f32[2,16,12], index: 1, kind: input, shape index: {}]
  %s2 = inlined_call_operand.vmem [shape: f32[64,32], index: 2, kind: input, shape index: {}]
  %s3 = inlined_call_operand.vmem [shape: f32[32,32], index: 3, kind: input, shape index: {}]
  %s4 = inlined_call_operand.vmem [shape: f32[680,256], index: 4, kind: input, shape index: {}]
  %s5 = inlined_call_operand.vmem [shape: f32[2,32,128], index: 5, kind: output, shape index: {}]
  %s6 = sld [smem:[#allocation0]]
  $region53: #{_lambda_.1} parent=0
    _
  %s8 = ssub.s32 1, %s6
  %s9 = scalar_select 0, %s8, %s6
  loop: start=0, step=1, limit=4
  $region2: #{_lambda_.1} parent=0 // loop_pre_header
    _
  $region3: #{_lambda_.1} parent=0 // loop_header
    %s11 = sphi 0, %s15
    %p12 = scmp.ge.s32.totalorder %s11, 4
    %s21 = sphi 0, %s23
    %s24 = sphi 0, %s21
    %s25 = sphi 0, %s24
    %s41 = sphi 0, %s25
    %s47 = sphi 0, %s49
    %s50 = sphi 0, %s47
    %s51 = sphi 0, %s50
    %s67 = sphi 0, %s51
    %s71 = sphi 0, %s71
    %s73 = sphi 0, %s71
    %s74 = sphi 0, %s73
    %s88 = sphi 0, %s74
    %s92 = sphi 0, %s92
    %s94 = sphi 0, %s92
    %s95 = sphi 0, %s94
    %s109 = sphi 0, %s95
    %s113 = sphi 0, %s113
    %s115 = sphi 0, %s113
    %s116 = sphi 0, %s115
    %s130 = sphi 0, %s116
    %s136 = sphi 0, %s138
    %s139 = sphi 0, %s136
    %s140 = sphi 0, %s139
    %s156 = sphi 0, %s140
  $region4: #{_lambda_.1} parent=0 // loop_header_branch
    %14 = sbr.rel (%p12) target = $region8
  $region5: #{_lambda_.1} parent=0 // loop_body
    %s16 = ssub.s32 %s11, 1
    %s17 = ssub.s32 %s11, 2
    %s18 = sadd.s32 %s11, 1
    %s19 = ssub.s32 %s11, %s18
    %p20 = scmp.eq.s32.totalorder %s19, 0
    %s22 = sadd.s32 %s21, 1
    %s23 = scalar_select %p20, %s21, %s22
    %p26 = pneg %p20
    %p27 = scmp.eq.s32.totalorder %s11, 1
    %p28 = por %p26, %p27
    %p29 = scmp.ne.s32.totalorder %s21, %s24
    %p30 = scmp.eq.s32.totalorder %s11, 0
    %p31 = por %p29, %p30
    %p32 = scmp.ne.s32.totalorder %s21, %s24
    %p33 = scmp.eq.s32.totalorder %s16, 1
    %p34 = por %p32, %p33
    %p35 = scmp.ne.s32.totalorder %s24, %s25
    %p36 = scmp.eq.s32.totalorder %s16, 0
    %p37 = por %p35, %p36
    %p38 = scmp.ne.s32.totalorder %s24, %s25
    %p39 = scmp.eq.s32.totalorder %s17, 1
    %p40 = por %p38, %p39
    %p42 = scmp.ne.s32.totalorder %s25, %s41
    %p43 = scmp.eq.s32.totalorder %s17, 0
    %p44 = por %p42, %p43
    %s45 = ssub.s32 %s11, %s18
    %p46 = scmp.eq.s32.totalorder %s45, 0
    %s48 = sadd.s32 %s47, 1
    %s49 = scalar_select %p46, %s47, %s48
    %p52 = pneg %p46
    %p53 = scmp.eq.s32.totalorder %s11, 1
    %p54 = por %p52, %p53
    %p55 = scmp.ne.s32.totalorder %s47, %s50
    %p56 = scmp.eq.s32.totalorder %s11, 0
    %p57 = por %p55, %p56
    %p58 = scmp.ne.s32.totalorder %s47, %s50
    %p59 = scmp.eq.s32.totalorder %s16, 1
    %p60 = por %p58, %p59
    %p61 = scmp.ne.s32.totalorder %s50, %s51
    %p62 = scmp.eq.s32.totalorder %s16, 0
    %p63 = por %p61, %p62
    %p64 = scmp.ne.s32.totalorder %s50, %s51
    %p65 = scmp.eq.s32.totalorder %s17, 1
    %p66 = por %p64, %p65
    %p68 = scmp.ne.s32.totalorder %s51, %s67
    %p69 = scmp.eq.s32.totalorder %s17, 0
    %p70 = por %p68, %p69
    %s72 = sadd.s32 %s71, 1
    %p75 = scmp.eq.s32.totalorder %s11, 1
    %p76 = scmp.ne.s32.totalorder %s71, %s73
    %p77 = scmp.eq.s32.totalorder %s11, 0
    %p78 = por %p76, %p77
    %p79 = scmp.ne.s32.totalorder %s71, %s73
    %p80 = scmp.eq.s32.totalorder %s16, 1
    %p81 = por %p79, %p80
    %p82 = scmp.ne.s32.totalorder %s73, %s74
    %p83 = scmp.eq.s32.totalorder %s16, 0
    %p84 = por %p82, %p83
    %p85 = scmp.ne.s32.totalorder %s73, %s74
    %p86 = scmp.eq.s32.totalorder %s17, 1
    %p87 = por %p85, %p86
    %p89 = scmp.ne.s32.totalorder %s74, %s88
    %p90 = scmp.eq.s32.totalorder %s17, 0
    %p91 = por %p89, %p90
    %s93 = sadd.s32 %s92, 1
    %p96 = scmp.eq.s32.totalorder %s11, 1
    %p97 = scmp.ne.s32.totalorder %s92, %s94
    %p98 = scmp.eq.s32.totalorder %s11, 0
    %p99 = por %p97, %p98
    %p100 = scmp.ne.s32.totalorder %s92, %s94
    %p101 = scmp.eq.s32.totalorder %s16, 1
    %p102 = por %p100, %p101
    %p103 = scmp.ne.s32.totalorder %s94, %s95
    %p104 = scmp.eq.s32.totalorder %s16, 0
    %p105 = por %p103, %p104
    %p106 = scmp.ne.s32.totalorder %s94, %s95
    %p107 = scmp.eq.s32.totalorder %s17, 1
    %p108 = por %p106, %p107
    %p110 = scmp.ne.s32.totalorder %s95, %s109
    %p111 = scmp.eq.s32.totalorder %s17, 0
    %p112 = por %p110, %p111
    %s114 = sadd.s32 %s113, 1
    %p117 = scmp.eq.s32.totalorder %s11, 1
    %p118 = scmp.ne.s32.totalorder %s113, %s115
    %p119 = scmp.eq.s32.totalorder %s11, 0
    %p120 = por %p118, %p119
    %p121 = scmp.ne.s32.totalorder %s113, %s115
    %p122 = scmp.eq.s32.totalorder %s16, 1
    %p123 = por %p121, %p122
    %p124 = scmp.ne.s32.totalorder %s115, %s116
    %p125 = scmp.eq.s32.totalorder %s16, 0
    %p126 = por %p124, %p125
    %p127 = scmp.ne.s32.totalorder %s115, %s116
    %p128 = scmp.eq.s32.totalorder %s17, 1
    %p129 = por %p127, %p128
    %p131 = scmp.ne.s32.totalorder %s116, %s130
    %p132 = scmp.eq.s32.totalorder %s17, 0
    %p133 = por %p131, %p132
    %s134 = ssub.s32 %s11, %s18
    %p135 = scmp.eq.s32.totalorder %s134, 0
    %s137 = sadd.s32 %s136, 1
    %s138 = scalar_select %p135, %s136, %s137
    %p141 = pneg %p135
    %p142 = scmp.eq.s32.totalorder %s11, 1
    %p143 = por %p141, %p142
    %p144 = scmp.ne.s32.totalorder %s136, %s139
    %p145 = scmp.eq.s32.totalorder %s11, 0
    %p146 = por %p144, %p145
    %p147 = scmp.ne.s32.totalorder %s136, %s139
    %p148 = scmp.eq.s32.totalorder %s16, 1
    %p149 = por %p147, %p148
    %p150 = scmp.ne.s32.totalorder %s139, %s140
    %p151 = scmp.eq.s32.totalorder %s16, 0
    %p152 = por %p150, %p151
    %p153 = scmp.ne.s32.totalorder %s139, %s140
    %p154 = scmp.eq.s32.totalorder %s17, 1
    %p155 = por %p153, %p154
    %p157 = scmp.ne.s32.totalorder %s140, %s156
    %p158 = scmp.eq.s32.totalorder %s17, 0
    %p159 = por %p157, %p158
    %p160 = scmp.le.s32.totalorder 1, %s11
    %p161 = scmp.lt.s32.totalorder %s11, 3
    %p162 = pnand %p160, %p161
    %p163 = pneg %p162
    // Predicated region
    $region9: #{_lambda_.1} parent=5 // pred_check
      _
    $region10: #{_lambda_.1} parent=5 // pred_check_branch
      %165 = sbr.rel (%p162) target = $region12
    $region11: #{_lambda_.1} parent=5 // pred_region
      %s166 = ssub.s32 %s11, 1
      // Predicated region
      $region13: #{_lambda_.1} parent=11 // pred_check
        %p167 = pneg %p84
      $region14: #{_lambda_.1} parent=11 // pred_check_branch
        %169 = sbr.rel (%p167) target = $region16
      $region15: #{_lambda_.1} parent=11 // pred_region
        _
      $region16: #{_lambda_.1} parent=11 // pred_fallthru
        _
      // Predicated region
      $region17: #{_lambda_.1} parent=11 // pred_check
        %p170 = pneg %p105
      $region18: #{_lambda_.1} parent=11 // pred_check_branch
        %172 = sbr.rel (%p170) target = $region20
      $region19: #{_lambda_.1} parent=11 // pred_region
        _
      $region20: #{_lambda_.1} parent=11 // pred_fallthru
        _
      // Predicated region
      $region21: #{_lambda_.1} parent=11 // pred_check
        %p173 = pneg %p126
      $region22: #{_lambda_.1} parent=11 // pred_check_branch
        %175 = sbr.rel (%p173) target = $region24
      $region23: #{_lambda_.1} parent=11 // pred_region
        _
      $region24: #{_lambda_.1} parent=11 // pred_fallthru
        _
    $region12: #{_lambda_.1} parent=5 // pred_fallthru
      _
    %p176 = scmp.lt.s32.totalorder %s11, 2
    // Predicated region
    $region25: #{_lambda_.1} parent=5 // pred_check
      %p177 = pneg %p176
    $region26: #{_lambda_.1} parent=5 // pred_check_branch
      %179 = sbr.rel (%p177) target = $region28
    $region27: #{_lambda_.1} parent=5 // pred_region
      // Predicated region
      $region29: #{_lambda_.1} parent=27 // pred_check
        %p180 = pneg %p31
      $region30: #{_lambda_.1} parent=27 // pred_check_branch
        %182 = sbr.rel (%p180) target = $region32
      $region31: #{_lambda_.1} parent=27 // pred_region
        %p183 = scmp.lt.s32.totalorder %s11, 1
        %s184 = scalar_select %p183, %s11, 1
        %s185 = smul.addr %s184, 2
        %s186 = scalar_lea.vmem %s0, %s185
      $region32: #{_lambda_.1} parent=27 // pred_fallthru
        _
      // Predicated region
      $region33: #{_lambda_.1} parent=27 // pred_check
        %p187 = pneg %p57
      $region34: #{_lambda_.1} parent=27 // pred_check_branch
        %189 = sbr.rel (%p187) target = $region36
      $region35: #{_lambda_.1} parent=27 // pred_region
        %p190 = scmp.lt.s32.totalorder %s11, 1
        %s191 = scalar_select %p190, %s11, 1
        %s192 = smul.addr %s191, 2
        %s193 = smul.addr %s192, 8
        %s194 = scalar_lea.vmem %s1, %s193
      $region36: #{_lambda_.1} parent=27 // pred_fallthru
        _
    $region28: #{_lambda_.1} parent=5 // pred_fallthru
      _
    %p195 = scmp.le.s32.totalorder 1, %s11
    %p196 = scmp.lt.s32.totalorder %s11, 3
    %p197 = pnand %p195, %p196
    %p198 = pneg %p197
    // Predicated region
    $region37: #{_lambda_.1} parent=5 // pred_check
      _
    $region38: #{_lambda_.1} parent=5 // pred_check_branch
      %200 = sbr.rel (%p197) target = $region40
    $region39: #{_lambda_.1} parent=5 // pred_region
      %s201 = ssub.s32 %s11, 1
      %p202 = scmp.lt.s32.totalorder %s16, 1
      %s203 = scalar_select %p202, %s16, 1
      %s204 = smul.addr %s203, 2
      %s205 = scalar_lea.vmem %s0, %s204
      %p206 = pneg %p37
      %p207 = pneg %p34
      %p208 = scmp.lt.s32.totalorder %s16, 1
      %s209 = scalar_select %p208, %s16, 1
      %s210 = smul.addr %s209, 2
      %s211 = smul.addr %s210, 8
      %s212 = scalar_lea.vmem %s1, %s211
      %p213 = pneg %p63
      %p214 = pneg %p60
      %p215 = pneg %p84
      %p216 = pneg %p81
      %p217 = pneg %p105
      %p218 = pneg %p102
      %p219 = pneg %p126
      %p220 = pneg %p123
      %p221 = pneg %p152
      %p222 = pneg %p149
      %p223 = scmp.lt.s32.totalorder %s16, 1
      %s224 = scalar_select %p223, %s16, 1
      %s225 = smul.addr %s224, 4
      %s226 = smul.addr %s225, 8
      %s227 = scalar_lea.vmem %s5, %s226
      %p228 = scmp.lt.s32.totalorder %s16, 1
      %s229 = scalar_select %p228, %s16, 1
      %s230 = smul.addr %s229, 2
      %s231 = scalar_lea.vmem %s0, %s230
      %p232 = scmp.lt.s32.totalorder %s16, 1
      %s233 = scalar_select %p232, %s16, 1
      %s234 = smul.addr %s233, 2
      %s235 = smul.addr %s234, 8
      %s236 = scalar_lea.vmem %s1, %s235
      %p237 = scmp.lt.s32.totalorder %s16, 1
      %s238 = scalar_select %p237, %s16, 1
      %s239 = smul.addr %s238, 4
      %s240 = smul.addr %s239, 8
      %s241 = scalar_lea.vmem %s5, %s240
      %v242 = vld [vmem:[%s2] sm:$0xff]
      %v243 = vld [vmem:[%s2 + $0x8] sm:$0xff]
      %v244 = vld [vmem:[%s2 + $0x10] sm:$0xff]
      %v245 = vld [vmem:[%s2 + $0x18] sm:$0xff]
      %v246 = vld [vmem:[%s2 + $0x20] sm:$0xff]
      %v247 = vld [vmem:[%s2 + $0x28] sm:$0xff]
      %v248 = vld [vmem:[%s2 + $0x30] sm:$0xff]
      %v249 = vld [vmem:[%s2 + $0x38] sm:$0xff]
      %v250 = vld [vmem:[%s3] sm:$0xff]
      %v251 = vld [vmem:[%s3 + $0x8] sm:$0xff]
      %v252 = vld [vmem:[%s3 + $0x10] sm:$0xff]
      %v253 = vld [vmem:[%s3 + $0x18] sm:$0xff]
      %v254 = vld [vmem:[%s231] sm:$0x3]
      %v255 = vld [vmem:[%s4] sm:$0xff]
      %v256 = vld [vmem:[%s4 + $0x10] sm:$0xff]
      %v257 = vld [vmem:[%s4 + $0x20] ss:$0 sm:$0xff]
      %vm258 = vcmask 130048
      %v260 = vsel %vm258, %v254, 0
      %262 = vmatpush.msra.mxu0 0.0
      %263 = vmatpush.msra.mxu0 0.0
      %264 = vmatpush.msra.mxu0 0.0
      %265 = vmatpush.msra.mxu0 0.0
      %266 = vmatpush.msra.mxu0 0.0
      %267 = vmatpush.msra.mxu0 0.0
      %268 = vmatpush.msra.mxu0 0.0
      %269 = vmatpush.msra.mxu0 0.0
      %270 = vmatpush.msra.mxu0 0.0
      %271 = vmatpush.msra.mxu0 0.0
      %272 = vmatpush.msra.mxu0 0.0
      %273 = vmatpush.msra.mxu0 0.0
      %274 = vmatpush.msra.mxu0 0.0
      %275 = vmatpush.msra.mxu0 0.0
      %276 = vmatpush.msra.mxu0 %v256
      %277 = vmatpush.msra.mxu0 %v255
      %278 = vmatmul.f32.gmra.mxu0 %v260
      %v279 = vpop.f32.mrf.mxu0
      %v280 = vadd.f32 %v257, %v279
      %281 = vdwg.mxu0
      %v282 = vld [vmem:[%s236] sm:$0xff]
      %v283 = vld [vmem:[%s236 + $0x8] sm:$0xff]
      %v284 = vld [vmem:[%s4 + $0x30] sm:$0xff]
      %v285 = vld [vmem:[%s4 + $0x40] sm:$0xf]
      %v286 = vld [vmem:[%s4 + $0x50] ss:$0 sm:$0xff]
      %vm287 = vcmask 97280
      %v289 = vsel %vm287, %v282, 0
      %v292 = vsel %vm287, %v283, 0
      %vm294 = vcmask 1043456
      %v296 = vsel %vm294, %v285, 0
      %298 = vmatpush.msra.mxu0 0.0
      %299 = vmatpush.msra.mxu0 0.0
      %300 = vmatpush.msra.mxu0 0.0
      %301 = vmatpush.msra.mxu0 0.0
      %302 = vmatpush.msra.mxu0 0.0
      %303 = vmatpush.msra.mxu0 0.0
      %304 = vmatpush.msra.mxu0 0.0
      %305 = vmatpush.msra.mxu0 0.0
      %306 = vmatpush.msra.mxu0 0.0
      %307 = vmatpush.msra.mxu0 0.0
      %308 = vmatpush.msra.mxu0 0.0
      %309 = vmatpush.msra.mxu0 0.0
      %310 = vmatpush.msra.mxu0 0.0
      %311 = vmatpush.msra.mxu0 0.0
      %312 = vmatpush.msra.mxu0 %v296
      %313 = vmatpush.msra.mxu0 %v284
      %314 = vmatmul.f32.gmra.mxu0 %v289
      %v315 = vpop.f32.mrf.mxu0
      %v316 = vadd.f32 %v286, %v315
      %317 = vmatmul.f32.gmra.mxu0 %v292
      %v318 = vpop.f32.mrf.mxu0
      %v319 = vadd.f32 %v286, %v318
      %320 = vdwg.mxu0
      %vm321 = vcmask 261120
      %322 = vst.msk [vmem:[#allocation2] sm:$0xff] %vm321, 0.0
      %323 = vst.msk [vmem:[#allocation2 + $0x8] sm:$0xff] %vm321, 0.0
      %324 = vst.msk [vmem:[#allocation2 + $0x10] sm:$0xff] %vm321, 0.0
      %325 = vst.msk [vmem:[#allocation2 + $0x18] sm:$0xff] %vm321, 0.0
      %vm326 = vcmask 253952
      %327 = vst.msk [vmem:[#allocation2] sm:$0x1] %vm326, %v280
      %329 = vrot.lane.b32.xlu0 %v280, 96
      %v330 = vpop.permute.xlu0 %329
      %332 = vst.msk [vmem:[#allocation2 + $0x1] sm:$0x1] %vm326, %v330
      %333 = vrot.lane.b32.xlu0 %v280, 64
      %v334 = vpop.permute.xlu0 %333
      %336 = vst.msk [vmem:[#allocation2 + $0x2] sm:$0x1] %vm326, %v334
      %337 = vst.msk [vmem:[#allocation2 + $0x3] sm:$0xff] %vm321, %v316
      %vm338 = vcmask 254977
      %339 = vst.msk [vmem:[#allocation2 + $0xf] sm:$0x2] %vm338, %v280
      %340 = vst.msk [vmem:[#allocation2 + $0x10] sm:$0x2] %vm338, %v330
      %341 = vst.msk [vmem:[#allocation2 + $0x11] sm:$0x2] %vm338, %v334
      %342 = vst.msk [vmem:[#allocation2 + $0x13] sm:$0xff] %vm321, %v319
      %v343 = vld [vmem:[#allocation2] sm:$0xff]
      %v344 = vld [vmem:[#allocation2 + $0x8] sm:$0xff]
      %v345 = vld [vmem:[#allocation2 + $0x10] sm:$0xff]
      %v346 = vld [vmem:[#allocation2 + $0x18] sm:$0xff]
      %v347 = vld [vmem:[%s4 + $0x60] ss:$0 sm:$0xff]
      %v348 = vld [vmem:[%s4 + $0x70] ss:$0 sm:$0xff]
      %v349 = vsel %vm321, %v343, 0.0
      %350 = vadd.xlane.f32.xlu0 %v349
      %v351 = vpop.xlane.xlu0 %350
      %v352 = vsel %vm321, %v344, 0.0
      %353 = vadd.xlane.f32.xlu0 %v352
      %v354 = vpop.xlane.xlu0 %353
      %v355 = vsel %vm321, %v345, 0.0
      %356 = vadd.xlane.f32.xlu0 %v355
      %v357 = vpop.xlane.xlu0 %356
      %v358 = vsel %vm321, %v346, 0.0
      %359 = vadd.xlane.f32.xlu0 %v358
      %v360 = vpop.xlane.xlu0 %359
      %v361 = vrcp.pop 32.0
      %v362 = vmul.f32 32.0, %v361
      %v363 = vsub.f32 1.0, %v362
      %v364 = vmul.f32 %v361, %v363
      %v365 = vadd.f32 %v361, %v364
      %vm366 = vweird.f32 %v361
      %v367 = vsel %vm366, %v361, %v365
      %v368 = vmul.f32 %v351, %v367
      %v369 = vmul.f32 %v354, %v367
      %v370 = vmul.f32 %v357, %v367
      %v371 = vmul.f32 %v360, %v367
      %v372 = vsub.f32 %v343, %v368
      %v373 = vsub.f32 %v344, %v369
      %v374 = vsub.f32 %v345, %v370
      %v375 = vsub.f32 %v346, %v371
      %v376 = vmul.f32 %v372, %v372
      %v377 = vmul.f32 %v373, %v373
      %v378 = vmul.f32 %v374, %v374
      %v379 = vmul.f32 %v375, %v375
      %v380 = vsel %vm321, %v376, 0.0
      %381 = vadd.xlane.f32.xlu0 %v380
      %v382 = vpop.xlane.xlu0 %381
      %v383 = vsel %vm321, %v377, 0.0
      %384 = vadd.xlane.f32.xlu0 %v383
      %v385 = vpop.xlane.xlu0 %384
      %v386 = vsel %vm321, %v378, 0.0
      %387 = vadd.xlane.f32.xlu0 %v386
      %v388 = vpop.xlane.xlu0 %387
      %v389 = vsel %vm321, %v379, 0.0
      %390 = vadd.xlane.f32.xlu0 %v389
      %v391 = vpop.xlane.xlu0 %390
      %v392 = vmul.f32 %v382, %v367
      %v393 = vmul.f32 %v385, %v367
      %v394 = vmul.f32 %v388, %v367
      %v395 = vmul.f32 %v391, %v367
      %v396 = vadd.f32 %v392, 1e-05
      %v397 = vadd.f32 %v393, 1e-05
      %v398 = vadd.f32 %v394, 1e-05
      %v399 = vadd.f32 %v395, 1e-05
      %v400 = vrsqrt.pop %v396
      %v401 = vmul.f32 %v400, %v396
      %v402 = vmul.f32 %v401, %v400
      %v403 = vmul.f32 0.5, %v402
      %v404 = vsub.f32 1.5, %v403
      %v405 = vmul.f32 %v400, %v404
      %vm406 = vweird.f32 %v396
      %vm407 = vweird.f32 %v400
      %vm408 = vmor %vm406, %vm407
      %v409 = vsel %vm408, %v400, %v405
      %v410 = vrsqrt.pop %v397
      %v411 = vmul.f32 %v410, %v397
      %v412 = vmul.f32 %v411, %v410
      %v413 = vmul.f32 0.5, %v412
      %v414 = vsub.f32 1.5, %v413
      %v415 = vmul.f32 %v410, %v414
      %vm416 = vweird.f32 %v397
      %vm417 = vweird.f32 %v410
      %vm418 = vmor %vm416, %vm417
      %v419 = vsel %vm418, %v410, %v415
      %v420 = vrsqrt.pop %v398
      %v421 = vmul.f32 %v420, %v398
      %v422 = vmul.f32 %v421, %v420
      %v423 = vmul.f32 0.5, %v422
      %v424 = vsub.f32 1.5, %v423
      %v425 = vmul.f32 %v420, %v424
      %vm426 = vweird.f32 %v398
      %vm427 = vweird.f32 %v420
      %vm428 = vmor %vm426, %vm427
      %v429 = vsel %vm428, %v420, %v425
      %v430 = vrsqrt.pop %v399
      %v431 = vmul.f32 %v430, %v399
      %v432 = vmul.f32 %v431, %v430
      %v433 = vmul.f32 0.5, %v432
      %v434 = vsub.f32 1.5, %v433
      %v435 = vmul.f32 %v430, %v434
      %vm436 = vweird.f32 %v399
      %vm437 = vweird.f32 %v430
      %vm438 = vmor %vm436, %vm437
      %v439 = vsel %vm438, %v430, %v435
      %v440 = vmul.f32 %v372, %v409
      %v441 = vmul.f32 %v373, %v419
      %v442 = vmul.f32 %v374, %v429
      %v443 = vmul.f32 %v375, %v439
      %v444 = vmul.f32 %v440, %v347
      %v445 = vmul.f32 %v441, %v347
      %v446 = vmul.f32 %v442, %v347
      %v447 = vmul.f32 %v443, %v347
      %v448 = vadd.f32 %v444, %v348
      %v449 = vadd.f32 %v445, %v348
      %v450 = vadd.f32 %v446, %v348
      %v451 = vadd.f32 %v447, %v348
      %v452 = vld [vmem:[%s4 + $0x80] sm:$0xff]
      %v453 = vld [vmem:[%s4 + $0x88] sm:$0xff]
      %v454 = vld [vmem:[%s4 + $0x90] sm:$0xff]
      %v455 = vld [vmem:[%s4 + $0x98] sm:$0xff]
      %v456 = vld [vmem:[%s4 + $0xa0] sm:$0xff]
      %v457 = vld [vmem:[%s4 + $0xa8] sm:$0xff]
      %v458 = vld [vmem:[%s4 + $0xb0] sm:$0xff]
      %v459 = vld [vmem:[%s4 + $0xb8] sm:$0xff]
      %s460 = scalar_lea.vmem %s4, 192
      %v461 = vld [vmem:[%s460] ss:$8 sm:$0x3]
      %v463 = vperm.slane %v461, 0
      %v464 = vperm.slane %v461, 1
      %v468 = vsel %vm321, %v448, 0
      %v471 = vsel %vm321, %v449, 0
      %v474 = vsel %vm321, %v450, 0
      %v477 = vsel %vm321, %v451, 0
      %479 = vmatpush.msra.mxu0 0.0
      %480 = vmatpush.msra.mxu0 0.0
      %481 = vmatpush.msra.mxu0 0.0
      %482 = vmatpush.msra.mxu0 0.0
      %483 = vmatpush.msra.mxu0 0.0
      %484 = vmatpush.msra.mxu0 0.0
      %485 = vmatpush.msra.mxu0 0.0
      %486 = vmatpush.msra.mxu0 0.0
      %487 = vmatpush.msra.mxu0 0.0
      %488 = vmatpush.msra.mxu0 0.0
      %489 = vmatpush.msra.mxu0 0.0
      %490 = vmatpush.msra.mxu0 0.0
      %491 = vmatpush.msra.mxu0 %v458
      %492 = vmatpush.msra.mxu0 %v456
      %493 = vmatpush.msra.mxu0 %v454
      %494 = vmatpush.msra.mxu0 %v452
      %495 = vmatmul.f32.gmra.mxu0 %v468
      %v496 = vpop.f32.mrf.mxu0
      %v497 = vadd.f32 %v463, %v496
      %498 = vmatmul.f32.gmra.mxu0 %v471
      %v499 = vpop.f32.mrf.mxu0
      %v500 = vadd.f32 %v463, %v499
      %501 = vmatmul.f32.gmra.mxu0 %v474
      %v502 = vpop.f32.mrf.mxu0
      %v503 = vadd.f32 %v463, %v502
      %504 = vmatmul.f32.gmra.mxu0 %v477
      %v505 = vpop.f32.mrf.mxu0
      %v506 = vadd.f32 %v463, %v505
      %507 = vdwg.mxu0
      %508 = vmatpush.msra.mxu0 0.0
      %509 = vmatpush.msra.mxu0 0.0
      %510 = vmatpush.msra.mxu0 0.0
      %511 = vmatpush.msra.mxu0 0.0
      %512 = vmatpush.msra.mxu0 0.0
      %513 = vmatpush.msra.mxu0 0.0
      %514 = vmatpush.msra.mxu0 0.0
      %515 = vmatpush.msra.mxu0 0.0
      %516 = vmatpush.msra.mxu0 0.0
      %517 = vmatpush.msra.mxu0 0.0
      %518 = vmatpush.msra.mxu0 0.0
      %519 = vmatpush.msra.mxu0 0.0
      %520 = vmatpush.msra.mxu0 %v459
      %521 = vmatpush.msra.mxu0 %v457
      %522 = vmatpush.msra.mxu0 %v455
      %523 = vmatpush.msra.mxu0 %v453
      %524 = vmatmul.f32.gmra.mxu0 %v468
      %v525 = vpop.f32.mrf.mxu0
      %v526 = vadd.f32 %v464, %v525
      %527 = vmatmul.f32.gmra.mxu0 %v471
      %v528 = vpop.f32.mrf.mxu0
      %v529 = vadd.f32 %v464, %v528
      %530 = vmatmul.f32.gmra.mxu0 %v474
      %v531 = vpop.f32.mrf.mxu0
      %v532 = vadd.f32 %v464, %v531
      %533 = vmatmul.f32.gmra.mxu0 %v477
      %v534 = vpop.f32.mrf.mxu0
      %v535 = vadd.f32 %v464, %v534
      %536 = vdwg.mxu0
      %v537 = vmul.f32 %v497, %v242
      %v538 = vmul.f32 %v500, %v243
      %v539 = vmul.f32 %v503, %v244
      %v540 = vmul.f32 %v506, %v245
      %545 = vrot.lane.b32.xlu0 %v246, 32
      %v546 = vpop.permute.xlu0 %545
      %547 = vrot.lane.b32.xlu0 %v247, 32
      %v548 = vpop.permute.xlu0 %547
      %549 = vrot.lane.b32.xlu0 %v248, 32
      %v550 = vpop.permute.xlu0 %549
      %551 = vrot.lane.b32.xlu0 %v249, 32
      %v552 = vpop.permute.xlu0 %551
      %v557 = vmul.f32 %v497, %v546
      %v558 = vmul.f32 %v500, %v548
      %v559 = vmul.f32 %v503, %v550
      %v560 = vmul.f32 %v506, %v552
      %565 = vrot.lane.b32.xlu0 %v557, 96
      %v566 = vpop.permute.xlu0 %565
      %567 = vrot.lane.b32.xlu0 %v558, 96
      %v568 = vpop.permute.xlu0 %567
      %569 = vrot.lane.b32.xlu0 %v559, 96
      %v570 = vpop.permute.xlu0 %569
      %571 = vrot.lane.b32.xlu0 %v560, 96
      %v572 = vpop.permute.xlu0 %571
      %v577 = vadd.f32 %v537, %v566
      %v578 = vadd.f32 %v538, %v568
      %v579 = vadd.f32 %v539, %v570
      %v580 = vadd.f32 %v540, %v572
      %585 = vrot.lane.b32.xlu0 %v242, 64
      %v586 = vpop.permute.xlu0 %585
      %587 = vrot.lane.b32.xlu0 %v243, 64
      %v588 = vpop.permute.xlu0 %587
      %589 = vrot.lane.b32.xlu0 %v244, 64
      %v590 = vpop.permute.xlu0 %589
      %591 = vrot.lane.b32.xlu0 %v245, 64
      %v592 = vpop.permute.xlu0 %591
      %v597 = vmul.f32 %v497, %v586
      %v598 = vmul.f32 %v500, %v588
      %v599 = vmul.f32 %v503, %v590
      %v600 = vmul.f32 %v506, %v592
      %601 = vrot.lane.b32.xlu0 %v246, 96
      %v602 = vpop.permute.xlu0 %601
      %603 = vrot.lane.b32.xlu0 %v247, 96
      %v604 = vpop.permute.xlu0 %603
      %605 = vrot.lane.b32.xlu0 %v248, 96
      %v606 = vpop.permute.xlu0 %605
      %607 = vrot.lane.b32.xlu0 %v249, 96
      %v608 = vpop.permute.xlu0 %607
      %v613 = vmul.f32 %v497, %v602
      %v614 = vmul.f32 %v500, %v604
      %v615 = vmul.f32 %v503, %v606
      %v616 = vmul.f32 %v506, %v608
      %621 = vrot.lane.b32.xlu0 %v613, 96
      %v622 = vpop.permute.xlu0 %621
      %623 = vrot.lane.b32.xlu0 %v614, 96
      %v624 = vpop.permute.xlu0 %623
      %625 = vrot.lane.b32.xlu0 %v615, 96
      %v626 = vpop.permute.xlu0 %625
      %627 = vrot.lane.b32.xlu0 %v616, 96
      %v628 = vpop.permute.xlu0 %627
      %v633 = vadd.f32 %v597, %v622
      %v634 = vadd.f32 %v598, %v624
      %v635 = vadd.f32 %v599, %v626
      %v636 = vadd.f32 %v600, %v628
      %v637 = vld [vmem:[%s4 + $0xd0] sm:$0xff]
      %v638 = vld [vmem:[%s4 + $0xe0] sm:$0xff]
      %v639 = vld [vmem:[%s4 + $0xf0] sm:$0xff]
      %v640 = vld [vmem:[%s4 + $0x100] sm:$0xff]
      %645 = vrot.lane.b32.xlu0 %v633, 64
      %v646 = vpop.permute.xlu0 %645
      %647 = vrot.lane.b32.xlu0 %v634, 64
      %v648 = vpop.permute.xlu0 %647
      %649 = vrot.lane.b32.xlu0 %v635, 64
      %v650 = vpop.permute.xlu0 %649
      %651 = vrot.lane.b32.xlu0 %v636, 64
      %v652 = vpop.permute.xlu0 %651
      %vm653 = vcmask 64512
      %v655 = vsel %vm653, %v577, 0
      %v658 = vsel %vm653, %v578, 0
      %v661 = vsel %vm653, %v579, 0
      %v664 = vsel %vm653, %v580, 0
      %v666 = vsel %vm653, %v646, 0
      %v668 = vsel %vm653, %v648, 0
      %v670 = vsel %vm653, %v650, 0
      %v672 = vsel %vm653, %v652, 0
      %674 = vmatpush.xpose.msra.mxu0 0.0
      %675 = vmatpush.xpose.msra.mxu0 0.0
      %676 = vmatpush.xpose.msra.mxu0 0.0
      %677 = vmatpush.xpose.msra.mxu0 0.0
      %678 = vmatpush.xpose.msra.mxu0 0.0
      %679 = vmatpush.xpose.msra.mxu0 0.0
      %680 = vmatpush.xpose.msra.mxu0 0.0
      %681 = vmatpush.xpose.msra.mxu0 0.0
      %682 = vmatpush.xpose.msra.mxu0 0.0
      %683 = vmatpush.xpose.msra.mxu0 0.0
      %684 = vmatpush.xpose.msra.mxu0 0.0
      %685 = vmatpush.xpose.msra.mxu0 0.0
      %686 = vmatpush.xpose.msra.mxu0 %v672
      %687 = vmatpush.xpose.msra.mxu0 %v670
      %688 = vmatpush.xpose.msra.mxu0 %v668
      %689 = vmatpush.xpose.msra.mxu0 %v666
      %690 = vmatmul.f32.gmra.mxu0 %v655
      %v691 = vpop.f32.mrf.mxu0
      %v692 = vadd.f32 0.0, %v691
      %693 = vmatmul.f32.gmra.mxu0 %v658
      %v694 = vpop.f32.mrf.mxu0
      %v695 = vadd.f32 0.0, %v694
      %696 = vmatmul.f32.gmra.mxu0 %v661
      %v697 = vpop.f32.mrf.mxu0
      %v698 = vadd.f32 0.0, %v697
      %699 = vmatmul.f32.gmra.mxu0 %v664
      %v700 = vpop.f32.mrf.mxu0
      %v701 = vadd.f32 0.0, %v700
      %702 = vdwg.mxu0
      %v703 = vmul.f32 %v692, 0.35355338
      %v704 = vmul.f32 %v695, 0.35355338
      %v705 = vmul.f32 %v698, 0.35355338
      %v706 = vmul.f32 %v701, 0.35355338
      %v707 = vadd.f32 %v703, %v250
      %v708 = vadd.f32 %v704, %v251
      %v709 = vadd.f32 %v705, %v252
      %v710 = vadd.f32 %v706, %v253
      %v711 = vsel %vm321, %v707, -inf
      %712 = vmax.xlane.f32.xlu0 %v711
      %v713 = vpop.xlane.xlu0 %712
      %v714 = vsel %vm321, %v708, -inf
      %715 = vmax.xlane.f32.xlu0 %v714
      %v716 = vpop.xlane.xlu0 %715
      %v717 = vsel %vm321, %v709, -inf
      %718 = vmax.xlane.f32.xlu0 %v717
      %v719 = vpop.xlane.xlu0 %718
      %v720 = vsel %vm321, %v710, -inf
      %721 = vmax.xlane.f32.xlu0 %v720
      %v722 = vpop.xlane.xlu0 %721
      %v723 = vsub.f32 %v707, %v713
      %v724 = vsub.f32 %v708, %v716
      %v725 = vsub.f32 %v709, %v719
      %v726 = vsub.f32 %v710, %v722
      %v727 = vmul.f32 %v723, 1.442695
      %v728 = vpow.pop %v727
      %v729 = vmul.f32 %v724, 1.442695
      %v730 = vpow.pop %v729
      %v731 = vmul.f32 %v725, 1.442695
      %v732 = vpow.pop %v731
      %v733 = vmul.f32 %v726, 1.442695
      %v734 = vpow.pop %v733
      %v735 = vsel %vm321, %v728, 0.0
      %736 = vadd.xlane.f32.xlu0 %v735
      %v737 = vpop.xlane.xlu0 %736
      %v738 = vsel %vm321, %v730, 0.0
      %739 = vadd.xlane.f32.xlu0 %v738
      %v740 = vpop.xlane.xlu0 %739
      %v741 = vsel %vm321, %v732, 0.0
      %742 = vadd.xlane.f32.xlu0 %v741
      %v743 = vpop.xlane.xlu0 %742
      %v744 = vsel %vm321, %v734, 0.0
      %745 = vadd.xlane.f32.xlu0 %v744
      %v746 = vpop.xlane.xlu0 %745
      %v747 = vrcp.pop %v737
      %v748 = vmul.f32 %v737, %v747
      %v749 = vsub.f32 1.0, %v748
      %v750 = vmul.f32 %v747, %v749
      %v751 = vadd.f32 %v747, %v750
      %vm752 = vweird.f32 %v737
      %vm753 = vweird.f32 %v747
      %vm754 = vmor %vm752, %vm753
      %v755 = vsel %vm754, %v747, %v751
      %v756 = vand.u32 2147483647, %v737
      %vm757 = vcmp.eq.f32.partialorder %v756, 8.507059e+37
      %v758 = vand.u32 %v737, 2147483648
      %v759 = vor.u32 1.1754944e-38, %v758
      %v760 = vsel %vm757, %v759, %v755
      %v761 = vmul.f32 %v728, %v760
      %v762 = vrcp.pop %v740
      %v763 = vmul.f32 %v740, %v762
      %v764 = vsub.f32 1.0, %v763
      %v765 = vmul.f32 %v762, %v764
      %v766 = vadd.f32 %v762, %v765
      %vm767 = vweird.f32 %v740
      %vm768 = vweird.f32 %v762
      %vm769 = vmor %vm767, %vm768
      %v770 = vsel %vm769, %v762, %v766
      %v771 = vand.u32 2147483647, %v740
      %vm772 = vcmp.eq.f32.partialorder %v771, 8.507059e+37
      %v773 = vand.u32 %v740, 2147483648
      %v774 = vor.u32 1.1754944e-38, %v773
      %v775 = vsel %vm772, %v774, %v770
      %v776 = vmul.f32 %v730, %v775
      %v777 = vrcp.pop %v743
      %v778 = vmul.f32 %v743, %v777
      %v779 = vsub.f32 1.0, %v778
      %v780 = vmul.f32 %v777, %v779
      %v781 = vadd.f32 %v777, %v780
      %vm782 = vweird.f32 %v743
      %vm783 = vweird.f32 %v777
      %vm784 = vmor %vm782, %vm783
      %v785 = vsel %vm784, %v777, %v781
      %v786 = vand.u32 2147483647, %v743
      %vm787 = vcmp.eq.f32.partialorder %v786, 8.507059e+37
      %v788 = vand.u32 %v743, 2147483648
      %v789 = vor.u32 1.1754944e-38, %v788
      %v790 = vsel %vm787, %v789, %v785
      %v791 = vmul.f32 %v732, %v790
      %v792 = vrcp.pop %v746
      %v793 = vmul.f32 %v746, %v792
      %v794 = vsub.f32 1.0, %v793
      %v795 = vmul.f32 %v792, %v794
      %v796 = vadd.f32 %v792, %v795
      %vm797 = vweird.f32 %v746
      %vm798 = vweird.f32 %v792
      %vm799 = vmor %vm797, %vm798
      %v800 = vsel %vm799, %v792, %v796
      %v801 = vand.u32 2147483647, %v746
      %vm802 = vcmp.eq.f32.partialorder %v801, 8.507059e+37
      %v803 = vand.u32 %v746, 2147483648
      %v804 = vor.u32 1.1754944e-38, %v803
      %v805 = vsel %vm802, %v804, %v800
      %v806 = vmul.f32 %v734, %v805
      %v808 = vsel %vm321, %v761, 0
      %v811 = vsel %vm321, %v776, 0
      %v814 = vsel %vm321, %v791, 0
      %v817 = vsel %vm321, %v806, 0
      %819 = vmatpush.msra.mxu0 0.0
      %820 = vmatpush.msra.mxu0 0.0
      %821 = vmatpush.msra.mxu0 0.0
      %822 = vmatpush.msra.mxu0 0.0
      %823 = vmatpush.msra.mxu0 0.0
      %824 = vmatpush.msra.mxu0 0.0
      %825 = vmatpush.msra.mxu0 0.0
      %826 = vmatpush.msra.mxu0 0.0
      %827 = vmatpush.msra.mxu0 0.0
      %828 = vmatpush.msra.mxu0 0.0
      %829 = vmatpush.msra.mxu0 0.0
      %830 = vmatpush.msra.mxu0 0.0
      %831 = vmatpush.msra.mxu0 %v535
      %832 = vmatpush.msra.mxu0 %v532
      %833 = vmatpush.msra.mxu0 %v529
      %834 = vmatpush.msra.mxu0 %v526
      %835 = vmatmul.f32.gmra.mxu0 %v808
      %v836 = vpop.f32.mrf.mxu0
      %v837 = vadd.f32 0.0, %v836
      %838 = vmatmul.f32.gmra.mxu0 %v811
      %v839 = vpop.f32.mrf.mxu0
      %v840 = vadd.f32 0.0, %v839
      %841 = vmatmul.f32.gmra.mxu0 %v814
      %v842 = vpop.f32.mrf.mxu0
      %v843 = vadd.f32 0.0, %v842
      %844 = vmatmul.f32.gmra.mxu0 %v817
      %v845 = vpop.f32.mrf.mxu0
      %v846 = vadd.f32 0.0, %v845
      %847 = vdwg.mxu0
      %848 = vrot.lane.b32.xlu0 %v577, 120
      %v849 = vpop.permute.xlu0 %848
      %850 = vrot.lane.b32.xlu0 %v578, 120
      %v851 = vpop.permute.xlu0 %850
      %852 = vrot.lane.b32.xlu0 %v579, 120
      %v853 = vpop.permute.xlu0 %852
      %854 = vrot.lane.b32.xlu0 %v580, 120
      %v855 = vpop.permute.xlu0 %854
      %856 = vrot.lane.b32.xlu0 %v633, 56
      %v857 = vpop.permute.xlu0 %856
      %858 = vrot.lane.b32.xlu0 %v634, 56
      %v859 = vpop.permute.xlu0 %858
      %860 = vrot.lane.b32.xlu0 %v635, 56
      %v861 = vpop.permute.xlu0 %860
      %862 = vrot.lane.b32.xlu0 %v636, 56
      %v863 = vpop.permute.xlu0 %862
      %v864 = vsel %vm653, %v849, 0
      %v866 = vsel %vm653, %v851, 0
      %v868 = vsel %vm653, %v853, 0
      %v870 = vsel %vm653, %v855, 0
      %v872 = vsel %vm653, %v857, 0
      %v874 = vsel %vm653, %v859, 0
      %v876 = vsel %vm653, %v861, 0
      %v878 = vsel %vm653, %v863, 0
      %880 = vmatpush.xpose.msra.mxu0 0.0
      %881 = vmatpush.xpose.msra.mxu0 0.0
      %882 = vmatpush.xpose.msra.mxu0 0.0
      %883 = vmatpush.xpose.msra.mxu0 0.0
      %884 = vmatpush.xpose.msra.mxu0 0.0
      %885 = vmatpush.xpose.msra.mxu0 0.0
      %886 = vmatpush.xpose.msra.mxu0 0.0
      %887 = vmatpush.xpose.msra.mxu0 0.0
      %888 = vmatpush.xpose.msra.mxu0 0.0
      %889 = vmatpush.xpose.msra.mxu0 0.0
      %890 = vmatpush.xpose.msra.mxu0 0.0
      %891 = vmatpush.xpose.msra.mxu0 0.0
      %892 = vmatpush.xpose.msra.mxu0 %v878
      %893 = vmatpush.xpose.msra.mxu0 %v876
      %894 = vmatpush.xpose.msra.mxu0 %v874
      %895 = vmatpush.xpose.msra.mxu0 %v872
      %896 = vmatmul.f32.gmra.mxu0 %v864
      %v897 = vpop.f32.mrf.mxu0
      %v898 = vadd.f32 0.0, %v897
      %899 = vmatmul.f32.gmra.mxu0 %v866
      %v900 = vpop.f32.mrf.mxu0
      %v901 = vadd.f32 0.0, %v900
      %902 = vmatmul.f32.gmra.mxu0 %v868
      %v903 = vpop.f32.mrf.mxu0
      %v904 = vadd.f32 0.0, %v903
      %905 = vmatmul.f32.gmra.mxu0 %v870
      %v906 = vpop.f32.mrf.mxu0
      %v907 = vadd.f32 0.0, %v906
      %908 = vdwg.mxu0
      %v909 = vmul.f32 %v898, 0.35355338
      %v910 = vmul.f32 %v901, 0.35355338
      %v911 = vmul.f32 %v904, 0.35355338
      %v912 = vmul.f32 %v907, 0.35355338
      %v913 = vadd.f32 %v909, %v250
      %v914 = vadd.f32 %v910, %v251
      %v915 = vadd.f32 %v911, %v252
      %v916 = vadd.f32 %v912, %v253
      %v917 = vsel %vm321, %v913, -inf
      %918 = vmax.xlane.f32.xlu0 %v917
      %v919 = vpop.xlane.xlu0 %918
      %v920 = vsel %vm321, %v914, -inf
      %921 = vmax.xlane.f32.xlu0 %v920
      %v922 = vpop.xlane.xlu0 %921
      %v923 = vsel %vm321, %v915, -inf
      %924 = vmax.xlane.f32.xlu0 %v923
      %v925 = vpop.xlane.xlu0 %924
      %v926 = vsel %vm321, %v916, -inf
      %927 = vmax.xlane.f32.xlu0 %v926
      %v928 = vpop.xlane.xlu0 %927
      %v929 = vsub.f32 %v913, %v919
      %v930 = vsub.f32 %v914, %v922
      %v931 = vsub.f32 %v915, %v925
      %v932 = vsub.f32 %v916, %v928
      %v933 = vmul.f32 %v929, 1.442695
      %v934 = vpow.pop %v933
      %v935 = vmul.f32 %v930, 1.442695
      %v936 = vpow.pop %v935
      %v937 = vmul.f32 %v931, 1.442695
      %v938 = vpow.pop %v937
      %v939 = vmul.f32 %v932, 1.442695
      %v940 = vpow.pop %v939
      %v941 = vsel %vm321, %v934, 0.0
      %942 = vadd.xlane.f32.xlu0 %v941
      %v943 = vpop.xlane.xlu0 %942
      %v944 = vsel %vm321, %v936, 0.0
      %945 = vadd.xlane.f32.xlu0 %v944
      %v946 = vpop.xlane.xlu0 %945
      %v947 = vsel %vm321, %v938, 0.0
      %948 = vadd.xlane.f32.xlu0 %v947
      %v949 = vpop.xlane.xlu0 %948
      %v950 = vsel %vm321, %v940, 0.0
      %951 = vadd.xlane.f32.xlu0 %v950
      %v952 = vpop.xlane.xlu0 %951
      %v953 = vrcp.pop %v943
      %v954 = vmul.f32 %v943, %v953
      %v955 = vsub.f32 1.0, %v954
      %v956 = vmul.f32 %v953, %v955
      %v957 = vadd.f32 %v953, %v956
      %vm958 = vweird.f32 %v943
      %vm959 = vweird.f32 %v953
      %vm960 = vmor %vm958, %vm959
      %v961 = vsel %vm960, %v953, %v957
      %v962 = vand.u32 2147483647, %v943
      %vm963 = vcmp.eq.f32.partialorder %v962, 8.507059e+37
      %v964 = vand.u32 %v943, 2147483648
      %v965 = vor.u32 1.1754944e-38, %v964
      %v966 = vsel %vm963, %v965, %v961
      %v967 = vmul.f32 %v934, %v966
      %v968 = vrcp.pop %v946
      %v969 = vmul.f32 %v946, %v968
      %v970 = vsub.f32 1.0, %v969
      %v971 = vmul.f32 %v968, %v970
      %v972 = vadd.f32 %v968, %v971
      %vm973 = vweird.f32 %v946
      %vm974 = vweird.f32 %v968
      %vm975 = vmor %vm973, %vm974
      %v976 = vsel %vm975, %v968, %v972
      %v977 = vand.u32 2147483647, %v946
      %vm978 = vcmp.eq.f32.partialorder %v977, 8.507059e+37
      %v979 = vand.u32 %v946, 2147483648
      %v980 = vor.u32 1.1754944e-38, %v979
      %v981 = vsel %vm978, %v980, %v976
      %v982 = vmul.f32 %v936, %v981
      %v983 = vrcp.pop %v949
      %v984 = vmul.f32 %v949, %v983
      %v985 = vsub.f32 1.0, %v984
      %v986 = vmul.f32 %v983, %v985
      %v987 = vadd.f32 %v983, %v986
      %vm988 = vweird.f32 %v949
      %vm989 = vweird.f32 %v983
      %vm990 = vmor %vm988, %vm989
      %v991 = vsel %vm990, %v983, %v987
      %v992 = vand.u32 2147483647, %v949
      %vm993 = vcmp.eq.f32.partialorder %v992, 8.507059e+37
      %v994 = vand.u32 %v949, 2147483648
      %v995 = vor.u32 1.1754944e-38, %v994
      %v996 = vsel %vm993, %v995, %v991
      %v997 = vmul.f32 %v938, %v996
      %v998 = vrcp.pop %v952
      %v999 = vmul.f32 %v952, %v998
      %v1000 = vsub.f32 1.0, %v999
      %v1001 = vmul.f32 %v998, %v1000
      %v1002 = vadd.f32 %v998, %v1001
      %vm1003 = vweird.f32 %v952
      %vm1004 = vweird.f32 %v998
      %vm1005 = vmor %vm1003, %vm1004
      %v1006 = vsel %vm1005, %v998, %v1002
      %v1007 = vand.u32 2147483647, %v952
      %vm1008 = vcmp.eq.f32.partialorder %v1007, 8.507059e+37
      %v1009 = vand.u32 %v952, 2147483648
      %v1010 = vor.u32 1.1754944e-38, %v1009
      %v1011 = vsel %vm1008, %v1010, %v1006
      %v1012 = vmul.f32 %v940, %v1011
      %1017 = vrot.lane.b32.xlu0 %v526, 120
      %v1018 = vpop.permute.xlu0 %1017
      %1019 = vrot.lane.b32.xlu0 %v529, 120
      %v1020 = vpop.permute.xlu0 %1019
      %1021 = vrot.lane.b32.xlu0 %v532, 120
      %v1022 = vpop.permute.xlu0 %1021
      %1023 = vrot.lane.b32.xlu0 %v535, 120
      %v1024 = vpop.permute.xlu0 %1023
      %v1030 = vsel %vm321, %v967, 0
      %v1033 = vsel %vm321, %v982, 0
      %v1036 = vsel %vm321, %v997, 0
      %v1039 = vsel %vm321, %v1012, 0
      %1041 = vmatpush.msra.mxu0 0.0
      %1042 = vmatpush.msra.mxu0 0.0
      %1043 = vmatpush.msra.mxu0 0.0
      %1044 = vmatpush.msra.mxu0 0.0
      %1045 = vmatpush.msra.mxu0 0.0
      %1046 = vmatpush.msra.mxu0 0.0
      %1047 = vmatpush.msra.mxu0 0.0
      %1048 = vmatpush.msra.mxu0 0.0
      %1049 = vmatpush.msra.mxu0 0.0
      %1050 = vmatpush.msra.mxu0 0.0
      %1051 = vmatpush.msra.mxu0 0.0
      %1052 = vmatpush.msra.mxu0 0.0
      %1053 = vmatpush.msra.mxu0 %v1024
      %1054 = vmatpush.msra.mxu0 %v1022
      %1055 = vmatpush.msra.mxu0 %v1020
      %1056 = vmatpush.msra.mxu0 %v1018
      %1057 = vmatmul.f32.gmra.mxu0 %v1030
      %v1058 = vpop.f32.mrf.mxu0
      %v1059 = vadd.f32 0.0, %v1058
      %1060 = vmatmul.f32.gmra.mxu0 %v1033
      %v1061 = vpop.f32.mrf.mxu0
      %v1062 = vadd.f32 0.0, %v1061
      %1063 = vmatmul.f32.gmra.mxu0 %v1036
      %v1064 = vpop.f32.mrf.mxu0
      %v1065 = vadd.f32 0.0, %v1064
      %1066 = vmatmul.f32.gmra.mxu0 %v1039
      %v1067 = vpop.f32.mrf.mxu0
      %v1068 = vadd.f32 0.0, %v1067
      %1069 = vdwg.mxu0
      %v1071 = vsel %vm653, %v1059, 0
      %v1074 = vsel %vm653, %v1062, 0
      %v1077 = vsel %vm653, %v1065, 0
      %v1080 = vsel %vm653, %v1068, 0
      %1082 = vmatpush.msra.mxu0 0.0
      %1083 = vmatpush.msra.mxu0 0.0
      %1084 = vmatpush.msra.mxu0 0.0
      %1085 = vmatpush.msra.mxu0 0.0
      %1086 = vmatpush.msra.mxu0 0.0
      %1087 = vmatpush.msra.mxu0 0.0
      %1088 = vmatpush.msra.mxu0 0.0
      %1089 = vmatpush.msra.mxu0 0.0
      %1090 = vmatpush.msra.mxu0 0.0
      %1091 = vmatpush.msra.mxu0 0.0
      %1092 = vmatpush.msra.mxu0 0.0
      %1093 = vmatpush.msra.mxu0 0.0
      %1094 = vmatpush.msra.mxu0 0.0
      %1095 = vmatpush.msra.mxu0 0.0
      %1096 = vmatpush.msra.mxu0 0.0
      %1097 = vmatpush.msra.mxu0 %v638
      %1098 = vmatmul.f32.gmra.mxu0 %v1071
      %v1099 = vpop.f32.mrf.mxu0
      %v1100 = vadd.f32 0.0, %v1099
      %1101 = vmatmul.f32.gmra.mxu0 %v1074
      %v1102 = vpop.f32.mrf.mxu0
      %v1103 = vadd.f32 0.0, %v1102
      %1104 = vmatmul.f32.gmra.mxu0 %v1077
      %v1105 = vpop.f32.mrf.mxu0
      %v1106 = vadd.f32 0.0, %v1105
      %1107 = vmatmul.f32.gmra.mxu0 %v1080
      %v1108 = vpop.f32.mrf.mxu0
      %v1109 = vadd.f32 0.0, %v1108
      %1110 = vdwg.mxu0
      %v1112 = vsel %vm653, %v837, 0
      %v1115 = vsel %vm653, %v840, 0
      %v1118 = vsel %vm653, %v843, 0
      %v1121 = vsel %vm653, %v846, 0
      %1123 = vmatpush.msra.mxu0 0.0
      %1124 = vmatpush.msra.mxu0 0.0
      %1125 = vmatpush.msra.mxu0 0.0
      %1126 = vmatpush.msra.mxu0 0.0
      %1127 = vmatpush.msra.mxu0 0.0
      %1128 = vmatpush.msra.mxu0 0.0
      %1129 = vmatpush.msra.mxu0 0.0
      %1130 = vmatpush.msra.mxu0 0.0
      %1131 = vmatpush.msra.mxu0 0.0
      %1132 = vmatpush.msra.mxu0 0.0
      %1133 = vmatpush.msra.mxu0 0.0
      %1134 = vmatpush.msra.mxu0 0.0
      %1135 = vmatpush.msra.mxu0 0.0
      %1136 = vmatpush.msra.mxu0 0.0
      %1137 = vmatpush.msra.mxu0 0.0
      %1138 = vmatpush.msra.mxu0 %v637
      %1139 = vmatmul.f32.gmra.mxu0 %v1112
      %v1140 = vpop.f32.mrf.mxu0
      %v1141 = vadd.f32 %v1100, %v1140
      %1142 = vmatmul.f32.gmra.mxu0 %v1115
      %v1143 = vpop.f32.mrf.mxu0
      %v1144 = vadd.f32 %v1103, %v1143
      %1145 = vmatmul.f32.gmra.mxu0 %v1118
      %v1146 = vpop.f32.mrf.mxu0
      %v1147 = vadd.f32 %v1106, %v1146
      %1148 = vmatmul.f32.gmra.mxu0 %v1121
      %v1149 = vpop.f32.mrf.mxu0
      %v1150 = vadd.f32 %v1109, %v1149
      %1151 = vdwg.mxu0
      %1152 = vrot.lane.b32.xlu0 %v577, 112
      %v1153 = vpop.permute.xlu0 %1152
      %1154 = vrot.lane.b32.xlu0 %v578, 112
      %v1155 = vpop.permute.xlu0 %1154
      %1156 = vrot.lane.b32.xlu0 %v579, 112
      %v1157 = vpop.permute.xlu0 %1156
      %1158 = vrot.lane.b32.xlu0 %v580, 112
      %v1159 = vpop.permute.xlu0 %1158
      %1160 = vrot.lane.b32.xlu0 %v633, 48
      %v1161 = vpop.permute.xlu0 %1160
      %1162 = vrot.lane.b32.xlu0 %v634, 48
      %v1163 = vpop.permute.xlu0 %1162
      %1164 = vrot.lane.b32.xlu0 %v635, 48
      %v1165 = vpop.permute.xlu0 %1164
      %1166 = vrot.lane.b32.xlu0 %v636, 48
      %v1167 = vpop.permute.xlu0 %1166
      %v1168 = vsel %vm653, %v1153, 0
      %v1170 = vsel %vm653, %v1155, 0
      %v1172 = vsel %vm653, %v1157, 0
      %v1174 = vsel %vm653, %v1159, 0
      %v1176 = vsel %vm653, %v1161, 0
      %v1178 = vsel %vm653, %v1163, 0
      %v1180 = vsel %vm653, %v1165, 0
      %v1182 = vsel %vm653, %v1167, 0
      %1184 = vmatpush.xpose.msra.mxu0 0.0
      %1185 = vmatpush.xpose.msra.mxu0 0.0
      %1186 = vmatpush.xpose.msra.mxu0 0.0
      %1187 = vmatpush.xpose.msra.mxu0 0.0
      %1188 = vmatpush.xpose.msra.mxu0 0.0
      %1189 = vmatpush.xpose.msra.mxu0 0.0
      %1190 = vmatpush.xpose.msra.mxu0 0.0
      %1191 = vmatpush.xpose.msra.mxu0 0.0
      %1192 = vmatpush.xpose.msra.mxu0 0.0
      %1193 = vmatpush.xpose.msra.mxu0 0.0
      %1194 = vmatpush.xpose.msra.mxu0 0.0
      %1195 = vmatpush.xpose.msra.mxu0 0.0
      %1196 = vmatpush.xpose.msra.mxu0 %v1182
      %1197 = vmatpush.xpose.msra.mxu0 %v1180
      %1198 = vmatpush.xpose.msra.mxu0 %v1178
      %1199 = vmatpush.xpose.msra.mxu0 %v1176
      %1200 = vmatmul.f32.gmra.mxu0 %v1168
      %v1201 = vpop.f32.mrf.mxu0
      %v1202 = vadd.f32 0.0, %v1201
      %1203 = vmatmul.f32.gmra.mxu0 %v1170
      %v1204 = vpop.f32.mrf.mxu0
      %v1205 = vadd.f32 0.0, %v1204
      %1206 = vmatmul.f32.gmra.mxu0 %v1172
      %v1207 = vpop.f32.mrf.mxu0
      %v1208 = vadd.f32 0.0, %v1207
      %1209 = vmatmul.f32.gmra.mxu0 %v1174
      %v1210 = vpop.f32.mrf.mxu0
      %v1211 = vadd.f32 0.0, %v1210
      %1212 = vdwg.mxu0
      %v1213 = vmul.f32 %v1202, 0.35355338
      %v1214 = vmul.f32 %v1205, 0.35355338
      %v1215 = vmul.f32 %v1208, 0.35355338
      %v1216 = vmul.f32 %v1211, 0.35355338
      %v1217 = vadd.f32 %v1213, %v250
      %v1218 = vadd.f32 %v1214, %v251
      %v1219 = vadd.f32 %v1215, %v252
      %v1220 = vadd.f32 %v1216, %v253
      %v1221 = vsel %vm321, %v1217, -inf
      %1222 = vmax.xlane.f32.xlu0 %v1221
      %v1223 = vpop.xlane.xlu0 %1222
      %v1224 = vsel %vm321, %v1218, -inf
      %1225 = vmax.xlane.f32.xlu0 %v1224
      %v1226 = vpop.xlane.xlu0 %1225
      %v1227 = vsel %vm321, %v1219, -inf
      %1228 = vmax.xlane.f32.xlu0 %v1227
      %v1229 = vpop.xlane.xlu0 %1228
      %v1230 = vsel %vm321, %v1220, -inf
      %1231 = vmax.xlane.f32.xlu0 %v1230
      %v1232 = vpop.xlane.xlu0 %1231
      %v1233 = vsub.f32 %v1217, %v1223
      %v1234 = vsub.f32 %v1218, %v1226
      %v1235 = vsub.f32 %v1219, %v1229
      %v1236 = vsub.f32 %v1220, %v1232
      %v1237 = vmul.f32 %v1233, 1.442695
      %v1238 = vpow.pop %v1237
      %v1239 = vmul.f32 %v1234, 1.442695
      %v1240 = vpow.pop %v1239
      %v1241 = vmul.f32 %v1235, 1.442695
      %v1242 = vpow.pop %v1241
      %v1243 = vmul.f32 %v1236, 1.442695
      %v1244 = vpow.pop %v1243
      %v1245 = vsel %vm321, %v1238, 0.0
      %1246 = vadd.xlane.f32.xlu0 %v1245
      %v1247 = vpop.xlane.xlu0 %1246
      %v1248 = vsel %vm321, %v1240, 0.0
      %1249 = vadd.xlane.f32.xlu0 %v1248
      %v1250 = vpop.xlane.xlu0 %1249
      %v1251 = vsel %vm321, %v1242, 0.0
      %1252 = vadd.xlane.f32.xlu0 %v1251
      %v1253 = vpop.xlane.xlu0 %1252
      %v1254 = vsel %vm321, %v1244, 0.0
      %1255 = vadd.xlane.f32.xlu0 %v1254
      %v1256 = vpop.xlane.xlu0 %1255
      %v1257 = vrcp.pop %v1247
      %v1258 = vmul.f32 %v1247, %v1257
      %v1259 = vsub.f32 1.0, %v1258
      %v1260 = vmul.f32 %v1257, %v1259
      %v1261 = vadd.f32 %v1257, %v1260
      %vm1262 = vweird.f32 %v1247
      %vm1263 = vweird.f32 %v1257
      %vm1264 = vmor %vm1262, %vm1263
      %v1265 = vsel %vm1264, %v1257, %v1261
      %v1266 = vand.u32 2147483647, %v1247
      %vm1267 = vcmp.eq.f32.partialorder %v1266, 8.507059e+37
      %v1268 = vand.u32 %v1247, 2147483648
      %v1269 = vor.u32 1.1754944e-38, %v1268
      %v1270 = vsel %vm1267, %v1269, %v1265
      %v1271 = vmul.f32 %v1238, %v1270
      %v1272 = vrcp.pop %v1250
      %v1273 = vmul.f32 %v1250, %v1272
      %v1274 = vsub.f32 1.0, %v1273
      %v1275 = vmul.f32 %v1272, %v1274
      %v1276 = vadd.f32 %v1272, %v1275
      %vm1277 = vweird.f32 %v1250
      %vm1278 = vweird.f32 %v1272
      %vm1279 = vmor %vm1277, %vm1278
      %v1280 = vsel %vm1279, %v1272, %v1276
      %v1281 = vand.u32 2147483647, %v1250
      %vm1282 = vcmp.eq.f32.partialorder %v1281, 8.507059e+37
      %v1283 = vand.u32 %v1250, 2147483648
      %v1284 = vor.u32 1.1754944e-38, %v1283
      %v1285 = vsel %vm1282, %v1284, %v1280
      %v1286 = vmul.f32 %v1240, %v1285
      %v1287 = vrcp.pop %v1253
      %v1288 = vmul.f32 %v1253, %v1287
      %v1289 = vsub.f32 1.0, %v1288
      %v1290 = vmul.f32 %v1287, %v1289
      %v1291 = vadd.f32 %v1287, %v1290
      %vm1292 = vweird.f32 %v1253
      %vm1293 = vweird.f32 %v1287
      %vm1294 = vmor %vm1292, %vm1293
      %v1295 = vsel %vm1294, %v1287, %v1291
      %v1296 = vand.u32 2147483647, %v1253
      %vm1297 = vcmp.eq.f32.partialorder %v1296, 8.507059e+37
      %v1298 = vand.u32 %v1253, 2147483648
      %v1299 = vor.u32 1.1754944e-38, %v1298
      %v1300 = vsel %vm1297, %v1299, %v1295
      %v1301 = vmul.f32 %v1242, %v1300
      %v1302 = vrcp.pop %v1256
      %v1303 = vmul.f32 %v1256, %v1302
      %v1304 = vsub.f32 1.0, %v1303
      %v1305 = vmul.f32 %v1302, %v1304
      %v1306 = vadd.f32 %v1302, %v1305
      %vm1307 = vweird.f32 %v1256
      %vm1308 = vweird.f32 %v1302
      %vm1309 = vmor %vm1307, %vm1308
      %v1310 = vsel %vm1309, %v1302, %v1306
      %v1311 = vand.u32 2147483647, %v1256
      %vm1312 = vcmp.eq.f32.partialorder %v1311, 8.507059e+37
      %v1313 = vand.u32 %v1256, 2147483648
      %v1314 = vor.u32 1.1754944e-38, %v1313
      %v1315 = vsel %vm1312, %v1314, %v1310
      %v1316 = vmul.f32 %v1244, %v1315
      %1317 = vrot.lane.b32.xlu0 %v526, 112
      %v1318 = vpop.permute.xlu0 %1317
      %1319 = vrot.lane.b32.xlu0 %v529, 112
      %v1320 = vpop.permute.xlu0 %1319
      %1321 = vrot.lane.b32.xlu0 %v532, 112
      %v1322 = vpop.permute.xlu0 %1321
      %1323 = vrot.lane.b32.xlu0 %v535, 112
      %v1324 = vpop.permute.xlu0 %1323
      %v1330 = vsel %vm321, %v1271, 0
      %v1333 = vsel %vm321, %v1286, 0
      %v1336 = vsel %vm321, %v1301, 0
      %v1339 = vsel %vm321, %v1316, 0
      %1341 = vmatpush.msra.mxu0 0.0
      %1342 = vmatpush.msra.mxu0 0.0
      %1343 = vmatpush.msra.mxu0 0.0
      %1344 = vmatpush.msra.mxu0 0.0
      %1345 = vmatpush.msra.mxu0 0.0
      %1346 = vmatpush.msra.mxu0 0.0
      %1347 = vmatpush.msra.mxu0 0.0
      %1348 = vmatpush.msra.mxu0 0.0
      %1349 = vmatpush.msra.mxu0 0.0
      %1350 = vmatpush.msra.mxu0 0.0
      %1351 = vmatpush.msra.mxu0 0.0
      %1352 = vmatpush.msra.mxu0 0.0
      %1353 = vmatpush.msra.mxu0 %v1324
      %1354 = vmatpush.msra.mxu0 %v1322
      %1355 = vmatpush.msra.mxu0 %v1320
      %1356 = vmatpush.msra.mxu0 %v1318
      %1357 = vmatmul.f32.gmra.mxu0 %v1330
      %v1358 = vpop.f32.mrf.mxu0
      %v1359 = vadd.f32 0.0, %v1358
      %1360 = vmatmul.f32.gmra.mxu0 %v1333
      %v1361 = vpop.f32.mrf.mxu0
      %v1362 = vadd.f32 0.0, %v1361
      %1363 = vmatmul.f32.gmra.mxu0 %v1336
      %v1364 = vpop.f32.mrf.mxu0
      %v1365 = vadd.f32 0.0, %v1364
      %1366 = vmatmul.f32.gmra.mxu0 %v1339
      %v1367 = vpop.f32.mrf.mxu0
      %v1368 = vadd.f32 0.0, %v1367
      %1369 = vdwg.mxu0
      %v1371 = vsel %vm653, %v1359, 0
      %v1374 = vsel %vm653, %v1362, 0
      %v1377 = vsel %vm653, %v1365, 0
      %v1380 = vsel %vm653, %v1368, 0
      %1382 = vmatpush.msra.mxu0 0.0
      %1383 = vmatpush.msra.mxu0 0.0
      %1384 = vmatpush.msra.mxu0 0.0
      %1385 = vmatpush.msra.mxu0 0.0
      %1386 = vmatpush.msra.mxu0 0.0
      %1387 = vmatpush.msra.mxu0 0.0
      %1388 = vmatpush.msra.mxu0 0.0
      %1389 = vmatpush.msra.mxu0 0.0
      %1390 = vmatpush.msra.mxu0 0.0
      %1391 = vmatpush.msra.mxu0 0.0
      %1392 = vmatpush.msra.mxu0 0.0
      %1393 = vmatpush.msra.mxu0 0.0
      %1394 = vmatpush.msra.mxu0 0.0
      %1395 = vmatpush.msra.mxu0 0.0
      %1396 = vmatpush.msra.mxu0 0.0
      %1397 = vmatpush.msra.mxu0 %v639
      %1398 = vmatmul.f32.gmra.mxu0 %v1371
      %v1399 = vpop.f32.mrf.mxu0
      %v1400 = vadd.f32 0.0, %v1399
      %1401 = vmatmul.f32.gmra.mxu0 %v1374
      %v1402 = vpop.f32.mrf.mxu0
      %v1403 = vadd.f32 0.0, %v1402
      %1404 = vmatmul.f32.gmra.mxu0 %v1377
      %v1405 = vpop.f32.mrf.mxu0
      %v1406 = vadd.f32 0.0, %v1405
      %1407 = vmatmul.f32.gmra.mxu0 %v1380
      %v1408 = vpop.f32.mrf.mxu0
      %v1409 = vadd.f32 0.0, %v1408
      %1410 = vdwg.mxu0
      %v1411 = vadd.f32 %v1141, %v1400
      %v1412 = vadd.f32 %v1144, %v1403
      %v1413 = vadd.f32 %v1147, %v1406
      %v1414 = vadd.f32 %v1150, %v1409
      %1415 = vrot.lane.b32.xlu0 %v577, 104
      %v1416 = vpop.permute.xlu0 %1415
      %1417 = vrot.lane.b32.xlu0 %v578, 104
      %v1418 = vpop.permute.xlu0 %1417
      %1419 = vrot.lane.b32.xlu0 %v579, 104
      %v1420 = vpop.permute.xlu0 %1419
      %1421 = vrot.lane.b32.xlu0 %v580, 104
      %v1422 = vpop.permute.xlu0 %1421
      %1423 = vrot.lane.b32.xlu0 %v633, 40
      %v1424 = vpop.permute.xlu0 %1423
      %1425 = vrot.lane.b32.xlu0 %v634, 40
      %v1426 = vpop.permute.xlu0 %1425
      %1427 = vrot.lane.b32.xlu0 %v635, 40
      %v1428 = vpop.permute.xlu0 %1427
      %1429 = vrot.lane.b32.xlu0 %v636, 40
      %v1430 = vpop.permute.xlu0 %1429
      %v1431 = vsel %vm653, %v1416, 0
      %v1433 = vsel %vm653, %v1418, 0
      %v1435 = vsel %vm653, %v1420, 0
      %v1437 = vsel %vm653, %v1422, 0
      %v1439 = vsel %vm653, %v1424, 0
      %v1441 = vsel %vm653, %v1426, 0
      %v1443 = vsel %vm653, %v1428, 0
      %v1445 = vsel %vm653, %v1430, 0
      %1447 = vmatpush.xpose.msra.mxu0 0.0
      %1448 = vmatpush.xpose.msra.mxu0 0.0
      %1449 = vmatpush.xpose.msra.mxu0 0.0
      %1450 = vmatpush.xpose.msra.mxu0 0.0
      %1451 = vmatpush.xpose.msra.mxu0 0.0
      %1452 = vmatpush.xpose.msra.mxu0 0.0
      %1453 = vmatpush.xpose.msra.mxu0 0.0
      %1454 = vmatpush.xpose.msra.mxu0 0.0
      %1455 = vmatpush.xpose.msra.mxu0 0.0
      %1456 = vmatpush.xpose.msra.mxu0 0.0
      %1457 = vmatpush.xpose.msra.mxu0 0.0
      %1458 = vmatpush.xpose.msra.mxu0 0.0
      %1459 = vmatpush.xpose.msra.mxu0 %v1445
      %1460 = vmatpush.xpose.msra.mxu0 %v1443
      %1461 = vmatpush.xpose.msra.mxu0 %v1441
      %1462 = vmatpush.xpose.msra.mxu0 %v1439
      %1463 = vmatmul.f32.gmra.mxu0 %v1431
      %v1464 = vpop.f32.mrf.mxu0
      %v1465 = vadd.f32 0.0, %v1464
      %1466 = vmatmul.f32.gmra.mxu0 %v1433
      %v1467 = vpop.f32.mrf.mxu0
      %v1468 = vadd.f32 0.0, %v1467
      %1469 = vmatmul.f32.gmra.mxu0 %v1435
      %v1470 = vpop.f32.mrf.mxu0
      %v1471 = vadd.f32 0.0, %v1470
      %1472 = vmatmul.f32.gmra.mxu0 %v1437
      %v1473 = vpop.f32.mrf.mxu0
      %v1474 = vadd.f32 0.0, %v1473
      %1475 = vdwg.mxu0
      %v1476 = vmul.f32 %v1465, 0.35355338
      %v1477 = vmul.f32 %v1468, 0.35355338
      %v1478 = vmul.f32 %v1471, 0.35355338
      %v1479 = vmul.f32 %v1474, 0.35355338
      %v1480 = vadd.f32 %v1476, %v250
      %v1481 = vadd.f32 %v1477, %v251
      %v1482 = vadd.f32 %v1478, %v252
      %v1483 = vadd.f32 %v1479, %v253
      %v1484 = vsel %vm321, %v1480, -inf
      %1485 = vmax.xlane.f32.xlu0 %v1484
      %v1486 = vpop.xlane.xlu0 %1485
      %v1487 = vsel %vm321, %v1481, -inf
      %1488 = vmax.xlane.f32.xlu0 %v1487
      %v1489 = vpop.xlane.xlu0 %1488
      %v1490 = vsel %vm321, %v1482, -inf
      %1491 = vmax.xlane.f32.xlu0 %v1490
      %v1492 = vpop.xlane.xlu0 %1491
      %v1493 = vsel %vm321, %v1483, -inf
      %1494 = vmax.xlane.f32.xlu0 %v1493
      %v1495 = vpop.xlane.xlu0 %1494
      %v1496 = vsub.f32 %v1480, %v1486
      %v1497 = vsub.f32 %v1481, %v1489
      %v1498 = vsub.f32 %v1482, %v1492
      %v1499 = vsub.f32 %v1483, %v1495
      %v1500 = vmul.f32 %v1496, 1.442695
      %v1501 = vpow.pop %v1500
      %v1502 = vmul.f32 %v1497, 1.442695
      %v1503 = vpow.pop %v1502
      %v1504 = vmul.f32 %v1498, 1.442695
      %v1505 = vpow.pop %v1504
      %v1506 = vmul.f32 %v1499, 1.442695
      %v1507 = vpow.pop %v1506
      %v1508 = vsel %vm321, %v1501, 0.0
      %1509 = vadd.xlane.f32.xlu0 %v1508
      %v1510 = vpop.xlane.xlu0 %1509
      %v1511 = vsel %vm321, %v1503, 0.0
      %1512 = vadd.xlane.f32.xlu0 %v1511
      %v1513 = vpop.xlane.xlu0 %1512
      %v1514 = vsel %vm321, %v1505, 0.0
      %1515 = vadd.xlane.f32.xlu0 %v1514
      %v1516 = vpop.xlane.xlu0 %1515
      %v1517 = vsel %vm321, %v1507, 0.0
      %1518 = vadd.xlane.f32.xlu0 %v1517
      %v1519 = vpop.xlane.xlu0 %1518
      %v1520 = vrcp.pop %v1510
      %v1521 = vmul.f32 %v1510, %v1520
      %v1522 = vsub.f32 1.0, %v1521
      %v1523 = vmul.f32 %v1520, %v1522
      %v1524 = vadd.f32 %v1520, %v1523
      %vm1525 = vweird.f32 %v1510
      %vm1526 = vweird.f32 %v1520
      %vm1527 = vmor %vm1525, %vm1526
      %v1528 = vsel %vm1527, %v1520, %v1524
      %v1529 = vand.u32 2147483647, %v1510
      %vm1530 = vcmp.eq.f32.partialorder %v1529, 8.507059e+37
      %v1531 = vand.u32 %v1510, 2147483648
      %v1532 = vor.u32 1.1754944e-38, %v1531
      %v1533 = vsel %vm1530, %v1532, %v1528
      %v1534 = vmul.f32 %v1501, %v1533
      %v1535 = vrcp.pop %v1513
      %v1536 = vmul.f32 %v1513, %v1535
      %v1537 = vsub.f32 1.0, %v1536
      %v1538 = vmul.f32 %v1535, %v1537
      %v1539 = vadd.f32 %v1535, %v1538
      %vm1540 = vweird.f32 %v1513
      %vm1541 = vweird.f32 %v1535
      %vm1542 = vmor %vm1540, %vm1541
      %v1543 = vsel %vm1542, %v1535, %v1539
      %v1544 = vand.u32 2147483647, %v1513
      %vm1545 = vcmp.eq.f32.partialorder %v1544, 8.507059e+37
      %v1546 = vand.u32 %v1513, 2147483648
      %v1547 = vor.u32 1.1754944e-38, %v1546
      %v1548 = vsel %vm1545, %v1547, %v1543
      %v1549 = vmul.f32 %v1503, %v1548
      %v1550 = vrcp.pop %v1516
      %v1551 = vmul.f32 %v1516, %v1550
      %v1552 = vsub.f32 1.0, %v1551
      %v1553 = vmul.f32 %v1550, %v1552
      %v1554 = vadd.f32 %v1550, %v1553
      %vm1555 = vweird.f32 %v1516
      %vm1556 = vweird.f32 %v1550
      %vm1557 = vmor %vm1555, %vm1556
      %v1558 = vsel %vm1557, %v1550, %v1554
      %v1559 = vand.u32 2147483647, %v1516
      %vm1560 = vcmp.eq.f32.partialorder %v1559, 8.507059e+37
      %v1561 = vand.u32 %v1516, 2147483648
      %v1562 = vor.u32 1.1754944e-38, %v1561
      %v1563 = vsel %vm1560, %v1562, %v1558
      %v1564 = vmul.f32 %v1505, %v1563
      %v1565 = vrcp.pop %v1519
      %v1566 = vmul.f32 %v1519, %v1565
      %v1567 = vsub.f32 1.0, %v1566
      %v1568 = vmul.f32 %v1565, %v1567
      %v1569 = vadd.f32 %v1565, %v1568
      %vm1570 = vweird.f32 %v1519
      %vm1571 = vweird.f32 %v1565
      %vm1572 = vmor %vm1570, %vm1571
      %v1573 = vsel %vm1572, %v1565, %v1569
      %v1574 = vand.u32 2147483647, %v1519
      %vm1575 = vcmp.eq.f32.partialorder %v1574, 8.507059e+37
      %v1576 = vand.u32 %v1519, 2147483648
      %v1577 = vor.u32 1.1754944e-38, %v1576
      %v1578 = vsel %vm1575, %v1577, %v1573
      %v1579 = vmul.f32 %v1507, %v1578
      %1580 = vrot.lane.b32.xlu0 %v526, 104
      %v1581 = vpop.permute.xlu0 %1580
      %1582 = vrot.lane.b32.xlu0 %v529, 104
      %v1583 = vpop.permute.xlu0 %1582
      %1584 = vrot.lane.b32.xlu0 %v532, 104
      %v1585 = vpop.permute.xlu0 %1584
      %1586 = vrot.lane.b32.xlu0 %v535, 104
      %v1587 = vpop.permute.xlu0 %1586
      %v1593 = vsel %vm321, %v1534, 0
      %v1596 = vsel %vm321, %v1549, 0
      %v1599 = vsel %vm321, %v1564, 0
      %v1602 = vsel %vm321, %v1579, 0
      %1604 = vmatpush.msra.mxu0 0.0
      %1605 = vmatpush.msra.mxu0 0.0
      %1606 = vmatpush.msra.mxu0 0.0
      %1607 = vmatpush.msra.mxu0 0.0
      %1608 = vmatpush.msra.mxu0 0.0
      %1609 = vmatpush.msra.mxu0 0.0
      %1610 = vmatpush.msra.mxu0 0.0
      %1611 = vmatpush.msra.mxu0 0.0
      %1612 = vmatpush.msra.mxu0 0.0
      %1613 = vmatpush.msra.mxu0 0.0
      %1614 = vmatpush.msra.mxu0 0.0
      %1615 = vmatpush.msra.mxu0 0.0
      %1616 = vmatpush.msra.mxu0 %v1587
      %1617 = vmatpush.msra.mxu0 %v1585
      %1618 = vmatpush.msra.mxu0 %v1583
      %1619 = vmatpush.msra.mxu0 %v1581
      %1620 = vmatmul.f32.gmra.mxu0 %v1593
      %v1621 = vpop.f32.mrf.mxu0
      %v1622 = vadd.f32 0.0, %v1621
      %1623 = vmatmul.f32.gmra.mxu0 %v1596
      %v1624 = vpop.f32.mrf.mxu0
      %v1625 = vadd.f32 0.0, %v1624
      %1626 = vmatmul.f32.gmra.mxu0 %v1599
      %v1627 = vpop.f32.mrf.mxu0
      %v1628 = vadd.f32 0.0, %v1627
      %1629 = vmatmul.f32.gmra.mxu0 %v1602
      %v1630 = vpop.f32.mrf.mxu0
      %v1631 = vadd.f32 0.0, %v1630
      %1632 = vdwg.mxu0
      %v1634 = vsel %vm653, %v1622, 0
      %v1637 = vsel %vm653, %v1625, 0
      %v1640 = vsel %vm653, %v1628, 0
      %v1643 = vsel %vm653, %v1631, 0
      %1645 = vmatpush.msra.mxu0 0.0
      %1646 = vmatpush.msra.mxu0 0.0
      %1647 = vmatpush.msra.mxu0 0.0
      %1648 = vmatpush.msra.mxu0 0.0
      %1649 = vmatpush.msra.mxu0 0.0
      %1650 = vmatpush.msra.mxu0 0.0
      %1651 = vmatpush.msra.mxu0 0.0
      %1652 = vmatpush.msra.mxu0 0.0
      %1653 = vmatpush.msra.mxu0 0.0
      %1654 = vmatpush.msra.mxu0 0.0
      %1655 = vmatpush.msra.mxu0 0.0
      %1656 = vmatpush.msra.mxu0 0.0
      %1657 = vmatpush.msra.mxu0 0.0
      %1658 = vmatpush.msra.mxu0 0.0
      %1659 = vmatpush.msra.mxu0 0.0
      %1660 = vmatpush.msra.mxu0 %v640
      %1661 = vmatmul.f32.gmra.mxu0 %v1634
      %v1662 = vpop.f32.mrf.mxu0
      %v1663 = vadd.f32 0.0, %v1662
      %1664 = vmatmul.f32.gmra.mxu0 %v1637
      %v1665 = vpop.f32.mrf.mxu0
      %v1666 = vadd.f32 0.0, %v1665
      %1667 = vmatmul.f32.gmra.mxu0 %v1640
      %v1668 = vpop.f32.mrf.mxu0
      %v1669 = vadd.f32 0.0, %v1668
      %1670 = vmatmul.f32.gmra.mxu0 %v1643
      %v1671 = vpop.f32.mrf.mxu0
      %v1672 = vadd.f32 0.0, %v1671
      %1673 = vdwg.mxu0
      %v1674 = vadd.f32 %v1411, %v1663
      %v1675 = vadd.f32 %v1412, %v1666
      %v1676 = vadd.f32 %v1413, %v1669
      %v1677 = vadd.f32 %v1414, %v1672
      %v1678 = vadd.f32 %v343, %v1674
      %v1679 = vadd.f32 %v344, %v1675
      %v1680 = vadd.f32 %v345, %v1676
      %v1681 = vadd.f32 %v346, %v1677
      %v1682 = vld [vmem:[%s4 + $0x110] ss:$0 sm:$0xff]
      %v1683 = vadd.f32 %v1678, %v1682
      %v1684 = vadd.f32 %v1679, %v1682
      %v1685 = vadd.f32 %v1680, %v1682
      %v1686 = vadd.f32 %v1681, %v1682
      %v1687 = vld [vmem:[%s4 + $0x120] ss:$0 sm:$0xff]
      %v1688 = vld [vmem:[%s4 + $0x130] ss:$0 sm:$0xff]
      %v1689 = vsel %vm321, %v1683, 0.0
      %1690 = vadd.xlane.f32.xlu0 %v1689
      %v1691 = vpop.xlane.xlu0 %1690
      %v1692 = vsel %vm321, %v1684, 0.0
      %1693 = vadd.xlane.f32.xlu0 %v1692
      %v1694 = vpop.xlane.xlu0 %1693
      %v1695 = vsel %vm321, %v1685, 0.0
      %1696 = vadd.xlane.f32.xlu0 %v1695
      %v1697 = vpop.xlane.xlu0 %1696
      %v1698 = vsel %vm321, %v1686, 0.0
      %1699 = vadd.xlane.f32.xlu0 %v1698
      %v1700 = vpop.xlane.xlu0 %1699
      %v1701 = vmul.f32 %v1691, %v367
      %v1702 = vmul.f32 %v1694, %v367
      %v1703 = vmul.f32 %v1697, %v367
      %v1704 = vmul.f32 %v1700, %v367
      %v1705 = vsub.f32 %v1683, %v1701
      %v1706 = vsub.f32 %v1684, %v1702
      %v1707 = vsub.f32 %v1685, %v1703
      %v1708 = vsub.f32 %v1686, %v1704
      %v1709 = vmul.f32 %v1705, %v1705
      %v1710 = vmul.f32 %v1706, %v1706
      %v1711 = vmul.f32 %v1707, %v1707
      %v1712 = vmul.f32 %v1708, %v1708
      %v1713 = vsel %vm321, %v1709, 0.0
      %1714 = vadd.xlane.f32.xlu0 %v1713
      %v1715 = vpop.xlane.xlu0 %1714
      %v1716 = vsel %vm321, %v1710, 0.0
      %1717 = vadd.xlane.f32.xlu0 %v1716
      %v1718 = vpop.xlane.xlu0 %1717
      %v1719 = vsel %vm321, %v1711, 0.0
      %1720 = vadd.xlane.f32.xlu0 %v1719
      %v1721 = vpop.xlane.xlu0 %1720
      %v1722 = vsel %vm321, %v1712, 0.0
      %1723 = vadd.xlane.f32.xlu0 %v1722
      %v1724 = vpop.xlane.xlu0 %1723
      %v1725 = vmul.f32 %v1715, %v367
      %v1726 = vmul.f32 %v1718, %v367
      %v1727 = vmul.f32 %v1721, %v367
      %v1728 = vmul.f32 %v1724, %v367
      %v1729 = vadd.f32 %v1725, 1e-05
      %v1730 = vadd.f32 %v1726, 1e-05
      %v1731 = vadd.f32 %v1727, 1e-05
      %v1732 = vadd.f32 %v1728, 1e-05
      %v1733 = vrsqrt.pop %v1729
      %v1734 = vmul.f32 %v1733, %v1729
      %v1735 = vmul.f32 %v1734, %v1733
      %v1736 = vmul.f32 0.5, %v1735
      %v1737 = vsub.f32 1.5, %v1736
      %v1738 = vmul.f32 %v1733, %v1737
      %vm1739 = vweird.f32 %v1729
      %vm1740 = vweird.f32 %v1733
      %vm1741 = vmor %vm1739, %vm1740
      %v1742 = vsel %vm1741, %v1733, %v1738
      %v1743 = vrsqrt.pop %v1730
      %v1744 = vmul.f32 %v1743, %v1730
      %v1745 = vmul.f32 %v1744, %v1743
      %v1746 = vmul.f32 0.5, %v1745
      %v1747 = vsub.f32 1.5, %v1746
      %v1748 = vmul.f32 %v1743, %v1747
      %vm1749 = vweird.f32 %v1730
      %vm1750 = vweird.f32 %v1743
      %vm1751 = vmor %vm1749, %vm1750
      %v1752 = vsel %vm1751, %v1743, %v1748
      %v1753 = vrsqrt.pop %v1731
      %v1754 = vmul.f32 %v1753, %v1731
      %v1755 = vmul.f32 %v1754, %v1753
      %v1756 = vmul.f32 0.5, %v1755
      %v1757 = vsub.f32 1.5, %v1756
      %v1758 = vmul.f32 %v1753, %v1757
      %vm1759 = vweird.f32 %v1731
      %vm1760 = vweird.f32 %v1753
      %vm1761 = vmor %vm1759, %vm1760
      %v1762 = vsel %vm1761, %v1753, %v1758
      %v1763 = vrsqrt.pop %v1732
      %v1764 = vmul.f32 %v1763, %v1732
      %v1765 = vmul.f32 %v1764, %v1763
      %v1766 = vmul.f32 0.5, %v1765
      %v1767 = vsub.f32 1.5, %v1766
      %v1768 = vmul.f32 %v1763, %v1767
      %vm1769 = vweird.f32 %v1732
      %vm1770 = vweird.f32 %v1763
      %vm1771 = vmor %vm1769, %vm1770
      %v1772 = vsel %vm1771, %v1763, %v1768
      %v1773 = vmul.f32 %v1705, %v1742
      %v1774 = vmul.f32 %v1706, %v1752
      %v1775 = vmul.f32 %v1707, %v1762
      %v1776 = vmul.f32 %v1708, %v1772
      %v1777 = vmul.f32 %v1773, %v1687
      %v1778 = vmul.f32 %v1774, %v1687
      %v1779 = vmul.f32 %v1775, %v1687
      %v1780 = vmul.f32 %v1776, %v1687
      %v1781 = vadd.f32 %v1777, %v1688
      %v1782 = vadd.f32 %v1778, %v1688
      %v1783 = vadd.f32 %v1779, %v1688
      %v1784 = vadd.f32 %v1780, %v1688
      %v1785 = vld [vmem:[%s4 + $0x140] sm:$0xff]
      %v1786 = vld [vmem:[%s4 + $0x150] sm:$0xff]
      %v1787 = vld [vmem:[%s4 + $0x160] sm:$0xff]
      %v1788 = vld [vmem:[%s4 + $0x170] sm:$0xff]
      %v1789 = vld [vmem:[%s4 + $0x180] ss:$0 sm:$0xff]
      %v1791 = vsel %vm321, %v1781, 0
      %v1794 = vsel %vm321, %v1782, 0
      %v1797 = vsel %vm321, %v1783, 0
      %v1800 = vsel %vm321, %v1784, 0
      %1802 = vmatpush.msra.mxu0 0.0
      %1803 = vmatpush.msra.mxu0 0.0
      %1804 = vmatpush.msra.mxu0 0.0
      %1805 = vmatpush.msra.mxu0 0.0
      %1806 = vmatpush.msra.mxu0 0.0
      %1807 = vmatpush.msra.mxu0 0.0
      %1808 = vmatpush.msra.mxu0 0.0
      %1809 = vmatpush.msra.mxu0 0.0
      %1810 = vmatpush.msra.mxu0 0.0
      %1811 = vmatpush.msra.mxu0 0.0
      %1812 = vmatpush.msra.mxu0 0.0
      %1813 = vmatpush.msra.mxu0 0.0
      %1814 = vmatpush.msra.mxu0 %v1788
      %1815 = vmatpush.msra.mxu0 %v1787
      %1816 = vmatpush.msra.mxu0 %v1786
      %1817 = vmatpush.msra.mxu0 %v1785
      %1818 = vmatmul.f32.gmra.mxu0 %v1791
      %v1819 = vpop.f32.mrf.mxu0
      %v1820 = vadd.f32 %v1789, %v1819
      %1821 = vmatmul.f32.gmra.mxu0 %v1794
      %v1822 = vpop.f32.mrf.mxu0
      %v1823 = vadd.f32 %v1789, %v1822
      %1824 = vmatmul.f32.gmra.mxu0 %v1797
      %v1825 = vpop.f32.mrf.mxu0
      %v1826 = vadd.f32 %v1789, %v1825
      %1827 = vmatmul.f32.gmra.mxu0 %v1800
      %v1828 = vpop.f32.mrf.mxu0
      %v1829 = vadd.f32 %v1789, %v1828
      %1830 = vdwg.mxu0
      %v1831 = vmul.f32 %v1820, %v1820
      %v1832 = vmul.f32 %v1823, %v1823
      %v1833 = vmul.f32 %v1826, %v1826
      %v1834 = vmul.f32 %v1829, %v1829
      %v1835 = vmul.f32 %v1820, %v1831
      %v1836 = vmul.f32 %v1823, %v1832
      %v1837 = vmul.f32 %v1826, %v1833
      %v1838 = vmul.f32 %v1829, %v1834
      %v1839 = vmul.f32 %v1835, 0.044715
      %v1840 = vmul.f32 %v1836, 0.044715
      %v1841 = vmul.f32 %v1837, 0.044715
      %v1842 = vmul.f32 %v1838, 0.044715
      %v1843 = vadd.f32 %v1820, %v1839
      %v1844 = vadd.f32 %v1823, %v1840
      %v1845 = vadd.f32 %v1826, %v1841
      %v1846 = vadd.f32 %v1829, %v1842
      %v1847 = vmul.f32 %v1843, 0.7978846
      %v1848 = vmul.f32 %v1844, 0.7978846
      %v1849 = vmul.f32 %v1845, 0.7978846
      %v1850 = vmul.f32 %v1846, 0.7978846
      %v1851 = vtanh.pop %v1847
      %v1852 = vtanh.pop %v1848
      %v1853 = vtanh.pop %v1849
      %v1854 = vtanh.pop %v1850
      %v1855 = vadd.f32 %v1851, 1.0
      %v1856 = vadd.f32 %v1852, 1.0
      %v1857 = vadd.f32 %v1853, 1.0
      %v1858 = vadd.f32 %v1854, 1.0
      %v1859 = vmul.f32 %v1855, 0.5
      %v1860 = vmul.f32 %v1856, 0.5
      %v1861 = vmul.f32 %v1857, 0.5
      %v1862 = vmul.f32 %v1858, 0.5
      %v1863 = vmul.f32 %v1820, %v1859
      %v1864 = vmul.f32 %v1823, %v1860
      %v1865 = vmul.f32 %v1826, %v1861
      %v1866 = vmul.f32 %v1829, %v1862
      %v1867 = vld [vmem:[%s4 + $0x190] sm:$0xff]
      %v1868 = vld [vmem:[%s4 + $0x1a0] sm:$0xff]
      %v1869 = vld [vmem:[%s4 + $0x1b0] sm:$0xff]
      %v1870 = vld [vmem:[%s4 + $0x1c0] sm:$0xff]
      %v1871 = vld [vmem:[%s4 + $0x1d0] sm:$0xff]
      %v1872 = vld [vmem:[%s4 + $0x1e0] sm:$0xff]
      %v1873 = vld [vmem:[%s4 + $0x1f0] sm:$0xff]
      %v1874 = vld [vmem:[%s4 + $0x200] sm:$0xff]
      %v1875 = vld [vmem:[%s4 + $0x210] sm:$0xff]
      %v1876 = vld [vmem:[%s4 + $0x220] sm:$0xff]
      %v1877 = vld [vmem:[%s4 + $0x230] sm:$0xff]
      %v1878 = vld [vmem:[%s4 + $0x240] sm:$0xff]
      %v1879 = vld [vmem:[%s4 + $0x250] sm:$0xff]
      %v1880 = vld [vmem:[%s4 + $0x260] sm:$0xff]
      %v1881 = vld [vmem:[%s4 + $0x270] sm:$0xff]
      %v1882 = vld [vmem:[%s4 + $0x280] sm:$0xff]
      %1883 = vmatpush.msra.mxu0 %v1882
      %1884 = vmatpush.msra.mxu0 %v1881
      %1885 = vmatpush.msra.mxu0 %v1880
      %1886 = vmatpush.msra.mxu0 %v1879
      %1887 = vmatpush.msra.mxu0 %v1878
      %1888 = vmatpush.msra.mxu0 %v1877
      %1889 = vmatpush.msra.mxu0 %v1876
      %1890 = vmatpush.msra.mxu0 %v1875
      %1891 = vmatpush.msra.mxu0 %v1874
      %1892 = vmatpush.msra.mxu0 %v1873
      %1893 = vmatpush.msra.mxu0 %v1872
      %1894 = vmatpush.msra.mxu0 %v1871
      %1895 = vmatpush.msra.mxu0 %v1870
      %1896 = vmatpush.msra.mxu0 %v1869
      %1897 = vmatpush.msra.mxu0 %v1868
      %1898 = vmatpush.msra.mxu0 %v1867
      %1899 = vmatmul.f32.gmra.mxu0 %v1863
      %v1900 = vpop.f32.mrf.mxu0
      %v1901 = vadd.f32 0.0, %v1900
      %1902 = vmatmul.f32.gmra.mxu0 %v1864
      %v1903 = vpop.f32.mrf.mxu0
      %v1904 = vadd.f32 0.0, %v1903
      %1905 = vmatmul.f32.gmra.mxu0 %v1865
      %v1906 = vpop.f32.mrf.mxu0
      %v1907 = vadd.f32 0.0, %v1906
      %1908 = vmatmul.f32.gmra.mxu0 %v1866
      %v1909 = vpop.f32.mrf.mxu0
      %v1910 = vadd.f32 0.0, %v1909
      %1911 = vdwg.mxu0
      %v1912 = vadd.f32 %v1683, %v1901
      %v1913 = vadd.f32 %v1684, %v1904
      %v1914 = vadd.f32 %v1685, %v1907
      %v1915 = vadd.f32 %v1686, %v1910
      %v1916 = vld [vmem:[%s4 + $0x290] ss:$0 sm:$0xff]
      %v1917 = vadd.f32 %v1912, %v1916
      %v1918 = vadd.f32 %v1913, %v1916
      %v1919 = vadd.f32 %v1914, %v1916
      %v1920 = vadd.f32 %v1915, %v1916
      %v1921 = vld [vmem:[%s4 + $0x2a0] ss:$0 sm:$0xff]
      %v1922 = vld [vmem:[%s4 + $0x2b0] ss:$0 sm:$0xff]
      %v1923 = vsel %vm321, %v1917, 0.0
      %1924 = vadd.xlane.f32.xlu0 %v1923
      %v1925 = vpop.xlane.xlu0 %1924
      %v1926 = vsel %vm321, %v1918, 0.0
      %1927 = vadd.xlane.f32.xlu0 %v1926
      %v1928 = vpop.xlane.xlu0 %1927
      %v1929 = vsel %vm321, %v1919, 0.0
      %1930 = vadd.xlane.f32.xlu0 %v1929
      %v1931 = vpop.xlane.xlu0 %1930
      %v1932 = vsel %vm321, %v1920, 0.0
      %1933 = vadd.xlane.f32.xlu0 %v1932
      %v1934 = vpop.xlane.xlu0 %1933
      %v1935 = vmul.f32 %v1925, %v367
      %v1936 = vmul.f32 %v1928, %v367
      %v1937 = vmul.f32 %v1931, %v367
      %v1938 = vmul.f32 %v1934, %v367
      %v1939 = vsub.f32 %v1917, %v1935
      %v1940 = vsub.f32 %v1918, %v1936
      %v1941 = vsub.f32 %v1919, %v1937
      %v1942 = vsub.f32 %v1920, %v1938
      %v1943 = vmul.f32 %v1939, %v1939
      %v1944 = vmul.f32 %v1940, %v1940
      %v1945 = vmul.f32 %v1941, %v1941
      %v1946 = vmul.f32 %v1942, %v1942
      %v1947 = vsel %vm321, %v1943, 0.0
      %1948 = vadd.xlane.f32.xlu0 %v1947
      %v1949 = vpop.xlane.xlu0 %1948
      %v1950 = vsel %vm321, %v1944, 0.0
      %1951 = vadd.xlane.f32.xlu0 %v1950
      %v1952 = vpop.xlane.xlu0 %1951
      %v1953 = vsel %vm321, %v1945, 0.0
      %1954 = vadd.xlane.f32.xlu0 %v1953
      %v1955 = vpop.xlane.xlu0 %1954
      %v1956 = vsel %vm321, %v1946, 0.0
      %1957 = vadd.xlane.f32.xlu0 %v1956
      %v1958 = vpop.xlane.xlu0 %1957
      %v1959 = vmul.f32 %v1949, %v367
      %v1960 = vmul.f32 %v1952, %v367
      %v1961 = vmul.f32 %v1955, %v367
      %v1962 = vmul.f32 %v1958, %v367
      %v1963 = vadd.f32 %v1959, 1e-05
      %v1964 = vadd.f32 %v1960, 1e-05
      %v1965 = vadd.f32 %v1961, 1e-05
      %v1966 = vadd.f32 %v1962, 1e-05
      %v1967 = vrsqrt.pop %v1963
      %v1968 = vmul.f32 %v1967, %v1963
      %v1969 = vmul.f32 %v1968, %v1967
      %v1970 = vmul.f32 0.5, %v1969
      %v1971 = vsub.f32 1.5, %v1970
      %v1972 = vmul.f32 %v1967, %v1971
      %vm1973 = vweird.f32 %v1963
      %vm1974 = vweird.f32 %v1967
      %vm1975 = vmor %vm1973, %vm1974
      %v1976 = vsel %vm1975, %v1967, %v1972
      %v1977 = vrsqrt.pop %v1964
      %v1978 = vmul.f32 %v1977, %v1964
      %v1979 = vmul.f32 %v1978, %v1977
      %v1980 = vmul.f32 0.5, %v1979
      %v1981 = vsub.f32 1.5, %v1980
      %v1982 = vmul.f32 %v1977, %v1981
      %vm1983 = vweird.f32 %v1964
      %vm1984 = vweird.f32 %v1977
      %vm1985 = vmor %vm1983, %vm1984
      %v1986 = vsel %vm1985, %v1977, %v1982
      %v1987 = vrsqrt.pop %v1965
      %v1988 = vmul.f32 %v1987, %v1965
      %v1989 = vmul.f32 %v1988, %v1987
      %v1990 = vmul.f32 0.5, %v1989
      %v1991 = vsub.f32 1.5, %v1990
      %v1992 = vmul.f32 %v1987, %v1991
      %vm1993 = vweird.f32 %v1965
      %vm1994 = vweird.f32 %v1987
      %vm1995 = vmor %vm1993, %vm1994
      %v1996 = vsel %vm1995, %v1987, %v1992
      %v1997 = vrsqrt.pop %v1966
      %v1998 = vmul.f32 %v1997, %v1966
      %v1999 = vmul.f32 %v1998, %v1997
      %v2000 = vmul.f32 0.5, %v1999
      %v2001 = vsub.f32 1.5, %v2000
      %v2002 = vmul.f32 %v1997, %v2001
      %vm2003 = vweird.f32 %v1966
      %vm2004 = vweird.f32 %v1997
      %vm2005 = vmor %vm2003, %vm2004
      %v2006 = vsel %vm2005, %v1997, %v2002
      %v2007 = vmul.f32 %v1939, %v1976
      %v2008 = vmul.f32 %v1940, %v1986
      %v2009 = vmul.f32 %v1941, %v1996
      %v2010 = vmul.f32 %v1942, %v2006
      %v2011 = vmul.f32 %v2007, %v1921
      %v2012 = vmul.f32 %v2008, %v1921
      %v2013 = vmul.f32 %v2009, %v1921
      %v2014 = vmul.f32 %v2010, %v1921
      %v2015 = vadd.f32 %v2011, %v1922
      %v2016 = vadd.f32 %v2012, %v1922
      %v2017 = vadd.f32 %v2013, %v1922
      %v2018 = vadd.f32 %v2014, %v1922
      %v2019 = vld [vmem:[%s4 + $0x2c0] sm:$0xff]
      %v2020 = vld [vmem:[%s4 + $0x2c8] sm:$0xff]
      %v2021 = vld [vmem:[%s4 + $0x2d0] sm:$0xff]
      %v2022 = vld [vmem:[%s4 + $0x2d8] sm:$0xff]
      %v2023 = vld [vmem:[%s4 + $0x2e0] sm:$0xff]
      %v2024 = vld [vmem:[%s4 + $0x2e8] sm:$0xff]
      %v2025 = vld [vmem:[%s4 + $0x2f0] sm:$0xff]
      %v2026 = vld [vmem:[%s4 + $0x2f8] sm:$0xff]
      %s2027 = scalar_lea.vmem %s4, 768
      %v2028 = vld [vmem:[%s2027] ss:$8 sm:$0x3]
      %v2030 = vperm.slane %v2028, 0
      %v2031 = vperm.slane %v2028, 1
      %v2035 = vsel %vm321, %v2015, 0
      %v2038 = vsel %vm321, %v2016, 0
      %v2041 = vsel %vm321, %v2017, 0
      %v2044 = vsel %vm321, %v2018, 0
      %2046 = vmatpush.msra.mxu0 0.0
      %2047 = vmatpush.msra.mxu0 0.0
      %2048 = vmatpush.msra.mxu0 0.0
      %2049 = vmatpush.msra.mxu0 0.0
      %2050 = vmatpush.msra.mxu0 0.0
      %2051 = vmatpush.msra.mxu0 0.0
      %2052 = vmatpush.msra.mxu0 0.0
      %2053 = vmatpush.msra.mxu0 0.0
      %2054 = vmatpush.msra.mxu0 0.0
      %2055 = vmatpush.msra.mxu0 0.0
      %2056 = vmatpush.msra.mxu0 0.0
      %2057 = vmatpush.msra.mxu0 0.0
      %2058 = vmatpush.msra.mxu0 %v2025
      %2059 = vmatpush.msra.mxu0 %v2023
      %2060 = vmatpush.msra.mxu0 %v2021
      %2061 = vmatpush.msra.mxu0 %v2019
      %2062 = vmatmul.f32.gmra.mxu0 %v2035
      %v2063 = vpop.f32.mrf.mxu0
      %v2064 = vadd.f32 %v2030, %v2063
      %2065 = vmatmul.f32.gmra.mxu0 %v2038
      %v2066 = vpop.f32.mrf.mxu0
      %v2067 = vadd.f32 %v2030, %v2066
      %2068 = vmatmul.f32.gmra.mxu0 %v2041
      %v2069 = vpop.f32.mrf.mxu0
      %v2070 = vadd.f32 %v2030, %v2069
      %2071 = vmatmul.f32.gmra.mxu0 %v2044
      %v2072 = vpop.f32.mrf.mxu0
      %v2073 = vadd.f32 %v2030, %v2072
      %2074 = vdwg.mxu0
      %2075 = vmatpush.msra.mxu0 0.0
      %2076 = vmatpush.msra.mxu0 0.0
      %2077 = vmatpush.msra.mxu0 0.0
      %2078 = vmatpush.msra.mxu0 0.0
      %2079 = vmatpush.msra.mxu0 0.0
      %2080 = vmatpush.msra.mxu0 0.0
      %2081 = vmatpush.msra.mxu0 0.0
      %2082 = vmatpush.msra.mxu0 0.0
      %2083 = vmatpush.msra.mxu0 0.0
      %2084 = vmatpush.msra.mxu0 0.0
      %2085 = vmatpush.msra.mxu0 0.0
      %2086 = vmatpush.msra.mxu0 0.0
      %2087 = vmatpush.msra.mxu0 %v2026
      %2088 = vmatpush.msra.mxu0 %v2024
      %2089 = vmatpush.msra.mxu0 %v2022
      %2090 = vmatpush.msra.mxu0 %v2020
      %2091 = vmatmul.f32.gmra.mxu0 %v2035
      %v2092 = vpop.f32.mrf.mxu0
      %v2093 = vadd.f32 %v2031, %v2092
      %2094 = vmatmul.f32.gmra.mxu0 %v2038
      %v2095 = vpop.f32.mrf.mxu0
      %v2096 = vadd.f32 %v2031, %v2095
      %2097 = vmatmul.f32.gmra.mxu0 %v2041
      %v2098 = vpop.f32.mrf.mxu0
      %v2099 = vadd.f32 %v2031, %v2098
      %2100 = vmatmul.f32.gmra.mxu0 %v2044
      %v2101 = vpop.f32.mrf.mxu0
      %v2102 = vadd.f32 %v2031, %v2101
      %2103 = vdwg.mxu0
      %v2104 = vmul.f32 %v2064, %v242
      %v2105 = vmul.f32 %v2067, %v243
      %v2106 = vmul.f32 %v2070, %v244
      %v2107 = vmul.f32 %v2073, %v245
      %v2108 = vmul.f32 %v2064, %v546
      %v2109 = vmul.f32 %v2067, %v548
      %v2110 = vmul.f32 %v2070, %v550
      %v2111 = vmul.f32 %v2073, %v552
      %2116 = vrot.lane.b32.xlu0 %v2108, 96
      %v2117 = vpop.permute.xlu0 %2116
      %2118 = vrot.lane.b32.xlu0 %v2109, 96
      %v2119 = vpop.permute.xlu0 %2118
      %2120 = vrot.lane.b32.xlu0 %v2110, 96
      %v2121 = vpop.permute.xlu0 %2120
      %2122 = vrot.lane.b32.xlu0 %v2111, 96
      %v2123 = vpop.permute.xlu0 %2122
      %v2128 = vadd.f32 %v2104, %v2117
      %v2129 = vadd.f32 %v2105, %v2119
      %v2130 = vadd.f32 %v2106, %v2121
      %v2131 = vadd.f32 %v2107, %v2123
      %v2132 = vmul.f32 %v2064, %v586
      %v2133 = vmul.f32 %v2067, %v588
      %v2134 = vmul.f32 %v2070, %v590
      %v2135 = vmul.f32 %v2073, %v592
      %v2136 = vmul.f32 %v2064, %v602
      %v2137 = vmul.f32 %v2067, %v604
      %v2138 = vmul.f32 %v2070, %v606
      %v2139 = vmul.f32 %v2073, %v608
      %2144 = vrot.lane.b32.xlu0 %v2136, 96
      %v2145 = vpop.permute.xlu0 %2144
      %2146 = vrot.lane.b32.xlu0 %v2137, 96
      %v2147 = vpop.permute.xlu0 %2146
      %2148 = vrot.lane.b32.xlu0 %v2138, 96
      %v2149 = vpop.permute.xlu0 %2148
      %2150 = vrot.lane.b32.xlu0 %v2139, 96
      %v2151 = vpop.permute.xlu0 %2150
      %v2156 = vadd.f32 %v2132, %v2145
      %v2157 = vadd.f32 %v2133, %v2147
      %v2158 = vadd.f32 %v2134, %v2149
      %v2159 = vadd.f32 %v2135, %v2151
      %v2160 = vld [vmem:[%s4 + $0x310] sm:$0xff]
      %v2161 = vld [vmem:[%s4 + $0x320] sm:$0xff]
      %v2162 = vld [vmem:[%s4 + $0x330] sm:$0xff]
      %v2163 = vld [vmem:[%s4 + $0x340] sm:$0xff]
      %2168 = vrot.lane.b32.xlu0 %v2156, 64
      %v2169 = vpop.permute.xlu0 %2168
      %2170 = vrot.lane.b32.xlu0 %v2157, 64
      %v2171 = vpop.permute.xlu0 %2170
      %2172 = vrot.lane.b32.xlu0 %v2158, 64
      %v2173 = vpop.permute.xlu0 %2172
      %2174 = vrot.lane.b32.xlu0 %v2159, 64
      %v2175 = vpop.permute.xlu0 %2174
      %v2177 = vsel %vm653, %v2128, 0
      %v2180 = vsel %vm653, %v2129, 0
      %v2183 = vsel %vm653, %v2130, 0
      %v2186 = vsel %vm653, %v2131, 0
      %v2188 = vsel %vm653, %v2169, 0
      %v2190 = vsel %vm653, %v2171, 0
      %v2192 = vsel %vm653, %v2173, 0
      %v2194 = vsel %vm653, %v2175, 0
      %2196 = vmatpush.xpose.msra.mxu0 0.0
      %2197 = vmatpush.xpose.msra.mxu0 0.0
      %2198 = vmatpush.xpose.msra.mxu0 0.0
      %2199 = vmatpush.xpose.msra.mxu0 0.0
      %2200 = vmatpush.xpose.msra.mxu0 0.0
      %2201 = vmatpush.xpose.msra.mxu0 0.0
      %2202 = vmatpush.xpose.msra.mxu0 0.0
      %2203 = vmatpush.xpose.msra.mxu0 0.0
      %2204 = vmatpush.xpose.msra.mxu0 0.0
      %2205 = vmatpush.xpose.msra.mxu0 0.0
      %2206 = vmatpush.xpose.msra.mxu0 0.0
      %2207 = vmatpush.xpose.msra.mxu0 0.0
      %2208 = vmatpush.xpose.msra.mxu0 %v2194
      %2209 = vmatpush.xpose.msra.mxu0 %v2192
      %2210 = vmatpush.xpose.msra.mxu0 %v2190
      %2211 = vmatpush.xpose.msra.mxu0 %v2188
      %2212 = vmatmul.f32.gmra.mxu0 %v2177
      %v2213 = vpop.f32.mrf.mxu0
      %v2214 = vadd.f32 0.0, %v2213
      %2215 = vmatmul.f32.gmra.mxu0 %v2180
      %v2216 = vpop.f32.mrf.mxu0
      %v2217 = vadd.f32 0.0, %v2216
      %2218 = vmatmul.f32.gmra.mxu0 %v2183
      %v2219 = vpop.f32.mrf.mxu0
      %v2220 = vadd.f32 0.0, %v2219
      %2221 = vmatmul.f32.gmra.mxu0 %v2186
      %v2222 = vpop.f32.mrf.mxu0
      %v2223 = vadd.f32 0.0, %v2222
      %2224 = vdwg.mxu0
      %v2225 = vmul.f32 %v2214, 0.35355338
      %v2226 = vmul.f32 %v2217, 0.35355338
      %v2227 = vmul.f32 %v2220, 0.35355338
      %v2228 = vmul.f32 %v2223, 0.35355338
      %v2229 = vadd.f32 %v2225, %v250
      %v2230 = vadd.f32 %v2226, %v251
      %v2231 = vadd.f32 %v2227, %v252
      %v2232 = vadd.f32 %v2228, %v253
      %v2233 = vsel %vm321, %v2229, -inf
      %2234 = vmax.xlane.f32.xlu0 %v2233
      %v2235 = vpop.xlane.xlu0 %2234
      %v2236 = vsel %vm321, %v2230, -inf
      %2237 = vmax.xlane.f32.xlu0 %v2236
      %v2238 = vpop.xlane.xlu0 %2237
      %v2239 = vsel %vm321, %v2231, -inf
      %2240 = vmax.xlane.f32.xlu0 %v2239
      %v2241 = vpop.xlane.xlu0 %2240
      %v2242 = vsel %vm321, %v2232, -inf
      %2243 = vmax.xlane.f32.xlu0 %v2242
      %v2244 = vpop.xlane.xlu0 %2243
      %v2245 = vsub.f32 %v2229, %v2235
      %v2246 = vsub.f32 %v2230, %v2238
      %v2247 = vsub.f32 %v2231, %v2241
      %v2248 = vsub.f32 %v2232, %v2244
      %v2249 = vmul.f32 %v2245, 1.442695
      %v2250 = vpow.pop %v2249
      %v2251 = vmul.f32 %v2246, 1.442695
      %v2252 = vpow.pop %v2251
      %v2253 = vmul.f32 %v2247, 1.442695
      %v2254 = vpow.pop %v2253
      %v2255 = vmul.f32 %v2248, 1.442695
      %v2256 = vpow.pop %v2255
      %v2257 = vsel %vm321, %v2250, 0.0
      %2258 = vadd.xlane.f32.xlu0 %v2257
      %v2259 = vpop.xlane.xlu0 %2258
      %v2260 = vsel %vm321, %v2252, 0.0
      %2261 = vadd.xlane.f32.xlu0 %v2260
      %v2262 = vpop.xlane.xlu0 %2261
      %v2263 = vsel %vm321, %v2254, 0.0
      %2264 = vadd.xlane.f32.xlu0 %v2263
      %v2265 = vpop.xlane.xlu0 %2264
      %v2266 = vsel %vm321, %v2256, 0.0
      %2267 = vadd.xlane.f32.xlu0 %v2266
      %v2268 = vpop.xlane.xlu0 %2267
      %v2269 = vrcp.pop %v2259
      %v2270 = vmul.f32 %v2259, %v2269
      %v2271 = vsub.f32 1.0, %v2270
      %v2272 = vmul.f32 %v2269, %v2271
      %v2273 = vadd.f32 %v2269, %v2272
      %vm2274 = vweird.f32 %v2259
      %vm2275 = vweird.f32 %v2269
      %vm2276 = vmor %vm2274, %vm2275
      %v2277 = vsel %vm2276, %v2269, %v2273
      %v2278 = vand.u32 2147483647, %v2259
      %vm2279 = vcmp.eq.f32.partialorder %v2278, 8.507059e+37
      %v2280 = vand.u32 %v2259, 2147483648
      %v2281 = vor.u32 1.1754944e-38, %v2280
      %v2282 = vsel %vm2279, %v2281, %v2277
      %v2283 = vmul.f32 %v2250, %v2282
      %v2284 = vrcp.pop %v2262
      %v2285 = vmul.f32 %v2262, %v2284
      %v2286 = vsub.f32 1.0, %v2285
      %v2287 = vmul.f32 %v2284, %v2286
      %v2288 = vadd.f32 %v2284, %v2287
      %vm2289 = vweird.f32 %v2262
      %vm2290 = vweird.f32 %v2284
      %vm2291 = vmor %vm2289, %vm2290
      %v2292 = vsel %vm2291, %v2284, %v2288
      %v2293 = vand.u32 2147483647, %v2262
      %vm2294 = vcmp.eq.f32.partialorder %v2293, 8.507059e+37
      %v2295 = vand.u32 %v2262, 2147483648
      %v2296 = vor.u32 1.1754944e-38, %v2295
      %v2297 = vsel %vm2294, %v2296, %v2292
      %v2298 = vmul.f32 %v2252, %v2297
      %v2299 = vrcp.pop %v2265
      %v2300 = vmul.f32 %v2265, %v2299
      %v2301 = vsub.f32 1.0, %v2300
      %v2302 = vmul.f32 %v2299, %v2301
      %v2303 = vadd.f32 %v2299, %v2302
      %vm2304 = vweird.f32 %v2265
      %vm2305 = vweird.f32 %v2299
      %vm2306 = vmor %vm2304, %vm2305
      %v2307 = vsel %vm2306, %v2299, %v2303
      %v2308 = vand.u32 2147483647, %v2265
      %vm2309 = vcmp.eq.f32.partialorder %v2308, 8.507059e+37
      %v2310 = vand.u32 %v2265, 2147483648
      %v2311 = vor.u32 1.1754944e-38, %v2310
      %v2312 = vsel %vm2309, %v2311, %v2307
      %v2313 = vmul.f32 %v2254, %v2312
      %v2314 = vrcp.pop %v2268
      %v2315 = vmul.f32 %v2268, %v2314
      %v2316 = vsub.f32 1.0, %v2315
      %v2317 = vmul.f32 %v2314, %v2316
      %v2318 = vadd.f32 %v2314, %v2317
      %vm2319 = vweird.f32 %v2268
      %vm2320 = vweird.f32 %v2314
      %vm2321 = vmor %vm2319, %vm2320
      %v2322 = vsel %vm2321, %v2314, %v2318
      %v2323 = vand.u32 2147483647, %v2268
      %vm2324 = vcmp.eq.f32.partialorder %v2323, 8.507059e+37
      %v2325 = vand.u32 %v2268, 2147483648
      %v2326 = vor.u32 1.1754944e-38, %v2325
      %v2327 = vsel %vm2324, %v2326, %v2322
      %v2328 = vmul.f32 %v2256, %v2327
      %v2330 = vsel %vm321, %v2283, 0
      %v2333 = vsel %vm321, %v2298, 0
      %v2336 = vsel %vm321, %v2313, 0
      %v2339 = vsel %vm321, %v2328, 0
      %2341 = vmatpush.msra.mxu0 0.0
      %2342 = vmatpush.msra.mxu0 0.0
      %2343 = vmatpush.msra.mxu0 0.0
      %2344 = vmatpush.msra.mxu0 0.0
      %2345 = vmatpush.msra.mxu0 0.0
      %2346 = vmatpush.msra.mxu0 0.0
      %2347 = vmatpush.msra.mxu0 0.0
      %2348 = vmatpush.msra.mxu0 0.0
      %2349 = vmatpush.msra.mxu0 0.0
      %2350 = vmatpush.msra.mxu0 0.0
      %2351 = vmatpush.msra.mxu0 0.0
      %2352 = vmatpush.msra.mxu0 0.0
      %2353 = vmatpush.msra.mxu0 %v2102
      %2354 = vmatpush.msra.mxu0 %v2099
      %2355 = vmatpush.msra.mxu0 %v2096
      %2356 = vmatpush.msra.mxu0 %v2093
      %2357 = vmatmul.f32.gmra.mxu0 %v2330
      %v2358 = vpop.f32.mrf.mxu0
      %v2359 = vadd.f32 0.0, %v2358
      %2360 = vmatmul.f32.gmra.mxu0 %v2333
      %v2361 = vpop.f32.mrf.mxu0
      %v2362 = vadd.f32 0.0, %v2361
      %2363 = vmatmul.f32.gmra.mxu0 %v2336
      %v2364 = vpop.f32.mrf.mxu0
      %v2365 = vadd.f32 0.0, %v2364
      %2366 = vmatmul.f32.gmra.mxu0 %v2339
      %v2367 = vpop.f32.mrf.mxu0
      %v2368 = vadd.f32 0.0, %v2367
      %2369 = vdwg.mxu0
      %2370 = vrot.lane.b32.xlu0 %v2128, 120
      %v2371 = vpop.permute.xlu0 %2370
      %2372 = vrot.lane.b32.xlu0 %v2129, 120
      %v2373 = vpop.permute.xlu0 %2372
      %2374 = vrot.lane.b32.xlu0 %v2130, 120
      %v2375 = vpop.permute.xlu0 %2374
      %2376 = vrot.lane.b32.xlu0 %v2131, 120
      %v2377 = vpop.permute.xlu0 %2376
      %2378 = vrot.lane.b32.xlu0 %v2156, 56
      %v2379 = vpop.permute.xlu0 %2378
      %2380 = vrot.lane.b32.xlu0 %v2157, 56
      %v2381 = vpop.permute.xlu0 %2380
      %2382 = vrot.lane.b32.xlu0 %v2158, 56
      %v2383 = vpop.permute.xlu0 %2382
      %2384 = vrot.lane.b32.xlu0 %v2159, 56
      %v2385 = vpop.permute.xlu0 %2384
      %v2386 = vsel %vm653, %v2371, 0
      %v2388 = vsel %vm653, %v2373, 0
      %v2390 = vsel %vm653, %v2375, 0
      %v2392 = vsel %vm653, %v2377, 0
      %v2394 = vsel %vm653, %v2379, 0
      %v2396 = vsel %vm653, %v2381, 0
      %v2398 = vsel %vm653, %v2383, 0
      %v2400 = vsel %vm653, %v2385, 0
      %2402 = vmatpush.xpose.msra.mxu0 0.0
      %2403 = vmatpush.xpose.msra.mxu0 0.0
      %2404 = vmatpush.xpose.msra.mxu0 0.0
      %2405 = vmatpush.xpose.msra.mxu0 0.0
      %2406 = vmatpush.xpose.msra.mxu0 0.0
      %2407 = vmatpush.xpose.msra.mxu0 0.0
      %2408 = vmatpush.xpose.msra.mxu0 0.0
      %2409 = vmatpush.xpose.msra.mxu0 0.0
      %2410 = vmatpush.xpose.msra.mxu0 0.0
      %2411 = vmatpush.xpose.msra.mxu0 0.0
      %2412 = vmatpush.xpose.msra.mxu0 0.0
      %2413 = vmatpush.xpose.msra.mxu0 0.0
      %2414 = vmatpush.xpose.msra.mxu0 %v2400
      %2415 = vmatpush.xpose.msra.mxu0 %v2398
      %2416 = vmatpush.xpose.msra.mxu0 %v2396
      %2417 = vmatpush.xpose.msra.mxu0 %v2394
      %2418 = vmatmul.f32.gmra.mxu0 %v2386
      %v2419 = vpop.f32.mrf.mxu0
      %v2420 = vadd.f32 0.0, %v2419
      %2421 = vmatmul.f32.gmra.mxu0 %v2388
      %v2422 = vpop.f32.mrf.mxu0
      %v2423 = vadd.f32 0.0, %v2422
      %2424 = vmatmul.f32.gmra.mxu0 %v2390
      %v2425 = vpop.f32.mrf.mxu0
      %v2426 = vadd.f32 0.0, %v2425
      %2427 = vmatmul.f32.gmra.mxu0 %v2392
      %v2428 = vpop.f32.mrf.mxu0
      %v2429 = vadd.f32 0.0, %v2428
      %2430 = vdwg.mxu0
      %v2431 = vmul.f32 %v2420, 0.35355338
      %v2432 = vmul.f32 %v2423, 0.35355338
      %v2433 = vmul.f32 %v2426, 0.35355338
      %v2434 = vmul.f32 %v2429, 0.35355338
      %v2435 = vadd.f32 %v2431, %v250
      %v2436 = vadd.f32 %v2432, %v251
      %v2437 = vadd.f32 %v2433, %v252
      %v2438 = vadd.f32 %v2434, %v253
      %v2439 = vsel %vm321, %v2435, -inf
      %2440 = vmax.xlane.f32.xlu0 %v2439
      %v2441 = vpop.xlane.xlu0 %2440
      %v2442 = vsel %vm321, %v2436, -inf
      %2443 = vmax.xlane.f32.xlu0 %v2442
      %v2444 = vpop.xlane.xlu0 %2443
      %v2445 = vsel %vm321, %v2437, -inf
      %2446 = vmax.xlane.f32.xlu0 %v2445
      %v2447 = vpop.xlane.xlu0 %2446
      %v2448 = vsel %vm321, %v2438, -inf
      %2449 = vmax.xlane.f32.xlu0 %v2448
      %v2450 = vpop.xlane.xlu0 %2449
      %v2451 = vsub.f32 %v2435, %v2441
      %v2452 = vsub.f32 %v2436, %v2444
      %v2453 = vsub.f32 %v2437, %v2447
      %v2454 = vsub.f32 %v2438, %v2450
      %v2455 = vmul.f32 %v2451, 1.442695
      %v2456 = vpow.pop %v2455
      %v2457 = vmul.f32 %v2452, 1.442695
      %v2458 = vpow.pop %v2457
      %v2459 = vmul.f32 %v2453, 1.442695
      %v2460 = vpow.pop %v2459
      %v2461 = vmul.f32 %v2454, 1.442695
      %v2462 = vpow.pop %v2461
      %v2463 = vsel %vm321, %v2456, 0.0
      %2464 = vadd.xlane.f32.xlu0 %v2463
      %v2465 = vpop.xlane.xlu0 %2464
      %v2466 = vsel %vm321, %v2458, 0.0
      %2467 = vadd.xlane.f32.xlu0 %v2466
      %v2468 = vpop.xlane.xlu0 %2467
      %v2469 = vsel %vm321, %v2460, 0.0
      %2470 = vadd.xlane.f32.xlu0 %v2469
      %v2471 = vpop.xlane.xlu0 %2470
      %v2472 = vsel %vm321, %v2462, 0.0
      %2473 = vadd.xlane.f32.xlu0 %v2472
      %v2474 = vpop.xlane.xlu0 %2473
      %v2475 = vrcp.pop %v2465
      %v2476 = vmul.f32 %v2465, %v2475
      %v2477 = vsub.f32 1.0, %v2476
      %v2478 = vmul.f32 %v2475, %v2477
      %v2479 = vadd.f32 %v2475, %v2478
      %vm2480 = vweird.f32 %v2465
      %vm2481 = vweird.f32 %v2475
      %vm2482 = vmor %vm2480, %vm2481
      %v2483 = vsel %vm2482, %v2475, %v2479
      %v2484 = vand.u32 2147483647, %v2465
      %vm2485 = vcmp.eq.f32.partialorder %v2484, 8.507059e+37
      %v2486 = vand.u32 %v2465, 2147483648
      %v2487 = vor.u32 1.1754944e-38, %v2486
      %v2488 = vsel %vm2485, %v2487, %v2483
      %v2489 = vmul.f32 %v2456, %v2488
      %v2490 = vrcp.pop %v2468
      %v2491 = vmul.f32 %v2468, %v2490
      %v2492 = vsub.f32 1.0, %v2491
      %v2493 = vmul.f32 %v2490, %v2492
      %v2494 = vadd.f32 %v2490, %v2493
      %vm2495 = vweird.f32 %v2468
      %vm2496 = vweird.f32 %v2490
      %vm2497 = vmor %vm2495, %vm2496
      %v2498 = vsel %vm2497, %v2490, %v2494
      %v2499 = vand.u32 2147483647, %v2468
      %vm2500 = vcmp.eq.f32.partialorder %v2499, 8.507059e+37
      %v2501 = vand.u32 %v2468, 2147483648
      %v2502 = vor.u32 1.1754944e-38, %v2501
      %v2503 = vsel %vm2500, %v2502, %v2498
      %v2504 = vmul.f32 %v2458, %v2503
      %v2505 = vrcp.pop %v2471
      %v2506 = vmul.f32 %v2471, %v2505
      %v2507 = vsub.f32 1.0, %v2506
      %v2508 = vmul.f32 %v2505, %v2507
      %v2509 = vadd.f32 %v2505, %v2508
      %vm2510 = vweird.f32 %v2471
      %vm2511 = vweird.f32 %v2505
      %vm2512 = vmor %vm2510, %vm2511
      %v2513 = vsel %vm2512, %v2505, %v2509
      %v2514 = vand.u32 2147483647, %v2471
      %vm2515 = vcmp.eq.f32.partialorder %v2514, 8.507059e+37
      %v2516 = vand.u32 %v2471, 2147483648
      %v2517 = vor.u32 1.1754944e-38, %v2516
      %v2518 = vsel %vm2515, %v2517, %v2513
      %v2519 = vmul.f32 %v2460, %v2518
      %v2520 = vrcp.pop %v2474
      %v2521 = vmul.f32 %v2474, %v2520
      %v2522 = vsub.f32 1.0, %v2521
      %v2523 = vmul.f32 %v2520, %v2522
      %v2524 = vadd.f32 %v2520, %v2523
      %vm2525 = vweird.f32 %v2474
      %vm2526 = vweird.f32 %v2520
      %vm2527 = vmor %vm2525, %vm2526
      %v2528 = vsel %vm2527, %v2520, %v2524
      %v2529 = vand.u32 2147483647, %v2474
      %vm2530 = vcmp.eq.f32.partialorder %v2529, 8.507059e+37
      %v2531 = vand.u32 %v2474, 2147483648
      %v2532 = vor.u32 1.1754944e-38, %v2531
      %v2533 = vsel %vm2530, %v2532, %v2528
      %v2534 = vmul.f32 %v2462, %v2533
      %2539 = vrot.lane.b32.xlu0 %v2093, 120
      %v2540 = vpop.permute.xlu0 %2539
      %2541 = vrot.lane.b32.xlu0 %v2096, 120
      %v2542 = vpop.permute.xlu0 %2541
      %2543 = vrot.lane.b32.xlu0 %v2099, 120
      %v2544 = vpop.permute.xlu0 %2543
      %2545 = vrot.lane.b32.xlu0 %v2102, 120
      %v2546 = vpop.permute.xlu0 %2545
      %v2552 = vsel %vm321, %v2489, 0
      %v2555 = vsel %vm321, %v2504, 0
      %v2558 = vsel %vm321, %v2519, 0
      %v2561 = vsel %vm321, %v2534, 0
      %2563 = vmatpush.msra.mxu0 0.0
      %2564 = vmatpush.msra.mxu0 0.0
      %2565 = vmatpush.msra.mxu0 0.0
      %2566 = vmatpush.msra.mxu0 0.0
      %2567 = vmatpush.msra.mxu0 0.0
      %2568 = vmatpush.msra.mxu0 0.0
      %2569 = vmatpush.msra.mxu0 0.0
      %2570 = vmatpush.msra.mxu0 0.0
      %2571 = vmatpush.msra.mxu0 0.0
      %2572 = vmatpush.msra.mxu0 0.0
      %2573 = vmatpush.msra.mxu0 0.0
      %2574 = vmatpush.msra.mxu0 0.0
      %2575 = vmatpush.msra.mxu0 %v2546
      %2576 = vmatpush.msra.mxu0 %v2544
      %2577 = vmatpush.msra.mxu0 %v2542
      %2578 = vmatpush.msra.mxu0 %v2540
      %2579 = vmatmul.f32.gmra.mxu0 %v2552
      %v2580 = vpop.f32.mrf.mxu0
      %v2581 = vadd.f32 0.0, %v2580
      %2582 = vmatmul.f32.gmra.mxu0 %v2555
      %v2583 = vpop.f32.mrf.mxu0
      %v2584 = vadd.f32 0.0, %v2583
      %2585 = vmatmul.f32.gmra.mxu0 %v2558
      %v2586 = vpop.f32.mrf.mxu0
      %v2587 = vadd.f32 0.0, %v2586
      %2588 = vmatmul.f32.gmra.mxu0 %v2561
      %v2589 = vpop.f32.mrf.mxu0
      %v2590 = vadd.f32 0.0, %v2589
      %2591 = vdwg.mxu0
      %v2593 = vsel %vm653, %v2581, 0
      %v2596 = vsel %vm653, %v2584, 0
      %v2599 = vsel %vm653, %v2587, 0
      %v2602 = vsel %vm653, %v2590, 0
      %2604 = vmatpush.msra.mxu0 0.0
      %2605 = vmatpush.msra.mxu0 0.0
      %2606 = vmatpush.msra.mxu0 0.0
      %2607 = vmatpush.msra.mxu0 0.0
      %2608 = vmatpush.msra.mxu0 0.0
      %2609 = vmatpush.msra.mxu0 0.0
      %2610 = vmatpush.msra.mxu0 0.0
      %2611 = vmatpush.msra.mxu0 0.0
      %2612 = vmatpush.msra.mxu0 0.0
      %2613 = vmatpush.msra.mxu0 0.0
      %2614 = vmatpush.msra.mxu0 0.0
      %2615 = vmatpush.msra.mxu0 0.0
      %2616 = vmatpush.msra.mxu0 0.0
      %2617 = vmatpush.msra.mxu0 0.0
      %2618 = vmatpush.msra.mxu0 0.0
      %2619 = vmatpush.msra.mxu0 %v2161
      %2620 = vmatmul.f32.gmra.mxu0 %v2593
      %v2621 = vpop.f32.mrf.mxu0
      %v2622 = vadd.f32 0.0, %v2621
      %2623 = vmatmul.f32.gmra.mxu0 %v2596
      %v2624 = vpop.f32.mrf.mxu0
      %v2625 = vadd.f32 0.0, %v2624
      %2626 = vmatmul.f32.gmra.mxu0 %v2599
      %v2627 = vpop.f32.mrf.mxu0
      %v2628 = vadd.f32 0.0, %v2627
      %2629 = vmatmul.f32.gmra.mxu0 %v2602
      %v2630 = vpop.f32.mrf.mxu0
      %v2631 = vadd.f32 0.0, %v2630
      %2632 = vdwg.mxu0
      %v2634 = vsel %vm653, %v2359, 0
      %v2637 = vsel %vm653, %v2362, 0
      %v2640 = vsel %vm653, %v2365, 0
      %v2643 = vsel %vm653, %v2368, 0
      %2645 = vmatpush.msra.mxu0 0.0
      %2646 = vmatpush.msra.mxu0 0.0
      %2647 = vmatpush.msra.mxu0 0.0
      %2648 = vmatpush.msra.mxu0 0.0
      %2649 = vmatpush.msra.mxu0 0.0
      %2650 = vmatpush.msra.mxu0 0.0
      %2651 = vmatpush.msra.mxu0 0.0
      %2652 = vmatpush.msra.mxu0 0.0
      %2653 = vmatpush.msra.mxu0 0.0
      %2654 = vmatpush.msra.mxu0 0.0
      %2655 = vmatpush.msra.mxu0 0.0
      %2656 = vmatpush.msra.mxu0 0.0
      %2657 = vmatpush.msra.mxu0 0.0
      %2658 = vmatpush.msra.mxu0 0.0
      %2659 = vmatpush.msra.mxu0 0.0
      %2660 = vmatpush.msra.mxu0 %v2160
      %2661 = vmatmul.f32.gmra.mxu0 %v2634
      %v2662 = vpop.f32.mrf.mxu0
      %v2663 = vadd.f32 %v2622, %v2662
      %2664 = vmatmul.f32.gmra.mxu0 %v2637
      %v2665 = vpop.f32.mrf.mxu0
      %v2666 = vadd.f32 %v2625, %v2665
      %2667 = vmatmul.f32.gmra.mxu0 %v2640
      %v2668 = vpop.f32.mrf.mxu0
      %v2669 = vadd.f32 %v2628, %v2668
      %2670 = vmatmul.f32.gmra.mxu0 %v2643
      %v2671 = vpop.f32.mrf.mxu0
      %v2672 = vadd.f32 %v2631, %v2671
      %2673 = vdwg.mxu0
      %2674 = vrot.lane.b32.xlu0 %v2128, 112
      %v2675 = vpop.permute.xlu0 %2674
      %2676 = vrot.lane.b32.xlu0 %v2129, 112
      %v2677 = vpop.permute.xlu0 %2676
      %2678 = vrot.lane.b32.xlu0 %v2130, 112
      %v2679 = vpop.permute.xlu0 %2678
      %2680 = vrot.lane.b32.xlu0 %v2131, 112
      %v2681 = vpop.permute.xlu0 %2680
      %2682 = vrot.lane.b32.xlu0 %v2156, 48
      %v2683 = vpop.permute.xlu0 %2682
      %2684 = vrot.lane.b32.xlu0 %v2157, 48
      %v2685 = vpop.permute.xlu0 %2684
      %2686 = vrot.lane.b32.xlu0 %v2158, 48
      %v2687 = vpop.permute.xlu0 %2686
      %2688 = vrot.lane.b32.xlu0 %v2159, 48
      %v2689 = vpop.permute.xlu0 %2688
      %v2690 = vsel %vm653, %v2675, 0
      %v2692 = vsel %vm653, %v2677, 0
      %v2694 = vsel %vm653, %v2679, 0
      %v2696 = vsel %vm653, %v2681, 0
      %v2698 = vsel %vm653, %v2683, 0
      %v2700 = vsel %vm653, %v2685, 0
      %v2702 = vsel %vm653, %v2687, 0
      %v2704 = vsel %vm653, %v2689, 0
      %2706 = vmatpush.xpose.msra.mxu0 0.0
      %2707 = vmatpush.xpose.msra.mxu0 0.0
      %2708 = vmatpush.xpose.msra.mxu0 0.0
      %2709 = vmatpush.xpose.msra.mxu0 0.0
      %2710 = vmatpush.xpose.msra.mxu0 0.0
      %2711 = vmatpush.xpose.msra.mxu0 0.0
      %2712 = vmatpush.xpose.msra.mxu0 0.0
      %2713 = vmatpush.xpose.msra.mxu0 0.0
      %2714 = vmatpush.xpose.msra.mxu0 0.0
      %2715 = vmatpush.xpose.msra.mxu0 0.0
      %2716 = vmatpush.xpose.msra.mxu0 0.0
      %2717 = vmatpush.xpose.msra.mxu0 0.0
      %2718 = vmatpush.xpose.msra.mxu0 %v2704
      %2719 = vmatpush.xpose.msra.mxu0 %v2702
      %2720 = vmatpush.xpose.msra.mxu0 %v2700
      %2721 = vmatpush.xpose.msra.mxu0 %v2698
      %2722 = vmatmul.f32.gmra.mxu0 %v2690
      %v2723 = vpop.f32.mrf.mxu0
      %v2724 = vadd.f32 0.0, %v2723
      %2725 = vmatmul.f32.gmra.mxu0 %v2692
      %v2726 = vpop.f32.mrf.mxu0
      %v2727 = vadd.f32 0.0, %v2726
      %2728 = vmatmul.f32.gmra.mxu0 %v2694
      %v2729 = vpop.f32.mrf.mxu0
      %v2730 = vadd.f32 0.0, %v2729
      %2731 = vmatmul.f32.gmra.mxu0 %v2696
      %v2732 = vpop.f32.mrf.mxu0
      %v2733 = vadd.f32 0.0, %v2732
      %2734 = vdwg.mxu0
      %v2735 = vmul.f32 %v2724, 0.35355338
      %v2736 = vmul.f32 %v2727, 0.35355338
      %v2737 = vmul.f32 %v2730, 0.35355338
      %v2738 = vmul.f32 %v2733, 0.35355338
      %v2739 = vadd.f32 %v2735, %v250
      %v2740 = vadd.f32 %v2736, %v251
      %v2741 = vadd.f32 %v2737, %v252
      %v2742 = vadd.f32 %v2738, %v253
      %v2743 = vsel %vm321, %v2739, -inf
      %2744 = vmax.xlane.f32.xlu0 %v2743
      %v2745 = vpop.xlane.xlu0 %2744
      %v2746 = vsel %vm321, %v2740, -inf
      %2747 = vmax.xlane.f32.xlu0 %v2746
      %v2748 = vpop.xlane.xlu0 %2747
      %v2749 = vsel %vm321, %v2741, -inf
      %2750 = vmax.xlane.f32.xlu0 %v2749
      %v2751 = vpop.xlane.xlu0 %2750
      %v2752 = vsel %vm321, %v2742, -inf
      %2753 = vmax.xlane.f32.xlu0 %v2752
      %v2754 = vpop.xlane.xlu0 %2753
      %v2755 = vsub.f32 %v2739, %v2745
      %v2756 = vsub.f32 %v2740, %v2748
      %v2757 = vsub.f32 %v2741, %v2751
      %v2758 = vsub.f32 %v2742, %v2754
      %v2759 = vmul.f32 %v2755, 1.442695
      %v2760 = vpow.pop %v2759
      %v2761 = vmul.f32 %v2756, 1.442695
      %v2762 = vpow.pop %v2761
      %v2763 = vmul.f32 %v2757, 1.442695
      %v2764 = vpow.pop %v2763
      %v2765 = vmul.f32 %v2758, 1.442695
      %v2766 = vpow.pop %v2765
      %v2767 = vsel %vm321, %v2760, 0.0
      %2768 = vadd.xlane.f32.xlu0 %v2767
      %v2769 = vpop.xlane.xlu0 %2768
      %v2770 = vsel %vm321, %v2762, 0.0
      %2771 = vadd.xlane.f32.xlu0 %v2770
      %v2772 = vpop.xlane.xlu0 %2771
      %v2773 = vsel %vm321, %v2764, 0.0
      %2774 = vadd.xlane.f32.xlu0 %v2773
      %v2775 = vpop.xlane.xlu0 %2774
      %v2776 = vsel %vm321, %v2766, 0.0
      %2777 = vadd.xlane.f32.xlu0 %v2776
      %v2778 = vpop.xlane.xlu0 %2777
      %v2779 = vrcp.pop %v2769
      %v2780 = vmul.f32 %v2769, %v2779
      %v2781 = vsub.f32 1.0, %v2780
      %v2782 = vmul.f32 %v2779, %v2781
      %v2783 = vadd.f32 %v2779, %v2782
      %vm2784 = vweird.f32 %v2769
      %vm2785 = vweird.f32 %v2779
      %vm2786 = vmor %vm2784, %vm2785
      %v2787 = vsel %vm2786, %v2779, %v2783
      %v2788 = vand.u32 2147483647, %v2769
      %vm2789 = vcmp.eq.f32.partialorder %v2788, 8.507059e+37
      %v2790 = vand.u32 %v2769, 2147483648
      %v2791 = vor.u32 1.1754944e-38, %v2790
      %v2792 = vsel %vm2789, %v2791, %v2787
      %v2793 = vmul.f32 %v2760, %v2792
      %v2794 = vrcp.pop %v2772
      %v2795 = vmul.f32 %v2772, %v2794
      %v2796 = vsub.f32 1.0, %v2795
      %v2797 = vmul.f32 %v2794, %v2796
      %v2798 = vadd.f32 %v2794, %v2797
      %vm2799 = vweird.f32 %v2772
      %vm2800 = vweird.f32 %v2794
      %vm2801 = vmor %vm2799, %vm2800
      %v2802 = vsel %vm2801, %v2794, %v2798
      %v2803 = vand.u32 2147483647, %v2772
      %vm2804 = vcmp.eq.f32.partialorder %v2803, 8.507059e+37
      %v2805 = vand.u32 %v2772, 2147483648
      %v2806 = vor.u32 1.1754944e-38, %v2805
      %v2807 = vsel %vm2804, %v2806, %v2802
      %v2808 = vmul.f32 %v2762, %v2807
      %v2809 = vrcp.pop %v2775
      %v2810 = vmul.f32 %v2775, %v2809
      %v2811 = vsub.f32 1.0, %v2810
      %v2812 = vmul.f32 %v2809, %v2811
      %v2813 = vadd.f32 %v2809, %v2812
      %vm2814 = vweird.f32 %v2775
      %vm2815 = vweird.f32 %v2809
      %vm2816 = vmor %vm2814, %vm2815
      %v2817 = vsel %vm2816, %v2809, %v2813
      %v2818 = vand.u32 2147483647, %v2775
      %vm2819 = vcmp.eq.f32.partialorder %v2818, 8.507059e+37
      %v2820 = vand.u32 %v2775, 2147483648
      %v2821 = vor.u32 1.1754944e-38, %v2820
      %v2822 = vsel %vm2819, %v2821, %v2817
      %v2823 = vmul.f32 %v2764, %v2822
      %v2824 = vrcp.pop %v2778
      %v2825 = vmul.f32 %v2778, %v2824
      %v2826 = vsub.f32 1.0, %v2825
      %v2827 = vmul.f32 %v2824, %v2826
      %v2828 = vadd.f32 %v2824, %v2827
      %vm2829 = vweird.f32 %v2778
      %vm2830 = vweird.f32 %v2824
      %vm2831 = vmor %vm2829, %vm2830
      %v2832 = vsel %vm2831, %v2824, %v2828
      %v2833 = vand.u32 2147483647, %v2778
      %vm2834 = vcmp.eq.f32.partialorder %v2833, 8.507059e+37
      %v2835 = vand.u32 %v2778, 2147483648
      %v2836 = vor.u32 1.1754944e-38, %v2835
      %v2837 = vsel %vm2834, %v2836, %v2832
      %v2838 = vmul.f32 %v2766, %v2837
      %2839 = vrot.lane.b32.xlu0 %v2093, 112
      %v2840 = vpop.permute.xlu0 %2839
      %2841 = vrot.lane.b32.xlu0 %v2096, 112
      %v2842 = vpop.permute.xlu0 %2841
      %2843 = vrot.lane.b32.xlu0 %v2099, 112
      %v2844 = vpop.permute.xlu0 %2843
      %2845 = vrot.lane.b32.xlu0 %v2102, 112
      %v2846 = vpop.permute.xlu0 %2845
      %v2852 = vsel %vm321, %v2793, 0
      %v2855 = vsel %vm321, %v2808, 0
      %v2858 = vsel %vm321, %v2823, 0
      %v2861 = vsel %vm321, %v2838, 0
      %2863 = vmatpush.msra.mxu0 0.0
      %2864 = vmatpush.msra.mxu0 0.0
      %2865 = vmatpush.msra.mxu0 0.0
      %2866 = vmatpush.msra.mxu0 0.0
      %2867 = vmatpush.msra.mxu0 0.0
      %2868 = vmatpush.msra.mxu0 0.0
      %2869 = vmatpush.msra.mxu0 0.0
      %2870 = vmatpush.msra.mxu0 0.0
      %2871 = vmatpush.msra.mxu0 0.0
      %2872 = vmatpush.msra.mxu0 0.0
      %2873 = vmatpush.msra.mxu0 0.0
      %2874 = vmatpush.msra.mxu0 0.0
      %2875 = vmatpush.msra.mxu0 %v2846
      %2876 = vmatpush.msra.mxu0 %v2844
      %2877 = vmatpush.msra.mxu0 %v2842
      %2878 = vmatpush.msra.mxu0 %v2840
      %2879 = vmatmul.f32.gmra.mxu0 %v2852
      %v2880 = vpop.f32.mrf.mxu0
      %v2881 = vadd.f32 0.0, %v2880
      %2882 = vmatmul.f32.gmra.mxu0 %v2855
      %v2883 = vpop.f32.mrf.mxu0
      %v2884 = vadd.f32 0.0, %v2883
      %2885 = vmatmul.f32.gmra.mxu0 %v2858
      %v2886 = vpop.f32.mrf.mxu0
      %v2887 = vadd.f32 0.0, %v2886
      %2888 = vmatmul.f32.gmra.mxu0 %v2861
      %v2889 = vpop.f32.mrf.mxu0
      %v2890 = vadd.f32 0.0, %v2889
      %2891 = vdwg.mxu0
      %v2893 = vsel %vm653, %v2881, 0
      %v2896 = vsel %vm653, %v2884, 0
      %v2899 = vsel %vm653, %v2887, 0
      %v2902 = vsel %vm653, %v2890, 0
      %2904 = vmatpush.msra.mxu0 0.0
      %2905 = vmatpush.msra.mxu0 0.0
      %2906 = vmatpush.msra.mxu0 0.0
      %2907 = vmatpush.msra.mxu0 0.0
      %2908 = vmatpush.msra.mxu0 0.0
      %2909 = vmatpush.msra.mxu0 0.0
      %2910 = vmatpush.msra.mxu0 0.0
      %2911 = vmatpush.msra.mxu0 0.0
      %2912 = vmatpush.msra.mxu0 0.0
      %2913 = vmatpush.msra.mxu0 0.0
      %2914 = vmatpush.msra.mxu0 0.0
      %2915 = vmatpush.msra.mxu0 0.0
      %2916 = vmatpush.msra.mxu0 0.0
      %2917 = vmatpush.msra.mxu0 0.0
      %2918 = vmatpush.msra.mxu0 0.0
      %2919 = vmatpush.msra.mxu0 %v2162
      %2920 = vmatmul.f32.gmra.mxu0 %v2893
      %v2921 = vpop.f32.mrf.mxu0
      %v2922 = vadd.f32 0.0, %v2921
      %2923 = vmatmul.f32.gmra.mxu0 %v2896
      %v2924 = vpop.f32.mrf.mxu0
      %v2925 = vadd.f32 0.0, %v2924
      %2926 = vmatmul.f32.gmra.mxu0 %v2899
      %v2927 = vpop.f32.mrf.mxu0
      %v2928 = vadd.f32 0.0, %v2927
      %2929 = vmatmul.f32.gmra.mxu0 %v2902
      %v2930 = vpop.f32.mrf.mxu0
      %v2931 = vadd.f32 0.0, %v2930
      %2932 = vdwg.mxu0
      %v2933 = vadd.f32 %v2663, %v2922
      %v2934 = vadd.f32 %v2666, %v2925
      %v2935 = vadd.f32 %v2669, %v2928
      %v2936 = vadd.f32 %v2672, %v2931
      %2937 = vrot.lane.b32.xlu0 %v2128, 104
      %v2938 = vpop.permute.xlu0 %2937
      %2939 = vrot.lane.b32.xlu0 %v2129, 104
      %v2940 = vpop.permute.xlu0 %2939
      %2941 = vrot.lane.b32.xlu0 %v2130, 104
      %v2942 = vpop.permute.xlu0 %2941
      %2943 = vrot.lane.b32.xlu0 %v2131, 104
      %v2944 = vpop.permute.xlu0 %2943
      %2945 = vrot.lane.b32.xlu0 %v2156, 40
      %v2946 = vpop.permute.xlu0 %2945
      %2947 = vrot.lane.b32.xlu0 %v2157, 40
      %v2948 = vpop.permute.xlu0 %2947
      %2949 = vrot.lane.b32.xlu0 %v2158, 40
      %v2950 = vpop.permute.xlu0 %2949
      %2951 = vrot.lane.b32.xlu0 %v2159, 40
      %v2952 = vpop.permute.xlu0 %2951
      %v2953 = vsel %vm653, %v2938, 0
      %v2955 = vsel %vm653, %v2940, 0
      %v2957 = vsel %vm653, %v2942, 0
      %v2959 = vsel %vm653, %v2944, 0
      %v2961 = vsel %vm653, %v2946, 0
      %v2963 = vsel %vm653, %v2948, 0
      %v2965 = vsel %vm653, %v2950, 0
      %v2967 = vsel %vm653, %v2952, 0
      %2969 = vmatpush.xpose.msra.mxu0 0.0
      %2970 = vmatpush.xpose.msra.mxu0 0.0
      %2971 = vmatpush.xpose.msra.mxu0 0.0
      %2972 = vmatpush.xpose.msra.mxu0 0.0
      %2973 = vmatpush.xpose.msra.mxu0 0.0
      %2974 = vmatpush.xpose.msra.mxu0 0.0
      %2975 = vmatpush.xpose.msra.mxu0 0.0
      %2976 = vmatpush.xpose.msra.mxu0 0.0
      %2977 = vmatpush.xpose.msra.mxu0 0.0
      %2978 = vmatpush.xpose.msra.mxu0 0.0
      %2979 = vmatpush.xpose.msra.mxu0 0.0
      %2980 = vmatpush.xpose.msra.mxu0 0.0
      %2981 = vmatpush.xpose.msra.mxu0 %v2967
      %2982 = vmatpush.xpose.msra.mxu0 %v2965
      %2983 = vmatpush.xpose.msra.mxu0 %v2963
      %2984 = vmatpush.xpose.msra.mxu0 %v2961
      %2985 = vmatmul.f32.gmra.mxu0 %v2953
      %v2986 = vpop.f32.mrf.mxu0
      %v2987 = vadd.f32 0.0, %v2986
      %2988 = vmatmul.f32.gmra.mxu0 %v2955
      %v2989 = vpop.f32.mrf.mxu0
      %v2990 = vadd.f32 0.0, %v2989
      %2991 = vmatmul.f32.gmra.mxu0 %v2957
      %v2992 = vpop.f32.mrf.mxu0
      %v2993 = vadd.f32 0.0, %v2992
      %2994 = vmatmul.f32.gmra.mxu0 %v2959
      %v2995 = vpop.f32.mrf.mxu0
      %v2996 = vadd.f32 0.0, %v2995
      %2997 = vdwg.mxu0
      %v2998 = vmul.f32 %v2987, 0.35355338
      %v2999 = vmul.f32 %v2990, 0.35355338
      %v3000 = vmul.f32 %v2993, 0.35355338
      %v3001 = vmul.f32 %v2996, 0.35355338
      %v3002 = vadd.f32 %v2998, %v250
      %v3003 = vadd.f32 %v2999, %v251
      %v3004 = vadd.f32 %v3000, %v252
      %v3005 = vadd.f32 %v3001, %v253
      %v3006 = vsel %vm321, %v3002, -inf
      %3007 = vmax.xlane.f32.xlu0 %v3006
      %v3008 = vpop.xlane.xlu0 %3007
      %v3009 = vsel %vm321, %v3003, -inf
      %3010 = vmax.xlane.f32.xlu0 %v3009
      %v3011 = vpop.xlane.xlu0 %3010
      %v3012 = vsel %vm321, %v3004, -inf
      %3013 = vmax.xlane.f32.xlu0 %v3012
      %v3014 = vpop.xlane.xlu0 %3013
      %v3015 = vsel %vm321, %v3005, -inf
      %3016 = vmax.xlane.f32.xlu0 %v3015
      %v3017 = vpop.xlane.xlu0 %3016
      %v3018 = vsub.f32 %v3002, %v3008
      %v3019 = vsub.f32 %v3003, %v3011
      %v3020 = vsub.f32 %v3004, %v3014
      %v3021 = vsub.f32 %v3005, %v3017
      %v3022 = vmul.f32 %v3018, 1.442695
      %v3023 = vpow.pop %v3022
      %v3024 = vmul.f32 %v3019, 1.442695
      %v3025 = vpow.pop %v3024
      %v3026 = vmul.f32 %v3020, 1.442695
      %v3027 = vpow.pop %v3026
      %v3028 = vmul.f32 %v3021, 1.442695
      %v3029 = vpow.pop %v3028
      %v3030 = vsel %vm321, %v3023, 0.0
      %3031 = vadd.xlane.f32.xlu0 %v3030
      %v3032 = vpop.xlane.xlu0 %3031
      %v3033 = vsel %vm321, %v3025, 0.0
      %3034 = vadd.xlane.f32.xlu0 %v3033
      %v3035 = vpop.xlane.xlu0 %3034
      %v3036 = vsel %vm321, %v3027, 0.0
      %3037 = vadd.xlane.f32.xlu0 %v3036
      %v3038 = vpop.xlane.xlu0 %3037
      %v3039 = vsel %vm321, %v3029, 0.0
      %3040 = vadd.xlane.f32.xlu0 %v3039
      %v3041 = vpop.xlane.xlu0 %3040
      %v3042 = vrcp.pop %v3032
      %v3043 = vmul.f32 %v3032, %v3042
      %v3044 = vsub.f32 1.0, %v3043
      %v3045 = vmul.f32 %v3042, %v3044
      %v3046 = vadd.f32 %v3042, %v3045
      %vm3047 = vweird.f32 %v3032
      %vm3048 = vweird.f32 %v3042
      %vm3049 = vmor %vm3047, %vm3048
      %v3050 = vsel %vm3049, %v3042, %v3046
      %v3051 = vand.u32 2147483647, %v3032
      %vm3052 = vcmp.eq.f32.partialorder %v3051, 8.507059e+37
      %v3053 = vand.u32 %v3032, 2147483648
      %v3054 = vor.u32 1.1754944e-38, %v3053
      %v3055 = vsel %vm3052, %v3054, %v3050
      %v3056 = vmul.f32 %v3023, %v3055
      %v3057 = vrcp.pop %v3035
      %v3058 = vmul.f32 %v3035, %v3057
      %v3059 = vsub.f32 1.0, %v3058
      %v3060 = vmul.f32 %v3057, %v3059
      %v3061 = vadd.f32 %v3057, %v3060
      %vm3062 = vweird.f32 %v3035
      %vm3063 = vweird.f32 %v3057
      %vm3064 = vmor %vm3062, %vm3063
      %v3065 = vsel %vm3064, %v3057, %v3061
      %v3066 = vand.u32 2147483647, %v3035
      %vm3067 = vcmp.eq.f32.partialorder %v3066, 8.507059e+37
      %v3068 = vand.u32 %v3035, 2147483648
      %v3069 = vor.u32 1.1754944e-38, %v3068
      %v3070 = vsel %vm3067, %v3069, %v3065
      %v3071 = vmul.f32 %v3025, %v3070
      %v3072 = vrcp.pop %v3038
      %v3073 = vmul.f32 %v3038, %v3072
      %v3074 = vsub.f32 1.0, %v3073
      %v3075 = vmul.f32 %v3072, %v3074
      %v3076 = vadd.f32 %v3072, %v3075
      %vm3077 = vweird.f32 %v3038
      %vm3078 = vweird.f32 %v3072
      %vm3079 = vmor %vm3077, %vm3078
      %v3080 = vsel %vm3079, %v3072, %v3076
      %v3081 = vand.u32 2147483647, %v3038
      %vm3082 = vcmp.eq.f32.partialorder %v3081, 8.507059e+37
      %v3083 = vand.u32 %v3038, 2147483648
      %v3084 = vor.u32 1.1754944e-38, %v3083
      %v3085 = vsel %vm3082, %v3084, %v3080
      %v3086 = vmul.f32 %v3027, %v3085
      %v3087 = vrcp.pop %v3041
      %v3088 = vmul.f32 %v3041, %v3087
      %v3089 = vsub.f32 1.0, %v3088
      %v3090 = vmul.f32 %v3087, %v3089
      %v3091 = vadd.f32 %v3087, %v3090
      %vm3092 = vweird.f32 %v3041
      %vm3093 = vweird.f32 %v3087
      %vm3094 = vmor %vm3092, %vm3093
      %v3095 = vsel %vm3094, %v3087, %v3091
      %v3096 = vand.u32 2147483647, %v3041
      %vm3097 = vcmp.eq.f32.partialorder %v3096, 8.507059e+37
      %v3098 = vand.u32 %v3041, 2147483648
      %v3099 = vor.u32 1.1754944e-38, %v3098
      %v3100 = vsel %vm3097, %v3099, %v3095
      %v3101 = vmul.f32 %v3029, %v3100
      %3102 = vrot.lane.b32.xlu0 %v2093, 104
      %v3103 = vpop.permute.xlu0 %3102
      %3104 = vrot.lane.b32.xlu0 %v2096, 104
      %v3105 = vpop.permute.xlu0 %3104
      %3106 = vrot.lane.b32.xlu0 %v2099, 104
      %v3107 = vpop.permute.xlu0 %3106
      %3108 = vrot.lane.b32.xlu0 %v2102, 104
      %v3109 = vpop.permute.xlu0 %3108
      %v3115 = vsel %vm321, %v3056, 0
      %v3118 = vsel %vm321, %v3071, 0
      %v3121 = vsel %vm321, %v3086, 0
      %v3124 = vsel %vm321, %v3101, 0
      %3126 = vmatpush.msra.mxu0 0.0
      %3127 = vmatpush.msra.mxu0 0.0
      %3128 = vmatpush.msra.mxu0 0.0
      %3129 = vmatpush.msra.mxu0 0.0
      %3130 = vmatpush.msra.mxu0 0.0
      %3131 = vmatpush.msra.mxu0 0.0
      %3132 = vmatpush.msra.mxu0 0.0
      %3133 = vmatpush.msra.mxu0 0.0
      %3134 = vmatpush.msra.mxu0 0.0
      %3135 = vmatpush.msra.mxu0 0.0
      %3136 = vmatpush.msra.mxu0 0.0
      %3137 = vmatpush.msra.mxu0 0.0
      %3138 = vmatpush.msra.mxu0 %v3109
      %3139 = vmatpush.msra.mxu0 %v3107
      %3140 = vmatpush.msra.mxu0 %v3105
      %3141 = vmatpush.msra.mxu0 %v3103
      %3142 = vmatmul.f32.gmra.mxu0 %v3115
      %v3143 = vpop.f32.mrf.mxu0
      %v3144 = vadd.f32 0.0, %v3143
      %3145 = vmatmul.f32.gmra.mxu0 %v3118
      %v3146 = vpop.f32.mrf.mxu0
      %v3147 = vadd.f32 0.0, %v3146
      %3148 = vmatmul.f32.gmra.mxu0 %v3121
      %v3149 = vpop.f32.mrf.mxu0
      %v3150 = vadd.f32 0.0, %v3149
      %3151 = vmatmul.f32.gmra.mxu0 %v3124
      %v3152 = vpop.f32.mrf.mxu0
      %v3153 = vadd.f32 0.0, %v3152
      %3154 = vdwg.mxu0
      %v3156 = vsel %vm653, %v3144, 0
      %v3159 = vsel %vm653, %v3147, 0
      %v3162 = vsel %vm653, %v3150, 0
      %v3165 = vsel %vm653, %v3153, 0
      %3167 = vmatpush.msra.mxu0 0.0
      %3168 = vmatpush.msra.mxu0 0.0
      %3169 = vmatpush.msra.mxu0 0.0
      %3170 = vmatpush.msra.mxu0 0.0
      %3171 = vmatpush.msra.mxu0 0.0
      %3172 = vmatpush.msra.mxu0 0.0
      %3173 = vmatpush.msra.mxu0 0.0
      %3174 = vmatpush.msra.mxu0 0.0
      %3175 = vmatpush.msra.mxu0 0.0
      %3176 = vmatpush.msra.mxu0 0.0
      %3177 = vmatpush.msra.mxu0 0.0
      %3178 = vmatpush.msra.mxu0 0.0
      %3179 = vmatpush.msra.mxu0 0.0
      %3180 = vmatpush.msra.mxu0 0.0
      %3181 = vmatpush.msra.mxu0 0.0
      %3182 = vmatpush.msra.mxu0 %v2163
      %3183 = vmatmul.f32.gmra.mxu0 %v3156
      %v3184 = vpop.f32.mrf.mxu0
      %v3185 = vadd.f32 0.0, %v3184
      %3186 = vmatmul.f32.gmra.mxu0 %v3159
      %v3187 = vpop.f32.mrf.mxu0
      %v3188 = vadd.f32 0.0, %v3187
      %3189 = vmatmul.f32.gmra.mxu0 %v3162
      %v3190 = vpop.f32.mrf.mxu0
      %v3191 = vadd.f32 0.0, %v3190
      %3192 = vmatmul.f32.gmra.mxu0 %v3165
      %v3193 = vpop.f32.mrf.mxu0
      %v3194 = vadd.f32 0.0, %v3193
      %3195 = vdwg.mxu0
      %v3196 = vadd.f32 %v2933, %v3185
      %v3197 = vadd.f32 %v2934, %v3188
      %v3198 = vadd.f32 %v2935, %v3191
      %v3199 = vadd.f32 %v2936, %v3194
      %v3200 = vadd.f32 %v1917, %v3196
      %v3201 = vadd.f32 %v1918, %v3197
      %v3202 = vadd.f32 %v1919, %v3198
      %v3203 = vadd.f32 %v1920, %v3199
      %v3204 = vld [vmem:[%s4 + $0x350] ss:$0 sm:$0xff]
      %v3205 = vadd.f32 %v3200, %v3204
      %v3206 = vadd.f32 %v3201, %v3204
      %v3207 = vadd.f32 %v3202, %v3204
      %v3208 = vadd.f32 %v3203, %v3204
      %v3209 = vld [vmem:[%s4 + $0x360] ss:$0 sm:$0xff]
      %v3210 = vld [vmem:[%s4 + $0x370] ss:$0 sm:$0xff]
      %v3211 = vsel %vm321, %v3205, 0.0
      %3212 = vadd.xlane.f32.xlu0 %v3211
      %v3213 = vpop.xlane.xlu0 %3212
      %v3214 = vsel %vm321, %v3206, 0.0
      %3215 = vadd.xlane.f32.xlu0 %v3214
      %v3216 = vpop.xlane.xlu0 %3215
      %v3217 = vsel %vm321, %v3207, 0.0
      %3218 = vadd.xlane.f32.xlu0 %v3217
      %v3219 = vpop.xlane.xlu0 %3218
      %v3220 = vsel %vm321, %v3208, 0.0
      %3221 = vadd.xlane.f32.xlu0 %v3220
      %v3222 = vpop.xlane.xlu0 %3221
      %v3223 = vmul.f32 %v3213, %v367
      %v3224 = vmul.f32 %v3216, %v367
      %v3225 = vmul.f32 %v3219, %v367
      %v3226 = vmul.f32 %v3222, %v367
      %v3227 = vsub.f32 %v3205, %v3223
      %v3228 = vsub.f32 %v3206, %v3224
      %v3229 = vsub.f32 %v3207, %v3225
      %v3230 = vsub.f32 %v3208, %v3226
      %v3231 = vmul.f32 %v3227, %v3227
      %v3232 = vmul.f32 %v3228, %v3228
      %v3233 = vmul.f32 %v3229, %v3229
      %v3234 = vmul.f32 %v3230, %v3230
      %v3235 = vsel %vm321, %v3231, 0.0
      %3236 = vadd.xlane.f32.xlu0 %v3235
      %v3237 = vpop.xlane.xlu0 %3236
      %v3238 = vsel %vm321, %v3232, 0.0
      %3239 = vadd.xlane.f32.xlu0 %v3238
      %v3240 = vpop.xlane.xlu0 %3239
      %v3241 = vsel %vm321, %v3233, 0.0
      %3242 = vadd.xlane.f32.xlu0 %v3241
      %v3243 = vpop.xlane.xlu0 %3242
      %v3244 = vsel %vm321, %v3234, 0.0
      %3245 = vadd.xlane.f32.xlu0 %v3244
      %v3246 = vpop.xlane.xlu0 %3245
      %v3247 = vmul.f32 %v3237, %v367
      %v3248 = vmul.f32 %v3240, %v367
      %v3249 = vmul.f32 %v3243, %v367
      %v3250 = vmul.f32 %v3246, %v367
      %v3251 = vadd.f32 %v3247, 1e-05
      %v3252 = vadd.f32 %v3248, 1e-05
      %v3253 = vadd.f32 %v3249, 1e-05
      %v3254 = vadd.f32 %v3250, 1e-05
      %v3255 = vrsqrt.pop %v3251
      %v3256 = vmul.f32 %v3255, %v3251
      %v3257 = vmul.f32 %v3256, %v3255
      %v3258 = vmul.f32 0.5, %v3257
      %v3259 = vsub.f32 1.5, %v3258
      %v3260 = vmul.f32 %v3255, %v3259
      %vm3261 = vweird.f32 %v3251
      %vm3262 = vweird.f32 %v3255
      %vm3263 = vmor %vm3261, %vm3262
      %v3264 = vsel %vm3263, %v3255, %v3260
      %v3265 = vrsqrt.pop %v3252
      %v3266 = vmul.f32 %v3265, %v3252
      %v3267 = vmul.f32 %v3266, %v3265
      %v3268 = vmul.f32 0.5, %v3267
      %v3269 = vsub.f32 1.5, %v3268
      %v3270 = vmul.f32 %v3265, %v3269
      %vm3271 = vweird.f32 %v3252
      %vm3272 = vweird.f32 %v3265
      %vm3273 = vmor %vm3271, %vm3272
      %v3274 = vsel %vm3273, %v3265, %v3270
      %v3275 = vrsqrt.pop %v3253
      %v3276 = vmul.f32 %v3275, %v3253
      %v3277 = vmul.f32 %v3276, %v3275
      %v3278 = vmul.f32 0.5, %v3277
      %v3279 = vsub.f32 1.5, %v3278
      %v3280 = vmul.f32 %v3275, %v3279
      %vm3281 = vweird.f32 %v3253
      %vm3282 = vweird.f32 %v3275
      %vm3283 = vmor %vm3281, %vm3282
      %v3284 = vsel %vm3283, %v3275, %v3280
      %v3285 = vrsqrt.pop %v3254
      %v3286 = vmul.f32 %v3285, %v3254
      %v3287 = vmul.f32 %v3286, %v3285
      %v3288 = vmul.f32 0.5, %v3287
      %v3289 = vsub.f32 1.5, %v3288
      %v3290 = vmul.f32 %v3285, %v3289
      %vm3291 = vweird.f32 %v3254
      %vm3292 = vweird.f32 %v3285
      %vm3293 = vmor %vm3291, %vm3292
      %v3294 = vsel %vm3293, %v3285, %v3290
      %v3295 = vmul.f32 %v3227, %v3264
      %v3296 = vmul.f32 %v3228, %v3274
      %v3297 = vmul.f32 %v3229, %v3284
      %v3298 = vmul.f32 %v3230, %v3294
      %v3299 = vmul.f32 %v3295, %v3209
      %v3300 = vmul.f32 %v3296, %v3209
      %v3301 = vmul.f32 %v3297, %v3209
      %v3302 = vmul.f32 %v3298, %v3209
      %v3303 = vadd.f32 %v3299, %v3210
      %v3304 = vadd.f32 %v3300, %v3210
      %v3305 = vadd.f32 %v3301, %v3210
      %v3306 = vadd.f32 %v3302, %v3210
      %v3307 = vld [vmem:[%s4 + $0x380] sm:$0xff]
      %v3308 = vld [vmem:[%s4 + $0x390] sm:$0xff]
      %v3309 = vld [vmem:[%s4 + $0x3a0] sm:$0xff]
      %v3310 = vld [vmem:[%s4 + $0x3b0] sm:$0xff]
      %v3311 = vld [vmem:[%s4 + $0x3c0] ss:$0 sm:$0xff]
      %v3313 = vsel %vm321, %v3303, 0
      %v3316 = vsel %vm321, %v3304, 0
      %v3319 = vsel %vm321, %v3305, 0
      %v3322 = vsel %vm321, %v3306, 0
      %3324 = vmatpush.msra.mxu0 0.0
      %3325 = vmatpush.msra.mxu0 0.0
      %3326 = vmatpush.msra.mxu0 0.0
      %3327 = vmatpush.msra.mxu0 0.0
      %3328 = vmatpush.msra.mxu0 0.0
      %3329 = vmatpush.msra.mxu0 0.0
      %3330 = vmatpush.msra.mxu0 0.0
      %3331 = vmatpush.msra.mxu0 0.0
      %3332 = vmatpush.msra.mxu0 0.0
      %3333 = vmatpush.msra.mxu0 0.0
      %3334 = vmatpush.msra.mxu0 0.0
      %3335 = vmatpush.msra.mxu0 0.0
      %3336 = vmatpush.msra.mxu0 %v3310
      %3337 = vmatpush.msra.mxu0 %v3309
      %3338 = vmatpush.msra.mxu0 %v3308
      %3339 = vmatpush.msra.mxu0 %v3307
      %3340 = vmatmul.f32.gmra.mxu0 %v3313
      %v3341 = vpop.f32.mrf.mxu0
      %v3342 = vadd.f32 %v3311, %v3341
      %3343 = vmatmul.f32.gmra.mxu0 %v3316
      %v3344 = vpop.f32.mrf.mxu0
      %v3345 = vadd.f32 %v3311, %v3344
      %3346 = vmatmul.f32.gmra.mxu0 %v3319
      %v3347 = vpop.f32.mrf.mxu0
      %v3348 = vadd.f32 %v3311, %v3347
      %3349 = vmatmul.f32.gmra.mxu0 %v3322
      %v3350 = vpop.f32.mrf.mxu0
      %v3351 = vadd.f32 %v3311, %v3350
      %3352 = vdwg.mxu0
      %v3353 = vmul.f32 %v3342, %v3342
      %v3354 = vmul.f32 %v3345, %v3345
      %v3355 = vmul.f32 %v3348, %v3348
      %v3356 = vmul.f32 %v3351, %v3351
      %v3357 = vmul.f32 %v3342, %v3353
      %v3358 = vmul.f32 %v3345, %v3354
      %v3359 = vmul.f32 %v3348, %v3355
      %v3360 = vmul.f32 %v3351, %v3356
      %v3361 = vmul.f32 %v3357, 0.044715
      %v3362 = vmul.f32 %v3358, 0.044715
      %v3363 = vmul.f32 %v3359, 0.044715
      %v3364 = vmul.f32 %v3360, 0.044715
      %v3365 = vadd.f32 %v3342, %v3361
      %v3366 = vadd.f32 %v3345, %v3362
      %v3367 = vadd.f32 %v3348, %v3363
      %v3368 = vadd.f32 %v3351, %v3364
      %v3369 = vmul.f32 %v3365, 0.7978846
      %v3370 = vmul.f32 %v3366, 0.7978846
      %v3371 = vmul.f32 %v3367, 0.7978846
      %v3372 = vmul.f32 %v3368, 0.7978846
      %v3373 = vtanh.pop %v3369
      %v3374 = vtanh.pop %v3370
      %v3375 = vtanh.pop %v3371
      %v3376 = vtanh.pop %v3372
      %v3377 = vadd.f32 %v3373, 1.0
      %v3378 = vadd.f32 %v3374, 1.0
      %v3379 = vadd.f32 %v3375, 1.0
      %v3380 = vadd.f32 %v3376, 1.0
      %v3381 = vmul.f32 %v3377, 0.5
      %v3382 = vmul.f32 %v3378, 0.5
      %v3383 = vmul.f32 %v3379, 0.5
      %v3384 = vmul.f32 %v3380, 0.5
      %v3385 = vmul.f32 %v3342, %v3381
      %v3386 = vmul.f32 %v3345, %v3382
      %v3387 = vmul.f32 %v3348, %v3383
      %v3388 = vmul.f32 %v3351, %v3384
      %v3389 = vld [vmem:[%s4 + $0x3d0] sm:$0xff]
      %v3390 = vld [vmem:[%s4 + $0x3e0] sm:$0xff]
      %v3391 = vld [vmem:[%s4 + $0x3f0] sm:$0xff]
      %v3392 = vld [vmem:[%s4 + $0x400] sm:$0xff]
      %v3393 = vld [vmem:[%s4 + $0x410] sm:$0xff]
      %v3394 = vld [vmem:[%s4 + $0x420] sm:$0xff]
      %v3395 = vld [vmem:[%s4 + $0x430] sm:$0xff]
      %v3396 = vld [vmem:[%s4 + $0x440] sm:$0xff]
      %v3397 = vld [vmem:[%s4 + $0x450] sm:$0xff]
      %v3398 = vld [vmem:[%s4 + $0x460] sm:$0xff]
      %v3399 = vld [vmem:[%s4 + $0x470] sm:$0xff]
      %v3400 = vld [vmem:[%s4 + $0x480] sm:$0xff]
      %v3401 = vld [vmem:[%s4 + $0x490] sm:$0xff]
      %v3402 = vld [vmem:[%s4 + $0x4a0] sm:$0xff]
      %v3403 = vld [vmem:[%s4 + $0x4b0] sm:$0xff]
      %v3404 = vld [vmem:[%s4 + $0x4c0] sm:$0xff]
      %3405 = vmatpush.msra.mxu0 %v3404
      %3406 = vmatpush.msra.mxu0 %v3403
      %3407 = vmatpush.msra.mxu0 %v3402
      %3408 = vmatpush.msra.mxu0 %v3401
      %3409 = vmatpush.msra.mxu0 %v3400
      %3410 = vmatpush.msra.mxu0 %v3399
      %3411 = vmatpush.msra.mxu0 %v3398
      %3412 = vmatpush.msra.mxu0 %v3397
      %3413 = vmatpush.msra.mxu0 %v3396
      %3414 = vmatpush.msra.mxu0 %v3395
      %3415 = vmatpush.msra.mxu0 %v3394
      %3416 = vmatpush.msra.mxu0 %v3393
      %3417 = vmatpush.msra.mxu0 %v3392
      %3418 = vmatpush.msra.mxu0 %v3391
      %3419 = vmatpush.msra.mxu0 %v3390
      %3420 = vmatpush.msra.mxu0 %v3389
      %3421 = vmatmul.f32.gmra.mxu0 %v3385
      %v3422 = vpop.f32.mrf.mxu0
      %v3423 = vadd.f32 0.0, %v3422
      %3424 = vmatmul.f32.gmra.mxu0 %v3386
      %v3425 = vpop.f32.mrf.mxu0
      %v3426 = vadd.f32 0.0, %v3425
      %3427 = vmatmul.f32.gmra.mxu0 %v3387
      %v3428 = vpop.f32.mrf.mxu0
      %v3429 = vadd.f32 0.0, %v3428
      %3430 = vmatmul.f32.gmra.mxu0 %v3388
      %v3431 = vpop.f32.mrf.mxu0
      %v3432 = vadd.f32 0.0, %v3431
      %3433 = vdwg.mxu0
      %v3434 = vadd.f32 %v3205, %v3423
      %v3435 = vadd.f32 %v3206, %v3426
      %v3436 = vadd.f32 %v3207, %v3429
      %v3437 = vadd.f32 %v3208, %v3432
      %v3438 = vld [vmem:[%s4 + $0x4d0] ss:$0 sm:$0xff]
      %v3439 = vadd.f32 %v3434, %v3438
      %v3440 = vadd.f32 %v3435, %v3438
      %v3441 = vadd.f32 %v3436, %v3438
      %v3442 = vadd.f32 %v3437, %v3438
      %v3443 = vld [vmem:[%s4 + $0x4e0] ss:$0 sm:$0xff]
      %v3444 = vld [vmem:[%s4 + $0x4f0] ss:$0 sm:$0xff]
      %v3445 = vsel %vm321, %v3439, 0.0
      %3446 = vadd.xlane.f32.xlu0 %v3445
      %v3447 = vpop.xlane.xlu0 %3446
      %v3448 = vsel %vm321, %v3440, 0.0
      %3449 = vadd.xlane.f32.xlu0 %v3448
      %v3450 = vpop.xlane.xlu0 %3449
      %v3451 = vsel %vm321, %v3441, 0.0
      %3452 = vadd.xlane.f32.xlu0 %v3451
      %v3453 = vpop.xlane.xlu0 %3452
      %v3454 = vsel %vm321, %v3442, 0.0
      %3455 = vadd.xlane.f32.xlu0 %v3454
      %v3456 = vpop.xlane.xlu0 %3455
      %v3457 = vmul.f32 %v3447, %v367
      %v3458 = vmul.f32 %v3450, %v367
      %v3459 = vmul.f32 %v3453, %v367
      %v3460 = vmul.f32 %v3456, %v367
      %v3461 = vsub.f32 %v3439, %v3457
      %v3462 = vsub.f32 %v3440, %v3458
      %v3463 = vsub.f32 %v3441, %v3459
      %v3464 = vsub.f32 %v3442, %v3460
      %v3465 = vmul.f32 %v3461, %v3461
      %v3466 = vmul.f32 %v3462, %v3462
      %v3467 = vmul.f32 %v3463, %v3463
      %v3468 = vmul.f32 %v3464, %v3464
      %v3469 = vsel %vm321, %v3465, 0.0
      %3470 = vadd.xlane.f32.xlu0 %v3469
      %v3471 = vpop.xlane.xlu0 %3470
      %v3472 = vsel %vm321, %v3466, 0.0
      %3473 = vadd.xlane.f32.xlu0 %v3472
      %v3474 = vpop.xlane.xlu0 %3473
      %v3475 = vsel %vm321, %v3467, 0.0
      %3476 = vadd.xlane.f32.xlu0 %v3475
      %v3477 = vpop.xlane.xlu0 %3476
      %v3478 = vsel %vm321, %v3468, 0.0
      %3479 = vadd.xlane.f32.xlu0 %v3478
      %v3480 = vpop.xlane.xlu0 %3479
      %v3481 = vmul.f32 %v3471, %v367
      %v3482 = vmul.f32 %v3474, %v367
      %v3483 = vmul.f32 %v3477, %v367
      %v3484 = vmul.f32 %v3480, %v367
      %v3485 = vadd.f32 %v3481, 1e-05
      %v3486 = vadd.f32 %v3482, 1e-05
      %v3487 = vadd.f32 %v3483, 1e-05
      %v3488 = vadd.f32 %v3484, 1e-05
      %v3489 = vrsqrt.pop %v3485
      %v3490 = vmul.f32 %v3489, %v3485
      %v3491 = vmul.f32 %v3490, %v3489
      %v3492 = vmul.f32 0.5, %v3491
      %v3493 = vsub.f32 1.5, %v3492
      %v3494 = vmul.f32 %v3489, %v3493
      %vm3495 = vweird.f32 %v3485
      %vm3496 = vweird.f32 %v3489
      %vm3497 = vmor %vm3495, %vm3496
      %v3498 = vsel %vm3497, %v3489, %v3494
      %v3499 = vrsqrt.pop %v3486
      %v3500 = vmul.f32 %v3499, %v3486
      %v3501 = vmul.f32 %v3500, %v3499
      %v3502 = vmul.f32 0.5, %v3501
      %v3503 = vsub.f32 1.5, %v3502
      %v3504 = vmul.f32 %v3499, %v3503
      %vm3505 = vweird.f32 %v3486
      %vm3506 = vweird.f32 %v3499
      %vm3507 = vmor %vm3505, %vm3506
      %v3508 = vsel %vm3507, %v3499, %v3504
      %v3509 = vrsqrt.pop %v3487
      %v3510 = vmul.f32 %v3509, %v3487
      %v3511 = vmul.f32 %v3510, %v3509
      %v3512 = vmul.f32 0.5, %v3511
      %v3513 = vsub.f32 1.5, %v3512
      %v3514 = vmul.f32 %v3509, %v3513
      %vm3515 = vweird.f32 %v3487
      %vm3516 = vweird.f32 %v3509
      %vm3517 = vmor %vm3515, %vm3516
      %v3518 = vsel %vm3517, %v3509, %v3514
      %v3519 = vrsqrt.pop %v3488
      %v3520 = vmul.f32 %v3519, %v3488
      %v3521 = vmul.f32 %v3520, %v3519
      %v3522 = vmul.f32 0.5, %v3521
      %v3523 = vsub.f32 1.5, %v3522
      %v3524 = vmul.f32 %v3519, %v3523
      %vm3525 = vweird.f32 %v3488
      %vm3526 = vweird.f32 %v3519
      %vm3527 = vmor %vm3525, %vm3526
      %v3528 = vsel %vm3527, %v3519, %v3524
      %v3529 = vmul.f32 %v3461, %v3498
      %v3530 = vmul.f32 %v3462, %v3508
      %v3531 = vmul.f32 %v3463, %v3518
      %v3532 = vmul.f32 %v3464, %v3528
      %v3533 = vmul.f32 %v3529, %v3443
      %v3534 = vmul.f32 %v3530, %v3443
      %v3535 = vmul.f32 %v3531, %v3443
      %v3536 = vmul.f32 %v3532, %v3443
      %v3537 = vadd.f32 %v3533, %v3444
      %v3538 = vadd.f32 %v3534, %v3444
      %v3539 = vadd.f32 %v3535, %v3444
      %v3540 = vadd.f32 %v3536, %v3444
      %v3541 = vld [vmem:[%s4 + $0x500] sm:$0xff]
      %v3542 = vld [vmem:[%s4 + $0x510] sm:$0xff]
      %v3543 = vld [vmem:[%s4 + $0x520] sm:$0xff]
      %v3544 = vld [vmem:[%s4 + $0x530] sm:$0xff]
      %v3545 = vld [vmem:[%s4 + $0x540] ss:$0 sm:$0xff]
      %v3547 = vsel %vm321, %v3537, 0
      %v3550 = vsel %vm321, %v3538, 0
      %v3553 = vsel %vm321, %v3539, 0
      %v3556 = vsel %vm321, %v3540, 0
      %3558 = vmatpush.msra.mxu0 0.0
      %3559 = vmatpush.msra.mxu0 0.0
      %3560 = vmatpush.msra.mxu0 0.0
      %3561 = vmatpush.msra.mxu0 0.0
      %3562 = vmatpush.msra.mxu0 0.0
      %3563 = vmatpush.msra.mxu0 0.0
      %3564 = vmatpush.msra.mxu0 0.0
      %3565 = vmatpush.msra.mxu0 0.0
      %3566 = vmatpush.msra.mxu0 0.0
      %3567 = vmatpush.msra.mxu0 0.0
      %3568 = vmatpush.msra.mxu0 0.0
      %3569 = vmatpush.msra.mxu0 0.0
      %3570 = vmatpush.msra.mxu0 %v3544
      %3571 = vmatpush.msra.mxu0 %v3543
      %3572 = vmatpush.msra.mxu0 %v3542
      %3573 = vmatpush.msra.mxu0 %v3541
      %3574 = vmatmul.f32.gmra.mxu0 %v3547
      %v3575 = vpop.f32.mrf.mxu0
      %v3576 = vadd.f32 %v3545, %v3575
      %3577 = vmatmul.f32.gmra.mxu0 %v3550
      %v3578 = vpop.f32.mrf.mxu0
      %v3579 = vadd.f32 %v3545, %v3578
      %3580 = vmatmul.f32.gmra.mxu0 %v3553
      %v3581 = vpop.f32.mrf.mxu0
      %v3582 = vadd.f32 %v3545, %v3581
      %3583 = vmatmul.f32.gmra.mxu0 %v3556
      %v3584 = vpop.f32.mrf.mxu0
      %v3585 = vadd.f32 %v3545, %v3584
      %3586 = vdwg.mxu0
      %3587 = vst [vmem:[%s241] sm:$0xff] %v3576
      %3588 = vst [vmem:[%s241 + $0x8] sm:$0xff] %v3579
      %3589 = vst [vmem:[%s241 + $0x10] sm:$0xff] %v3582
      %3590 = vst [vmem:[%s241 + $0x18] sm:$0xff] %v3585
      %p3591 = scmp.lt.s32.totalorder %s16, 1
      %s3592 = scalar_select %p3591, %s16, 1
      %s3593 = smul.addr %s3592, 4
      %s3594 = smul.addr %s3593, 8
      %s3595 = scalar_lea.vmem %s5, %s3594
      // Predicated region
      $region41: #{_lambda_.1} parent=39 // pred_check
        %p3596 = pneg %p149
      $region42: #{_lambda_.1} parent=39 // pred_check_branch
        %3598 = sbr.rel (%p3596) target = $region44
      $region43: #{_lambda_.1} parent=39 // pred_region
        _
      $region44: #{_lambda_.1} parent=39 // pred_fallthru
        _
    $region40: #{_lambda_.1} parent=5 // pred_fallthru
      _
    %p3599 = scmp.le.s32.totalorder 2, %s11
    // Predicated region
    $region45: #{_lambda_.1} parent=5 // pred_check
      %p3600 = pneg %p3599
    $region46: #{_lambda_.1} parent=5 // pred_check_branch
      %3602 = sbr.rel (%p3600) target = $region48
    $region47: #{_lambda_.1} parent=5 // pred_region
      %s3603 = ssub.s32 %s11, 2
      // Predicated region
      $region49: #{_lambda_.1} parent=47 // pred_check
        %p3604 = pneg %p155
      $region50: #{_lambda_.1} parent=47 // pred_check_branch
        %3606 = sbr.rel (%p3604) target = $region52
      $region51: #{_lambda_.1} parent=47 // pred_region
        %p3607 = scmp.lt.s32.totalorder %s17, 1
        %s3608 = scalar_select %p3607, %s17, 1
        %s3609 = smul.addr %s3608, 4
        %s3610 = smul.addr %s3609, 8
        %s3611 = scalar_lea.vmem %s5, %s3610
      $region52: #{_lambda_.1} parent=47 // pred_fallthru
        _
    $region48: #{_lambda_.1} parent=5 // pred_fallthru
      _
  $region6: #{_lambda_.1} parent=0 // loop_footer
    %s15 = sadd.s32 1, %s11
  $region7: #{_lambda_.1} parent=0 // loop_footer_branch
    %10 = sbr.rel target = $region3
  $region8: #{_lambda_.1} parent=0 // loop_exit
    _

</llo_original>
